<compile_context>
chip_gen: v7x
topology: tpu7x:2x2x1
jax: 0.10.0
libtpu: 0.0.40
codegen_flags: <defaults>
</compile_context>

<pallas_src>
import functools

import jax
import jax.numpy as jnp
import numpy as np
from jax.experimental import pallas as pl
from jax.experimental.pallas import tpu as pltpu


# (name, kernel, stride, in_c, out_c, padded contraction dim K)
CONV_CFG = (
    ("conv1", 8, 4, 4, 32, 256),     # 4*8*8  = 256
    ("conv2", 4, 2, 32, 64, 512),    # 32*4*4 = 512
    ("conv3", 3, 1, 64, 32, 640),    # 64*3*3 = 576 -> pad to 640 (full-width loads)
)

ACT_PAD = 128   # pad the action head to a lane-dense 128-wide output


def _round_up(x, m):
    return ((x + m - 1) // m) * m


def _choose_tm(m):
    m8 = _round_up(m, 8)
    return m8 if m8 <= 1024 else 512


# ----------------------------------------------------------------------------
# Pallas kernel 1: fused  out = act(x @ w + b)   (bf16 MXU inputs, f32 accum)
# ----------------------------------------------------------------------------
def _matmul_bias_act_kernel(x_ref, w_ref, b_ref, o_ref, *, activation):
    acc = jnp.dot(x_ref[...], w_ref[...], preferred_element_type=jnp.float32)
    acc = acc + b_ref[...]                       # b is (1, N), broadcasts over rows
    if activation == "relu":
        acc = jnp.maximum(acc, 0.0)
    o_ref[...] = acc.astype(o_ref.dtype)


def matmul_bias_act(x, w, b, *, activation=None, out_dtype=jnp.float32):
    """x: (M, K) bf16, w: (K, N) bf16, b: (1, N) f32  ->  (M, N) out_dtype."""
    M, K = x.shape
    Kw, N = w.shape
    assert K == Kw
    tm = _choose_tm(M)
    Mp = _round_up(M, tm)
    if Mp != M:
        x = jnp.pad(x, ((0, Mp - M), (0, 0)))
    out = pl.pallas_call(
        functools.partial(_matmul_bias_act_kernel, activation=activation),
        out_shape=jax.ShapeDtypeStruct((Mp, N), out_dtype),
        grid=(Mp // tm,),
        in_specs=[
            pl.BlockSpec((tm, K), lambda i: (i, 0)),   # activation tile (rows i)
            pl.BlockSpec((K, N), lambda i: (0, 0)),    # weight, VMEM-resident
            pl.BlockSpec((1, N), lambda i: (0, 0)),    # bias
        ],
        out_specs=pl.BlockSpec((tm, N), lambda i: (i, 0)),
        compiler_params=pltpu.CompilerParams(dimension_semantics=("parallel",)),
    )(x, w, b)
    return out if Mp == M else out[:M]


# ----------------------------------------------------------------------------
# Pallas kernel 2: fused fc1 + action head + softmax (one launch, no HBM h)
# ----------------------------------------------------------------------------
def _mlp_head_kernel(x_ref, w1_ref, b1_ref, w2_ref, b2_ref, o_ref):
    h = jnp.dot(x_ref[...], w1_ref[...], preferred_element_type=jnp.float32)
    h = jnp.maximum(h + b1_ref[...], 0.0)
    logits = jnp.dot(h.astype(jnp.bfloat16), w2_ref[...],
                     preferred_element_type=jnp.float32) + b2_ref[...]
    m = jnp.max(logits, axis=-1, keepdims=True)
    e = jnp.exp(logits - m)
    denom = jnp.sum(e, axis=-1, keepdims=True)
    o_ref[...] = e * pl.reciprocal(denom, approx=True)


def mlp_head(feat, w1, b1, w2, b2):
    """feat: (M, 1568) bf16 -> softmax(relu(feat@W1+b1)@W2+b2): (M, 128) f32."""
    M, K = feat.shape
    N1 = w1.shape[1]
    N2 = w2.shape[1]
    tm = _choose_tm(M)
    Mp = _round_up(M, tm)
    if Mp != M:
        feat = jnp.pad(feat, ((0, Mp - M), (0, 0)))
    out = pl.pallas_call(
        _mlp_head_kernel,
        out_shape=jax.ShapeDtypeStruct((Mp, N2), jnp.float32),
        grid=(Mp // tm,),
        in_specs=[
            pl.BlockSpec((tm, K), lambda i: (i, 0)),
            pl.BlockSpec((K, N1), lambda i: (0, 0)),
            pl.BlockSpec((1, N1), lambda i: (0, 0)),
            pl.BlockSpec((N1, N2), lambda i: (0, 0)),
            pl.BlockSpec((1, N2), lambda i: (0, 0)),
        ],
        out_specs=pl.BlockSpec((tm, N2), lambda i: (i, 0)),
        compiler_params=pltpu.CompilerParams(dimension_semantics=("parallel",)),
    )(feat, w1, b1, w2, b2)
    return out if Mp == M else out[:M]


# ----------------------------------------------------------------------------
# Conv layer: bf16 im2col (no activation transpose) + fused matmul kernel
# ----------------------------------------------------------------------------
def conv_relu(x_nhwc, w_mat, b, k, s, out_c, k_pad):
    """x_nhwc: (B,H,W,C) bf16; w_mat: (k_pad, out_c) bf16 with (kh,kw,C) row order."""
    B, H, W, C = x_nhwc.shape
    OH = (H - k) // s + 1
    OW = (W - k) // s + 1
    taps = [x_nhwc[:, i:i + s * (OH - 1) + 1:s, j:j + s * (OW - 1) + 1:s, :]
            for i in range(k) for j in range(k)]
    if k_pad > k * k * C:   # zero slab folded into the same concat (no extra pass)
        taps.append(jnp.zeros((B, OH, OW, k_pad - k * k * C), x_nhwc.dtype))
    cols = jnp.concatenate(taps, axis=-1).reshape(B * OH * OW, k_pad)
    y = matmul_bias_act(cols, w_mat, b, activation="relu", out_dtype=jnp.bfloat16)
    return y.reshape(B, OH, OW, out_c)


# ----------------------------------------------------------------------------
# Parameters: PyTorch-layout init, then a one-time layout/dtype prep
# ----------------------------------------------------------------------------
def orthogonal_init(key, shape, gain=1.0):
    rows = shape[0]
    cols = int(np.prod(shape[1:]))
    n, m = max(rows, cols), min(rows, cols)
    a = jax.random.normal(key, (n, m), dtype=jnp.float32)
    q, r = jnp.linalg.qr(a)
    q = q * jnp.sign(jnp.diag(r))
    if rows < cols:
        q = q.T
    return (gain * q[:rows, :cols]).reshape(shape).astype(jnp.float32)


def make_params(key, num_actions):
    relu_gain = float(np.sqrt(2.0))
    k1, k2, k3, k4, k5 = jax.random.split(key, 5)
    return {
        "conv1_w": orthogonal_init(k1, (32, 4, 8, 8), relu_gain),
        "conv1_b": jnp.zeros((32,), jnp.float32),
        "conv2_w": orthogonal_init(k2, (64, 32, 4, 4), relu_gain),
        "conv2_b": jnp.zeros((64,), jnp.float32),
        "conv3_w": orthogonal_init(k3, (32, 64, 3, 3), relu_gain),
        "conv3_b": jnp.zeros((32,), jnp.float32),
        "fc1_w": orthogonal_init(k4, (512, 32 * 7 * 7), relu_gain),   # (out, in)
        "fc1_b": jnp.zeros((512,), jnp.float32),
        "act_w": orthogonal_init(k5, (num_actions, 512), 0.01),        # (out, in)
        "act_b": jnp.zeros((num_actions,), jnp.float32),
    }


def prepare_params(params):
    """Fold patch/flatten permutations AND the 1/255 input scale into the
    weights, cast MXU operands to bf16, pad conv3's K and the action head's N.
    One-time cost."""
    prep = {}
    for name, k, s, cin, cout, kpad in CONV_CFG:
        w = params[f"{name}_w"]                                     # (cout,cin,k,k)
        if name == "conv1":
            w = w * (1.0 / 255.0)        # fold input normalization into conv1
        w_mat = jnp.transpose(w, (2, 3, 1, 0)).reshape(k * k * cin, cout)
        if kpad > k * k * cin:
            w_mat = jnp.pad(w_mat, ((0, kpad - k * k * cin), (0, 0)))
        prep[f"{name}_w"] = w_mat.astype(jnp.bfloat16)
        prep[f"{name}_b"] = params[f"{name}_b"].reshape(1, cout).astype(jnp.float32)

    # fc1: reorder input rows from PyTorch NCHW-flatten (c,h,w) to NHWC (h,w,c).
    w_fc1 = params["fc1_w"].reshape(512, 32, 7, 7)                   # (out,c,h,w)
    w_fc1 = jnp.transpose(w_fc1, (2, 3, 1, 0)).reshape(32 * 7 * 7, 512)
    prep["fc1_w"] = w_fc1.astype(jnp.bfloat16)
    prep["fc1_b"] = params["fc1_b"].reshape(1, 512).astype(jnp.float32)

    # action head: (512, na) -> (512, 128); pad columns masked via bias = -1e30.
    na = params["act_w"].shape[0]
    w_act = jnp.pad(params["act_w"].T, ((0, 0), (0, ACT_PAD - na)))
    b_act = jnp.concatenate(
        [params["act_b"].reshape(1, na),
         jnp.full((1, ACT_PAD - na), -1e30, jnp.float32)], axis=1)
    prep["act_w"] = w_act.astype(jnp.bfloat16)
    prep["act_b"] = b_act
    return prep


# ----------------------------------------------------------------------------
# Full ActGen forward (matches the PyTorch module semantics)
# ----------------------------------------------------------------------------
def actgen_forward(x_nchw, prep, *, num_actions):
    # 1/255 is pre-folded into conv1's weights: just go NHWC + bf16.
    x = jnp.transpose(x_nchw, (0, 2, 3, 1)).astype(jnp.bfloat16)
    for name, k, s, cin, cout, kpad in CONV_CFG:
        x = conv_relu(x, prep[f"{name}_w"], prep[f"{name}_b"], k, s, cout, kpad)
    B = x.shape[0]
    feat = x.reshape(B, 7 * 7 * 32)        # NHWC flatten; fc1 rows pre-permuted
    pi = mlp_head(feat, prep["fc1_w"], prep["fc1_b"], prep["act_w"], prep["act_b"])
    return pi[:, :num_actions]


# Pure-JAX f32 reference (PyTorch layout / ordering) for validation.
def reference_forward(x_nchw, params):
    x = x_nchw.astype(jnp.float32) / 255.0
    for name, k, s, cin, cout, _ in CONV_CFG:
        w = params[f"{name}_w"]
        b = params[f"{name}_b"]
        x = jax.lax.conv_general_dilated(
            x, w, window_strides=(s, s), padding="VALID",
            dimension_numbers=("NCHW", "OIHW", "NCHW"))
        x = jnp.maximum(x + b[None, :, None, None], 0.0)
    feat = x.reshape(x.shape[0], -1)                 # NCHW flatten
    h = jnp.maximum(feat @ params["fc1_w"].T + params["fc1_b"], 0.0)
    logits = h @ params["act_w"].T + params["act_b"]
    return jax.nn.softmax(logits, axis=-1)


if __name__ == "__main__":
    num_actions = 6
    batch = 2

    key = jax.random.PRNGKey(0)
    k_params, k_input = jax.random.split(key)

    params = make_params(k_params, num_actions)
    prep = prepare_params(params)
    # The DeepMind stack requires 84x84 spatial input (32*7*7 = 1568 hidden).
    x = jax.random.uniform(k_input, (batch, 4, 84, 84), minval=0.0, maxval=255.0)

    fwd = jax.jit(functools.partial(actgen_forward, num_actions=num_actions))
    pi = fwd(x, prep)
    pi = jax.block_until_ready(pi)

    assert pi.shape == (batch, num_actions)
    assert bool(jnp.all(jnp.isfinite(pi)))
    assert bool(jnp.allclose(jnp.sum(pi, axis=1), 1.0, atol=1e-2))

    # Validate against the f32 reference (bf16 MXU inputs -> moderate tolerance).
    pi_ref = jax.block_until_ready(jax.jit(reference_forward)(x, params))
    assert bool(jnp.allclose(pi, pi_ref, atol=2e-2, rtol=2e-2))

    print("KERNEL_OK")
</pallas_src>

<mosaic_0001>
module attributes {stable_mosaic.version = 11 : i64} {
  func.func @_matmul_bias_act_kernel(%arg0: i32, %arg1: memref<800x256xbf16, #tpu.memory_space<vmem>>, %arg2: memref<256x32xbf16, #tpu.memory_space<vmem>>, %arg3: memref<1x32xf32, #tpu.memory_space<vmem>>, %arg4: memref<800x32xbf16, #tpu.memory_space<vmem>>) attributes {dimension_semantics = [#tpu.dimension_semantics<parallel>], iteration_bounds = array<i64: 1>, scalar_prefetch = 0 : i64, scratch_operands = 0 : i64, tpu.core_type = #tpu.core_type<tc>, window_params = [{transform_indices = @transform_0, window_bounds = array<i64: 800, 256>}, {pipeline_mode = #tpu.pipeline_mode<synchronous>, transform_indices = @transform_1, window_bounds = array<i64: 256, 32>}, {pipeline_mode = #tpu.pipeline_mode<synchronous>, transform_indices = @transform_2, window_bounds = array<i64: 1, 32>}, {transform_indices = @transform_3, window_bounds = array<i64: 800, 32>}]} {
    %c0 = arith.constant 0 : index
    %c0_0 = arith.constant 0 : index
    %0 = vector.load %arg1[%c0, %c0_0] : memref<800x256xbf16, #tpu.memory_space<vmem>>, vector<800x256xbf16>
    %c0_1 = arith.constant 0 : index
    %c0_2 = arith.constant 0 : index
    %1 = vector.load %arg2[%c0_1, %c0_2] : memref<256x32xbf16, #tpu.memory_space<vmem>>, vector<256x32xbf16>
    %cst = arith.constant dense<0.000000e+00> : vector<800x32xf32>
    %2 = tpu.matmul %0, %1, %cst {dimension_numbers = #tpu.dot_dimension_numbers<[1], [0], [0], [1], [0, 0, 1, 1], [], []>} : vector<800x256xbf16>, vector<256x32xbf16>, vector<800x32xf32> -> vector<800x32xf32>
    %c0_3 = arith.constant 0 : index
    %c0_4 = arith.constant 0 : index
    %3 = vector.load %arg3[%c0_3, %c0_4] : memref<1x32xf32, #tpu.memory_space<vmem>>, vector<1x32xf32>
    %4 = vector.broadcast %3 : vector<1x32xf32> to vector<800x32xf32>
    %5 = arith.addf %2, %4 : vector<800x32xf32>
    %cst_5 = arith.constant 0.000000e+00 : f32
    %6 = vector.broadcast %cst_5 : f32 to vector<800x32xf32>
    %7 = arith.maximumf %5, %6 : vector<800x32xf32>
    %8 = arith.truncf %7 : vector<800x32xf32> to vector<800x32xbf16>
    %c0_6 = arith.constant 0 : index
    %c0_7 = arith.constant 0 : index
    %9 = vector.load %arg4[%c0_6, %c0_7] : memref<800x32xbf16, #tpu.memory_space<vmem>>, vector<800x32xbf16>
    tpu.vector_store %arg4[%c0_6, %c0_7], %8 {strides = array<i32>} : memref<800x32xbf16, #tpu.memory_space<vmem>>, vector<800x32xbf16>,
    return
  }
  func.func @transform_0(%arg0: i32) -> (i32, i32) {
    %c0_i32 = arith.constant 0 : i32
    %c0_i32_0 = arith.constant 0 : i32
    return %arg0, %c0_i32 : i32, i32
  }
  func.func @transform_1(%arg0: i32) -> (i32, i32) {
    %c0_i32 = arith.constant 0 : i32
    %c0_i32_0 = arith.constant 0 : i32
    %c0_i32_1 = arith.constant 0 : i32
    return %c0_i32, %c0_i32_0 : i32, i32
  }
  func.func @transform_2(%arg0: i32) -> (i32, i32) {
    %c0_i32 = arith.constant 0 : i32
    %c0_i32_0 = arith.constant 0 : i32
    %c0_i32_1 = arith.constant 0 : i32
    return %c0_i32, %c0_i32_0 : i32, i32
  }
  func.func @transform_3(%arg0: i32) -> (i32, i32) {
    %c0_i32 = arith.constant 0 : i32
    %c0_i32_0 = arith.constant 0 : i32
    return %arg0, %c0_i32 : i32, i32
  }
}

module attributes {stable_mosaic.version = 11 : i64} {
  func.func @_matmul_bias_act_kernel(%arg0: i32, %arg1: memref<168x512xbf16, #tpu.memory_space<vmem>>, %arg2: memref<512x64xbf16, #tpu.memory_space<vmem>>, %arg3: memref<1x64xf32, #tpu.memory_space<vmem>>, %arg4: memref<168x64xbf16, #tpu.memory_space<vmem>>) attributes {dimension_semantics = [#tpu.dimension_semantics<parallel>], iteration_bounds = array<i64: 1>, scalar_prefetch = 0 : i64, scratch_operands = 0 : i64, tpu.core_type = #tpu.core_type<tc>, window_params = [{transform_indices = @transform_0, window_bounds = array<i64: 168, 512>}, {pipeline_mode = #tpu.pipeline_mode<synchronous>, transform_indices = @transform_1, window_bounds = array<i64: 512, 64>}, {pipeline_mode = #tpu.pipeline_mode<synchronous>, transform_indices = @transform_2, window_bounds = array<i64: 1, 64>}, {transform_indices = @transform_3, window_bounds = array<i64: 168, 64>}]} {
    %c0 = arith.constant 0 : index
    %c0_0 = arith.constant 0 : index
    %0 = vector.load %arg1[%c0, %c0_0] : memref<168x512xbf16, #tpu.memory_space<vmem>>, vector<168x512xbf16>
    %c0_1 = arith.constant 0 : index
    %c0_2 = arith.constant 0 : index
    %1 = vector.load %arg2[%c0_1, %c0_2] : memref<512x64xbf16, #tpu.memory_space<vmem>>, vector<512x64xbf16>
    %cst = arith.constant dense<0.000000e+00> : vector<168x64xf32>
    %2 = tpu.matmul %0, %1, %cst {dimension_numbers = #tpu.dot_dimension_numbers<[1], [0], [0], [1], [0, 0, 1, 1], [], []>} : vector<168x512xbf16>, vector<512x64xbf16>, vector<168x64xf32> -> vector<168x64xf32>
    %c0_3 = arith.constant 0 : index
    %c0_4 = arith.constant 0 : index
    %3 = vector.load %arg3[%c0_3, %c0_4] : memref<1x64xf32, #tpu.memory_space<vmem>>, vector<1x64xf32>
    %4 = vector.broadcast %3 : vector<1x64xf32> to vector<168x64xf32>
    %5 = arith.addf %2, %4 : vector<168x64xf32>
    %cst_5 = arith.constant 0.000000e+00 : f32
    %6 = vector.broadcast %cst_5 : f32 to vector<168x64xf32>
    %7 = arith.maximumf %5, %6 : vector<168x64xf32>
    %8 = arith.truncf %7 : vector<168x64xf32> to vector<168x64xbf16>
    %c0_6 = arith.constant 0 : index
    %c0_7 = arith.constant 0 : index
    %9 = vector.load %arg4[%c0_6, %c0_7] : memref<168x64xbf16, #tpu.memory_space<vmem>>, vector<168x64xbf16>
    tpu.vector_store %arg4[%c0_6, %c0_7], %8 {strides = array<i32>} : memref<168x64xbf16, #tpu.memory_space<vmem>>, vector<168x64xbf16>,
    return
  }
  func.func @transform_0(%arg0: i32) -> (i32, i32) {
    %c0_i32 = arith.constant 0 : i32
    %c0_i32_0 = arith.constant 0 : i32
    return %arg0, %c0_i32 : i32, i32
  }
  func.func @transform_1(%arg0: i32) -> (i32, i32) {
    %c0_i32 = arith.constant 0 : i32
    %c0_i32_0 = arith.constant 0 : i32
    %c0_i32_1 = arith.constant 0 : i32
    return %c0_i32, %c0_i32_0 : i32, i32
  }
  func.func @transform_2(%arg0: i32) -> (i32, i32) {
    %c0_i32 = arith.constant 0 : i32
    %c0_i32_0 = arith.constant 0 : i32
    %c0_i32_1 = arith.constant 0 : i32
    return %c0_i32, %c0_i32_0 : i32, i32
  }
  func.func @transform_3(%arg0: i32) -> (i32, i32) {
    %c0_i32 = arith.constant 0 : i32
    %c0_i32_0 = arith.constant 0 : i32
    return %arg0, %c0_i32 : i32, i32
  }
}

module attributes {stable_mosaic.version = 11 : i64} {
  func.func @_matmul_bias_act_kernel(%arg0: i32, %arg1: memref<104x640xbf16, #tpu.memory_space<vmem>>, %arg2: memref<640x32xbf16, #tpu.memory_space<vmem>>, %arg3: memref<1x32xf32, #tpu.memory_space<vmem>>, %arg4: memref<104x32xbf16, #tpu.memory_space<vmem>>) attributes {dimension_semantics = [#tpu.dimension_semantics<parallel>], iteration_bounds = array<i64: 1>, scalar_prefetch = 0 : i64, scratch_operands = 0 : i64, tpu.core_type = #tpu.core_type<tc>, window_params = [{transform_indices = @transform_0, window_bounds = array<i64: 104, 640>}, {pipeline_mode = #tpu.pipeline_mode<synchronous>, transform_indices = @transform_1, window_bounds = array<i64: 640, 32>}, {pipeline_mode = #tpu.pipeline_mode<synchronous>, transform_indices = @transform_2, window_bounds = array<i64: 1, 32>}, {transform_indices = @transform_3, window_bounds = array<i64: 104, 32>}]} {
    %c0 = arith.constant 0 : index
    %c0_0 = arith.constant 0 : index
    %0 = vector.load %arg1[%c0, %c0_0] : memref<104x640xbf16, #tpu.memory_space<vmem>>, vector<104x640xbf16>
    %c0_1 = arith.constant 0 : index
    %c0_2 = arith.constant 0 : index
    %1 = vector.load %arg2[%c0_1, %c0_2] : memref<640x32xbf16, #tpu.memory_space<vmem>>, vector<640x32xbf16>
    %cst = arith.constant dense<0.000000e+00> : vector<104x32xf32>
    %2 = tpu.matmul %0, %1, %cst {dimension_numbers = #tpu.dot_dimension_numbers<[1], [0], [0], [1], [0, 0, 1, 1], [], []>} : vector<104x640xbf16>, vector<640x32xbf16>, vector<104x32xf32> -> vector<104x32xf32>
    %c0_3 = arith.constant 0 : index
    %c0_4 = arith.constant 0 : index
    %3 = vector.load %arg3[%c0_3, %c0_4] : memref<1x32xf32, #tpu.memory_space<vmem>>, vector<1x32xf32>
    %4 = vector.broadcast %3 : vector<1x32xf32> to vector<104x32xf32>
    %5 = arith.addf %2, %4 : vector<104x32xf32>
    %cst_5 = arith.constant 0.000000e+00 : f32
    %6 = vector.broadcast %cst_5 : f32 to vector<104x32xf32>
    %7 = arith.maximumf %5, %6 : vector<104x32xf32>
    %8 = arith.truncf %7 : vector<104x32xf32> to vector<104x32xbf16>
    %c0_6 = arith.constant 0 : index
    %c0_7 = arith.constant 0 : index
    %9 = vector.load %arg4[%c0_6, %c0_7] : memref<104x32xbf16, #tpu.memory_space<vmem>>, vector<104x32xbf16>
    tpu.vector_store %arg4[%c0_6, %c0_7], %8 {strides = array<i32>} : memref<104x32xbf16, #tpu.memory_space<vmem>>, vector<104x32xbf16>,
    return
  }
  func.func @transform_0(%arg0: i32) -> (i32, i32) {
    %c0_i32 = arith.constant 0 : i32
    %c0_i32_0 = arith.constant 0 : i32
    return %arg0, %c0_i32 : i32, i32
  }
  func.func @transform_1(%arg0: i32) -> (i32, i32) {
    %c0_i32 = arith.constant 0 : i32
    %c0_i32_0 = arith.constant 0 : i32
    %c0_i32_1 = arith.constant 0 : i32
    return %c0_i32, %c0_i32_0 : i32, i32
  }
  func.func @transform_2(%arg0: i32) -> (i32, i32) {
    %c0_i32 = arith.constant 0 : i32
    %c0_i32_0 = arith.constant 0 : i32
    %c0_i32_1 = arith.constant 0 : i32
    return %c0_i32, %c0_i32_0 : i32, i32
  }
  func.func @transform_3(%arg0: i32) -> (i32, i32) {
    %c0_i32 = arith.constant 0 : i32
    %c0_i32_0 = arith.constant 0 : i32
    return %arg0, %c0_i32 : i32, i32
  }
}

module attributes {stable_mosaic.version = 11 : i64} {
  func.func @_mlp_head_kernel(%arg0: i32, %arg1: memref<8x1568xbf16, #tpu.memory_space<vmem>>, %arg2: memref<1568x512xbf16, #tpu.memory_space<vmem>>, %arg3: memref<1x512xf32, #tpu.memory_space<vmem>>, %arg4: memref<512x128xbf16, #tpu.memory_space<vmem>>, %arg5: memref<1x128xf32, #tpu.memory_space<vmem>>, %arg6: memref<8x128xf32, #tpu.memory_space<vmem>>) attributes {dimension_semantics = [#tpu.dimension_semantics<parallel>], iteration_bounds = array<i64: 1>, scalar_prefetch = 0 : i64, scratch_operands = 0 : i64, tpu.core_type = #tpu.core_type<tc>, window_params = [{transform_indices = @transform_0, window_bounds = array<i64: 8, 1568>}, {pipeline_mode = #tpu.pipeline_mode<synchronous>, transform_indices = @transform_1, window_bounds = array<i64: 1568, 512>}, {pipeline_mode = #tpu.pipeline_mode<synchronous>, transform_indices = @transform_2, window_bounds = array<i64: 1, 512>}, {pipeline_mode = #tpu.pipeline_mode<synchronous>, transform_indices = @transform_3, window_bounds = array<i64: 512, 128>}, {pipeline_mode = #tpu.pipeline_mode<synchronous>, transform_indices = @transform_4, window_bounds = array<i64: 1, 128>}, {transform_indices = @transform_5, window_bounds = array<i64: 8, 128>}]} {
    %c0 = arith.constant 0 : index
    %c0_0 = arith.constant 0 : index
    %0 = vector.load %arg1[%c0, %c0_0] : memref<8x1568xbf16, #tpu.memory_space<vmem>>, vector<8x1568xbf16>
    %c0_1 = arith.constant 0 : index
    %c0_2 = arith.constant 0 : index
    %1 = vector.load %arg2[%c0_1, %c0_2] : memref<1568x512xbf16, #tpu.memory_space<vmem>>, vector<1568x512xbf16>
    %cst = arith.constant dense<0.000000e+00> : vector<8x512xf32>
    %2 = tpu.matmul %0, %1, %cst {dimension_numbers = #tpu.dot_dimension_numbers<[1], [0], [0], [1], [0, 0, 1, 1], [], []>} : vector<8x1568xbf16>, vector<1568x512xbf16>, vector<8x512xf32> -> vector<8x512xf32>
    %c0_3 = arith.constant 0 : index
    %c0_4 = arith.constant 0 : index
    %3 = vector.load %arg3[%c0_3, %c0_4] : memref<1x512xf32, #tpu.memory_space<vmem>>, vector<1x512xf32>
    %4 = vector.broadcast %3 : vector<1x512xf32> to vector<8x512xf32>
    %5 = arith.addf %2, %4 : vector<8x512xf32>
    %cst_5 = arith.constant 0.000000e+00 : f32
    %6 = vector.broadcast %cst_5 : f32 to vector<8x512xf32>
    %7 = arith.maximumf %5, %6 : vector<8x512xf32>
    %8 = arith.truncf %7 : vector<8x512xf32> to vector<8x512xbf16>
    %c0_6 = arith.constant 0 : index
    %c0_7 = arith.constant 0 : index
    %9 = vector.load %arg4[%c0_6, %c0_7] : memref<512x128xbf16, #tpu.memory_space<vmem>>, vector<512x128xbf16>
    %cst_8 = arith.constant dense<0.000000e+00> : vector<8x128xf32>
    %10 = tpu.matmul %8, %9, %cst_8 {dimension_numbers = #tpu.dot_dimension_numbers<[1], [0], [0], [1], [0, 0, 1, 1], [], []>} : vector<8x512xbf16>, vector<512x128xbf16>, vector<8x128xf32> -> vector<8x128xf32>
    %c0_9 = arith.constant 0 : index
    %c0_10 = arith.constant 0 : index
    %11 = vector.load %arg5[%c0_9, %c0_10] : memref<1x128xf32, #tpu.memory_space<vmem>>, vector<1x128xf32>
    %12 = vector.broadcast %11 : vector<1x128xf32> to vector<8x128xf32>
    %13 = arith.addf %10, %12 : vector<8x128xf32>
    %cst_11 = arith.constant dense<0xFF800000> : vector<8xf32>
    %14 = vector.multi_reduction <maximumf>, %13, %cst_11 [1] : vector<8x128xf32> to vector<8xf32>
    %15 = vector.shape_cast %14 : vector<8xf32> to vector<8x1xf32>
    %16 = vector.broadcast %15 : vector<8x1xf32> to vector<8x128xf32>
    %17 = arith.subf %13, %16 : vector<8x128xf32>
    %18 = math.exp %17 : vector<8x128xf32>
    %cst_12 = arith.constant dense<0.000000e+00> : vector<8xf32>
    %19 = vector.multi_reduction <add>, %18, %cst_12 [1] : vector<8x128xf32> to vector<8xf32>
    %20 = vector.shape_cast %19 : vector<8xf32> to vector<8x1xf32>
    %21 = tpu.reciprocal %20 {approx = true} : vector<8x1xf32> -> vector<8x1xf32>
    %22 = vector.broadcast %21 : vector<8x1xf32> to vector<8x128xf32>
    %23 = arith.mulf %18, %22 : vector<8x128xf32>
    %c0_13 = arith.constant 0 : index
    %c0_14 = arith.constant 0 : index
    %24 = vector.load %arg6[%c0_13, %c0_14] : memref<8x128xf32, #tpu.memory_space<vmem>>, vector<8x128xf32>
    tpu.vector_store %arg6[%c0_13, %c0_14], %23 {strides = array<i32>} : memref<8x128xf32, #tpu.memory_space<vmem>>, vector<8x128xf32>,
    return
  }
  func.func @transform_0(%arg0: i32) -> (i32, i32) {
    %c0_i32 = arith.constant 0 : i32
    %c0_i32_0 = arith.constant 0 : i32
    return %arg0, %c0_i32 : i32, i32
  }
  func.func @transform_1(%arg0: i32) -> (i32, i32) {
    %c0_i32 = arith.constant 0 : i32
    %c0_i32_0 = arith.constant 0 : i32
    %c0_i32_1 = arith.constant 0 : i32
    return %c0_i32, %c0_i32_0 : i32, i32
  }
  func.func @transform_2(%arg0: i32) -> (i32, i32) {
    %c0_i32 = arith.constant 0 : i32
    %c0_i32_0 = arith.constant 0 : i32
    %c0_i32_1 = arith.constant 0 : i32
    return %c0_i32, %c0_i32_0 : i32, i32
  }
  func.func @transform_3(%arg0: i32) -> (i32, i32) {
    %c0_i32 = arith.constant 0 : i32
    %c0_i32_0 = arith.constant 0 : i32
    %c0_i32_1 = arith.constant 0 : i32
    return %c0_i32, %c0_i32_0 : i32, i32
  }
  func.func @transform_4(%arg0: i32) -> (i32, i32) {
    %c0_i32 = arith.constant 0 : i32
    %c0_i32_0 = arith.constant 0 : i32
    %c0_i32_1 = arith.constant 0 : i32
    return %c0_i32, %c0_i32_0 : i32, i32
  }
  func.func @transform_5(%arg0: i32) -> (i32, i32) {
    %c0_i32 = arith.constant 0 : i32
    %c0_i32_0 = arith.constant 0 : i32
    return %arg0, %c0_i32 : i32, i32
  }
}

</mosaic_0001>

<llo_original>
// kernel: actgen_forward.4
$region0: #{actgen_forward.4}
  #allocation0 [shape = 'u32[]', space=smem, size = 0x4, offset = 0x4, fixed_abs, tag = 'smem constant byte address 0x4 - core index']
  #allocation1 [shape = 'u32[144,128]{1,0:T(1,128)}', space=vmem, size = 0x12000, scoped, tag = 'internal scratch']
  %s0 = inlined_call_operand.vmem [shape: bf16[800,256], index: 0, kind: input, shape index: {}]
  %s1 = inlined_call_operand.vmem [shape: bf16[256,32], index: 1, kind: input, shape index: {}]
  %s2 = inlined_call_operand.vmem [shape: f32[1,32], index: 2, kind: input, shape index: {}]
  %s3 = inlined_call_operand.vmem [shape: bf16[800,32], index: 3, kind: output, shape index: {}]
  %s4 = sld [smem:[#allocation0]]
  $region22: #{actgen_forward.4} parent=0
    _
  %s6 = ssub.s32 1, %s4
  %s7 = scalar_select 0, %s6, %s4
  // Predicated region
  $region2: #{actgen_forward.4} parent=0 // pred_check
    _
  $region3: #{actgen_forward.4} parent=0 // pred_check_branch
    %9 = sbr.rel (0) target = $region5
  $region4: #{actgen_forward.4} parent=0 // pred_region
    _
  $region5: #{actgen_forward.4} parent=0 // pred_fallthru
    _
  // Predicated region
  $region6: #{actgen_forward.4} parent=0 // pred_check
    _
  $region7: #{actgen_forward.4} parent=0 // pred_check_branch
    %11 = sbr.rel (0) target = $region9
  $region8: #{actgen_forward.4} parent=0 // pred_region
    _
  $region9: #{actgen_forward.4} parent=0 // pred_fallthru
    _
  // Predicated region
  $region10: #{actgen_forward.4} parent=0 // pred_check
    _
  $region11: #{actgen_forward.4} parent=0 // pred_check_branch
    %13 = sbr.rel (0) target = $region13
  $region12: #{actgen_forward.4} parent=0 // pred_region
    _
  $region13: #{actgen_forward.4} parent=0 // pred_fallthru
    _
  %v15 = vld [vmem:[%s0] sm:$0xff]
  %v16 = vld [vmem:[%s0 + $0x8] sm:$0xff]
  %v17 = vld [vmem:[%s0 + $0x10] sm:$0xff]
  %v18 = vld [vmem:[%s0 + $0x18] sm:$0xff]
  %v19 = vld [vmem:[%s0 + $0x20] sm:$0xff]
  %v20 = vld [vmem:[%s0 + $0x28] sm:$0xff]
  %v21 = vld [vmem:[%s0 + $0x30] sm:$0xff]
  %v22 = vld [vmem:[%s0 + $0x38] sm:$0xff]
  %v23 = vld [vmem:[%s0 + $0x40] sm:$0xff]
  %v24 = vld [vmem:[%s0 + $0x48] sm:$0xff]
  %v25 = vld [vmem:[%s0 + $0x50] sm:$0xff]
  %v26 = vld [vmem:[%s0 + $0x58] sm:$0xff]
  %v27 = vld [vmem:[%s0 + $0x60] sm:$0xff]
  %v28 = vld [vmem:[%s0 + $0x68] sm:$0xff]
  %v29 = vld [vmem:[%s0 + $0x70] sm:$0xff]
  %v30 = vld [vmem:[%s0 + $0x78] sm:$0xff]
  %v31 = vld [vmem:[%s0 + $0x80] sm:$0xff]
  %v32 = vld [vmem:[%s0 + $0x88] sm:$0xff]
  %v33 = vld [vmem:[%s0 + $0x90] sm:$0xff]
  %v34 = vld [vmem:[%s0 + $0x98] sm:$0xff]
  %v35 = vld [vmem:[%s0 + $0xa0] sm:$0xff]
  %v36 = vld [vmem:[%s0 + $0xa8] sm:$0xff]
  %v37 = vld [vmem:[%s0 + $0xb0] sm:$0xff]
  %v38 = vld [vmem:[%s0 + $0xb8] sm:$0xff]
  %v39 = vld [vmem:[%s0 + $0xc0] sm:$0xff]
  %v40 = vld [vmem:[%s0 + $0xc8] sm:$0xff]
  %v41 = vld [vmem:[%s0 + $0xd0] sm:$0xff]
  %v42 = vld [vmem:[%s0 + $0xd8] sm:$0xff]
  %v43 = vld [vmem:[%s0 + $0xe0] sm:$0xff]
  %v44 = vld [vmem:[%s0 + $0xe8] sm:$0xff]
  %v45 = vld [vmem:[%s0 + $0xf0] sm:$0xff]
  %v46 = vld [vmem:[%s0 + $0xf8] sm:$0xff]
  %v47 = vld [vmem:[%s0 + $0x100] sm:$0xff]
  %v48 = vld [vmem:[%s0 + $0x108] sm:$0xff]
  %v49 = vld [vmem:[%s0 + $0x110] sm:$0xff]
  %v50 = vld [vmem:[%s0 + $0x118] sm:$0xff]
  %v51 = vld [vmem:[%s0 + $0x120] sm:$0xff]
  %v52 = vld [vmem:[%s0 + $0x128] sm:$0xff]
  %v53 = vld [vmem:[%s0 + $0x130] sm:$0xff]
  %v54 = vld [vmem:[%s0 + $0x138] sm:$0xff]
  %v55 = vld [vmem:[%s0 + $0x140] sm:$0xff]
  %v56 = vld [vmem:[%s0 + $0x148] sm:$0xff]
  %v57 = vld [vmem:[%s0 + $0x150] sm:$0xff]
  %v58 = vld [vmem:[%s0 + $0x158] sm:$0xff]
  %v59 = vld [vmem:[%s0 + $0x160] sm:$0xff]
  %v60 = vld [vmem:[%s0 + $0x168] sm:$0xff]
  %v61 = vld [vmem:[%s0 + $0x170] sm:$0xff]
  %v62 = vld [vmem:[%s0 + $0x178] sm:$0xff]
  %v63 = vld [vmem:[%s0 + $0x180] sm:$0xff]
  %v64 = vld [vmem:[%s0 + $0x188] sm:$0xff]
  %v65 = vld [vmem:[%s0 + $0x190] sm:$0xff]
  %v66 = vld [vmem:[%s0 + $0x198] sm:$0xff]
  %v67 = vld [vmem:[%s0 + $0x1a0] sm:$0xff]
  %v68 = vld [vmem:[%s0 + $0x1a8] sm:$0xff]
  %v69 = vld [vmem:[%s0 + $0x1b0] sm:$0xff]
  %v70 = vld [vmem:[%s0 + $0x1b8] sm:$0xff]
  %v71 = vld [vmem:[%s0 + $0x1c0] sm:$0xff]
  %v72 = vld [vmem:[%s0 + $0x1c8] sm:$0xff]
  %v73 = vld [vmem:[%s0 + $0x1d0] sm:$0xff]
  %v74 = vld [vmem:[%s0 + $0x1d8] sm:$0xff]
  %v75 = vld [vmem:[%s0 + $0x1e0] sm:$0xff]
  %v76 = vld [vmem:[%s0 + $0x1e8] sm:$0xff]
  %v77 = vld [vmem:[%s0 + $0x1f0] sm:$0xff]
  %v78 = vld [vmem:[%s0 + $0x1f8] sm:$0xff]
  %v79 = vld [vmem:[%s0 + $0x200] sm:$0xff]
  %v80 = vld [vmem:[%s0 + $0x208] sm:$0xff]
  %v81 = vld [vmem:[%s0 + $0x210] sm:$0xff]
  %v82 = vld [vmem:[%s0 + $0x218] sm:$0xff]
  %v83 = vld [vmem:[%s0 + $0x220] sm:$0xff]
  %v84 = vld [vmem:[%s0 + $0x228] sm:$0xff]
  %v85 = vld [vmem:[%s0 + $0x230] sm:$0xff]
  %v86 = vld [vmem:[%s0 + $0x238] sm:$0xff]
  %v87 = vld [vmem:[%s0 + $0x240] sm:$0xff]
  %v88 = vld [vmem:[%s0 + $0x248] sm:$0xff]
  %v89 = vld [vmem:[%s0 + $0x250] sm:$0xff]
  %v90 = vld [vmem:[%s0 + $0x258] sm:$0xff]
  %v91 = vld [vmem:[%s0 + $0x260] sm:$0xff]
  %v92 = vld [vmem:[%s0 + $0x268] sm:$0xff]
  %v93 = vld [vmem:[%s0 + $0x270] sm:$0xff]
  %v94 = vld [vmem:[%s0 + $0x278] sm:$0xff]
  %v95 = vld [vmem:[%s0 + $0x280] sm:$0xff]
  %v96 = vld [vmem:[%s0 + $0x288] sm:$0xff]
  %v97 = vld [vmem:[%s0 + $0x290] sm:$0xff]
  %v98 = vld [vmem:[%s0 + $0x298] sm:$0xff]
  %v99 = vld [vmem:[%s0 + $0x2a0] sm:$0xff]
  %v100 = vld [vmem:[%s0 + $0x2a8] sm:$0xff]
  %v101 = vld [vmem:[%s0 + $0x2b0] sm:$0xff]
  %v102 = vld [vmem:[%s0 + $0x2b8] sm:$0xff]
  %v103 = vld [vmem:[%s0 + $0x2c0] sm:$0xff]
  %v104 = vld [vmem:[%s0 + $0x2c8] sm:$0xff]
  %v105 = vld [vmem:[%s0 + $0x2d0] sm:$0xff]
  %v106 = vld [vmem:[%s0 + $0x2d8] sm:$0xff]
  %v107 = vld [vmem:[%s0 + $0x2e0] sm:$0xff]
  %v108 = vld [vmem:[%s0 + $0x2e8] sm:$0xff]
  %v109 = vld [vmem:[%s0 + $0x2f0] sm:$0xff]
  %v110 = vld [vmem:[%s0 + $0x2f8] sm:$0xff]
  %v111 = vld [vmem:[%s0 + $0x300] sm:$0xff]
  %v112 = vld [vmem:[%s0 + $0x308] sm:$0xff]
  %v113 = vld [vmem:[%s0 + $0x310] sm:$0xff]
  %v114 = vld [vmem:[%s0 + $0x318] sm:$0xff]
  %v115 = vld [vmem:[%s1] sm:$0xf]
  %v116 = vld [vmem:[%s1 + $0x4] sm:$0xf]
  %v117 = vld [vmem:[%s1 + $0x8] sm:$0xf]
  %v118 = vld [vmem:[%s1 + $0xc] sm:$0xf]
  %v119 = vld [vmem:[%s1 + $0x10] sm:$0xf]
  %v120 = vld [vmem:[%s1 + $0x14] sm:$0xf]
  %v121 = vld [vmem:[%s1 + $0x18] sm:$0xf]
  %v122 = vld [vmem:[%s1 + $0x1c] sm:$0xf]
  %v123 = vld [vmem:[%s1 + $0x20] sm:$0xf]
  %v124 = vld [vmem:[%s1 + $0x24] sm:$0xf]
  %v125 = vld [vmem:[%s1 + $0x28] sm:$0xf]
  %v126 = vld [vmem:[%s1 + $0x2c] sm:$0xf]
  %v127 = vld [vmem:[%s1 + $0x30] sm:$0xf]
  %v128 = vld [vmem:[%s1 + $0x34] sm:$0xf]
  %v129 = vld [vmem:[%s1 + $0x38] sm:$0xf]
  %v130 = vld [vmem:[%s1 + $0x3c] sm:$0xf]
  %v131 = vld [vmem:[%s1 + $0x40] sm:$0xf]
  %v132 = vld [vmem:[%s1 + $0x44] sm:$0xf]
  %v133 = vld [vmem:[%s1 + $0x48] sm:$0xf]
  %v134 = vld [vmem:[%s1 + $0x4c] sm:$0xf]
  %v135 = vld [vmem:[%s1 + $0x50] sm:$0xf]
  %v136 = vld [vmem:[%s1 + $0x54] sm:$0xf]
  %v137 = vld [vmem:[%s1 + $0x58] sm:$0xf]
  %v138 = vld [vmem:[%s1 + $0x5c] sm:$0xf]
  %v139 = vld [vmem:[%s1 + $0x60] sm:$0xf]
  %v140 = vld [vmem:[%s1 + $0x64] sm:$0xf]
  %v141 = vld [vmem:[%s1 + $0x68] sm:$0xf]
  %v142 = vld [vmem:[%s1 + $0x6c] sm:$0xf]
  %v143 = vld [vmem:[%s1 + $0x70] sm:$0xf]
  %v144 = vld [vmem:[%s1 + $0x74] sm:$0xf]
  %v145 = vld [vmem:[%s1 + $0x78] sm:$0xf]
  %v146 = vld [vmem:[%s1 + $0x7c] sm:$0xf]
  %v147 = vld [vmem:[%s2] sm:$0x1]
  %v149 = vlaneseq
  %v150 = vshrl.u32 %v149, 7
  %v151 = vsub.s32 0, %v150
  %v152 = vrot.slane %v147, %v151
  %v254 = vunpack.c.l.b16 %v15
  %v255 = vunpack.c.h.b16 %v15
  %v256 = vunpack.c.l.b16 %v16
  %v257 = vunpack.c.h.b16 %v16
  %v258 = vunpack.c.l.b16 %v17
  %v259 = vunpack.c.h.b16 %v17
  %v260 = vunpack.c.l.b16 %v18
  %v261 = vunpack.c.h.b16 %v18
  %v262 = vunpack.c.l.b16 %v19
  %v263 = vunpack.c.h.b16 %v19
  %v264 = vunpack.c.l.b16 %v20
  %v265 = vunpack.c.h.b16 %v20
  %v266 = vunpack.c.l.b16 %v21
  %v267 = vunpack.c.h.b16 %v21
  %v268 = vunpack.c.l.b16 %v22
  %v269 = vunpack.c.h.b16 %v22
  %v270 = vunpack.c.l.b16 %v23
  %v271 = vunpack.c.h.b16 %v23
  %v272 = vunpack.c.l.b16 %v24
  %v273 = vunpack.c.h.b16 %v24
  %v274 = vunpack.c.l.b16 %v25
  %v275 = vunpack.c.h.b16 %v25
  %v276 = vunpack.c.l.b16 %v26
  %v277 = vunpack.c.h.b16 %v26
  %v278 = vunpack.c.l.b16 %v27
  %v279 = vunpack.c.h.b16 %v27
  %v280 = vunpack.c.l.b16 %v28
  %v281 = vunpack.c.h.b16 %v28
  %v282 = vunpack.c.l.b16 %v29
  %v283 = vunpack.c.h.b16 %v29
  %v284 = vunpack.c.l.b16 %v30
  %v285 = vunpack.c.h.b16 %v30
  %v286 = vunpack.c.l.b16 %v31
  %v287 = vunpack.c.h.b16 %v31
  %v288 = vunpack.c.l.b16 %v32
  %v289 = vunpack.c.h.b16 %v32
  %v290 = vunpack.c.l.b16 %v33
  %v291 = vunpack.c.h.b16 %v33
  %v292 = vunpack.c.l.b16 %v34
  %v293 = vunpack.c.h.b16 %v34
  %v294 = vunpack.c.l.b16 %v35
  %v295 = vunpack.c.h.b16 %v35
  %v296 = vunpack.c.l.b16 %v36
  %v297 = vunpack.c.h.b16 %v36
  %v298 = vunpack.c.l.b16 %v37
  %v299 = vunpack.c.h.b16 %v37
  %v300 = vunpack.c.l.b16 %v38
  %v301 = vunpack.c.h.b16 %v38
  %v302 = vunpack.c.l.b16 %v39
  %v303 = vunpack.c.h.b16 %v39
  %v304 = vunpack.c.l.b16 %v40
  %v305 = vunpack.c.h.b16 %v40
  %v306 = vunpack.c.l.b16 %v41
  %v307 = vunpack.c.h.b16 %v41
  %v308 = vunpack.c.l.b16 %v42
  %v309 = vunpack.c.h.b16 %v42
  %v310 = vunpack.c.l.b16 %v43
  %v311 = vunpack.c.h.b16 %v43
  %v312 = vunpack.c.l.b16 %v44
  %v313 = vunpack.c.h.b16 %v44
  %v314 = vunpack.c.l.b16 %v45
  %v315 = vunpack.c.h.b16 %v45
  %v316 = vunpack.c.l.b16 %v46
  %v317 = vunpack.c.h.b16 %v46
  %v318 = vunpack.c.l.b16 %v47
  %v319 = vunpack.c.h.b16 %v47
  %v320 = vunpack.c.l.b16 %v48
  %v321 = vunpack.c.h.b16 %v48
  %v322 = vunpack.c.l.b16 %v49
  %v323 = vunpack.c.h.b16 %v49
  %v324 = vunpack.c.l.b16 %v50
  %v325 = vunpack.c.h.b16 %v50
  %v326 = vunpack.c.l.b16 %v51
  %v327 = vunpack.c.h.b16 %v51
  %v328 = vunpack.c.l.b16 %v52
  %v329 = vunpack.c.h.b16 %v52
  %v330 = vunpack.c.l.b16 %v53
  %v331 = vunpack.c.h.b16 %v53
  %v332 = vunpack.c.l.b16 %v54
  %v333 = vunpack.c.h.b16 %v54
  %v334 = vunpack.c.l.b16 %v55
  %v335 = vunpack.c.h.b16 %v55
  %v336 = vunpack.c.l.b16 %v56
  %v337 = vunpack.c.h.b16 %v56
  %v338 = vunpack.c.l.b16 %v57
  %v339 = vunpack.c.h.b16 %v57
  %v340 = vunpack.c.l.b16 %v58
  %v341 = vunpack.c.h.b16 %v58
  %v342 = vunpack.c.l.b16 %v59
  %v343 = vunpack.c.h.b16 %v59
  %v344 = vunpack.c.l.b16 %v60
  %v345 = vunpack.c.h.b16 %v60
  %v346 = vunpack.c.l.b16 %v61
  %v347 = vunpack.c.h.b16 %v61
  %v348 = vunpack.c.l.b16 %v62
  %v349 = vunpack.c.h.b16 %v62
  %v350 = vunpack.c.l.b16 %v63
  %v351 = vunpack.c.h.b16 %v63
  %v352 = vunpack.c.l.b16 %v64
  %v353 = vunpack.c.h.b16 %v64
  %v354 = vunpack.c.l.b16 %v65
  %v355 = vunpack.c.h.b16 %v65
  %v356 = vunpack.c.l.b16 %v66
  %v357 = vunpack.c.h.b16 %v66
  %v358 = vunpack.c.l.b16 %v67
  %v359 = vunpack.c.h.b16 %v67
  %v360 = vunpack.c.l.b16 %v68
  %v361 = vunpack.c.h.b16 %v68
  %v362 = vunpack.c.l.b16 %v69
  %v363 = vunpack.c.h.b16 %v69
  %v364 = vunpack.c.l.b16 %v70
  %v365 = vunpack.c.h.b16 %v70
  %v366 = vunpack.c.l.b16 %v71
  %v367 = vunpack.c.h.b16 %v71
  %v368 = vunpack.c.l.b16 %v72
  %v369 = vunpack.c.h.b16 %v72
  %v370 = vunpack.c.l.b16 %v73
  %v371 = vunpack.c.h.b16 %v73
  %v372 = vunpack.c.l.b16 %v74
  %v373 = vunpack.c.h.b16 %v74
  %v374 = vunpack.c.l.b16 %v75
  %v375 = vunpack.c.h.b16 %v75
  %v376 = vunpack.c.l.b16 %v76
  %v377 = vunpack.c.h.b16 %v76
  %v378 = vunpack.c.l.b16 %v77
  %v379 = vunpack.c.h.b16 %v77
  %v380 = vunpack.c.l.b16 %v78
  %v381 = vunpack.c.h.b16 %v78
  %v382 = vunpack.c.l.b16 %v79
  %v383 = vunpack.c.h.b16 %v79
  %v384 = vunpack.c.l.b16 %v80
  %v385 = vunpack.c.h.b16 %v80
  %v386 = vunpack.c.l.b16 %v81
  %v387 = vunpack.c.h.b16 %v81
  %v388 = vunpack.c.l.b16 %v82
  %v389 = vunpack.c.h.b16 %v82
  %v390 = vunpack.c.l.b16 %v83
  %v391 = vunpack.c.h.b16 %v83
  %v392 = vunpack.c.l.b16 %v84
  %v393 = vunpack.c.h.b16 %v84
  %v394 = vunpack.c.l.b16 %v85
  %v395 = vunpack.c.h.b16 %v85
  %v396 = vunpack.c.l.b16 %v86
  %v397 = vunpack.c.h.b16 %v86
  %v398 = vunpack.c.l.b16 %v87
  %v399 = vunpack.c.h.b16 %v87
  %v400 = vunpack.c.l.b16 %v88
  %v401 = vunpack.c.h.b16 %v88
  %v402 = vunpack.c.l.b16 %v89
  %v403 = vunpack.c.h.b16 %v89
  %v404 = vunpack.c.l.b16 %v90
  %v405 = vunpack.c.h.b16 %v90
  %v406 = vunpack.c.l.b16 %v91
  %v407 = vunpack.c.h.b16 %v91
  %v408 = vunpack.c.l.b16 %v92
  %v409 = vunpack.c.h.b16 %v92
  %v410 = vunpack.c.l.b16 %v93
  %v411 = vunpack.c.h.b16 %v93
  %v412 = vunpack.c.l.b16 %v94
  %v413 = vunpack.c.h.b16 %v94
  %v414 = vunpack.c.l.b16 %v95
  %v415 = vunpack.c.h.b16 %v95
  %v416 = vunpack.c.l.b16 %v96
  %v417 = vunpack.c.h.b16 %v96
  %v418 = vunpack.c.l.b16 %v97
  %v419 = vunpack.c.h.b16 %v97
  %v420 = vunpack.c.l.b16 %v98
  %v421 = vunpack.c.h.b16 %v98
  %v422 = vunpack.c.l.b16 %v99
  %v423 = vunpack.c.h.b16 %v99
  %v424 = vunpack.c.l.b16 %v100
  %v425 = vunpack.c.h.b16 %v100
  %v426 = vunpack.c.l.b16 %v101
  %v427 = vunpack.c.h.b16 %v101
  %v428 = vunpack.c.l.b16 %v102
  %v429 = vunpack.c.h.b16 %v102
  %v430 = vunpack.c.l.b16 %v103
  %v431 = vunpack.c.h.b16 %v103
  %v432 = vunpack.c.l.b16 %v104
  %v433 = vunpack.c.h.b16 %v104
  %v434 = vunpack.c.l.b16 %v105
  %v435 = vunpack.c.h.b16 %v105
  %v436 = vunpack.c.l.b16 %v106
  %v437 = vunpack.c.h.b16 %v106
  %v438 = vunpack.c.l.b16 %v107
  %v439 = vunpack.c.h.b16 %v107
  %v440 = vunpack.c.l.b16 %v108
  %v441 = vunpack.c.h.b16 %v108
  %v442 = vunpack.c.l.b16 %v109
  %v443 = vunpack.c.h.b16 %v109
  %v444 = vunpack.c.l.b16 %v110
  %v445 = vunpack.c.h.b16 %v110
  %v446 = vunpack.c.l.b16 %v111
  %v447 = vunpack.c.h.b16 %v111
  %v448 = vunpack.c.l.b16 %v112
  %v449 = vunpack.c.h.b16 %v112
  %v450 = vunpack.c.l.b16 %v113
  %v451 = vunpack.c.h.b16 %v113
  %v452 = vunpack.c.l.b16 %v114
  %v453 = vunpack.c.h.b16 %v114
  %v454 = vpack.c.b16 %v256, %v254
  %v455 = vpack.c.b16 %v257, %v255
  %v456 = vpack.c.b16 %v260, %v258
  %v457 = vpack.c.b16 %v261, %v259
  %v458 = vpack.c.b16 %v264, %v262
  %v459 = vpack.c.b16 %v265, %v263
  %v460 = vpack.c.b16 %v268, %v266
  %v461 = vpack.c.b16 %v269, %v267
  %v462 = vpack.c.b16 %v272, %v270
  %v463 = vpack.c.b16 %v273, %v271
  %v464 = vpack.c.b16 %v276, %v274
  %v465 = vpack.c.b16 %v277, %v275
  %v466 = vpack.c.b16 %v280, %v278
  %v467 = vpack.c.b16 %v281, %v279
  %v468 = vpack.c.b16 %v284, %v282
  %v469 = vpack.c.b16 %v285, %v283
  %v470 = vpack.c.b16 %v288, %v286
  %v471 = vpack.c.b16 %v289, %v287
  %v472 = vpack.c.b16 %v292, %v290
  %v473 = vpack.c.b16 %v293, %v291
  %v474 = vpack.c.b16 %v296, %v294
  %v475 = vpack.c.b16 %v297, %v295
  %v476 = vpack.c.b16 %v300, %v298
  %v477 = vpack.c.b16 %v301, %v299
  %v478 = vpack.c.b16 %v304, %v302
  %v479 = vpack.c.b16 %v305, %v303
  %v480 = vpack.c.b16 %v308, %v306
  %v481 = vpack.c.b16 %v309, %v307
  %v482 = vpack.c.b16 %v312, %v310
  %v483 = vpack.c.b16 %v313, %v311
  %v484 = vpack.c.b16 %v316, %v314
  %v485 = vpack.c.b16 %v317, %v315
  %v486 = vpack.c.b16 %v320, %v318
  %v487 = vpack.c.b16 %v321, %v319
  %v488 = vpack.c.b16 %v324, %v322
  %v489 = vpack.c.b16 %v325, %v323
  %v490 = vpack.c.b16 %v328, %v326
  %v491 = vpack.c.b16 %v329, %v327
  %v492 = vpack.c.b16 %v332, %v330
  %v493 = vpack.c.b16 %v333, %v331
  %v494 = vpack.c.b16 %v336, %v334
  %v495 = vpack.c.b16 %v337, %v335
  %v496 = vpack.c.b16 %v340, %v338
  %v497 = vpack.c.b16 %v341, %v339
  %v498 = vpack.c.b16 %v344, %v342
  %v499 = vpack.c.b16 %v345, %v343
  %v500 = vpack.c.b16 %v348, %v346
  %v501 = vpack.c.b16 %v349, %v347
  %v502 = vpack.c.b16 %v352, %v350
  %v503 = vpack.c.b16 %v353, %v351
  %v504 = vpack.c.b16 %v356, %v354
  %v505 = vpack.c.b16 %v357, %v355
  %v506 = vpack.c.b16 %v360, %v358
  %v507 = vpack.c.b16 %v361, %v359
  %v508 = vpack.c.b16 %v364, %v362
  %v509 = vpack.c.b16 %v365, %v363
  %v510 = vpack.c.b16 %v368, %v366
  %v511 = vpack.c.b16 %v369, %v367
  %v512 = vpack.c.b16 %v372, %v370
  %v513 = vpack.c.b16 %v373, %v371
  %v514 = vpack.c.b16 %v376, %v374
  %v515 = vpack.c.b16 %v377, %v375
  %v516 = vpack.c.b16 %v380, %v378
  %v517 = vpack.c.b16 %v381, %v379
  %v518 = vpack.c.b16 %v384, %v382
  %v519 = vpack.c.b16 %v385, %v383
  %v520 = vpack.c.b16 %v388, %v386
  %v521 = vpack.c.b16 %v389, %v387
  %v522 = vpack.c.b16 %v392, %v390
  %v523 = vpack.c.b16 %v393, %v391
  %v524 = vpack.c.b16 %v396, %v394
  %v525 = vpack.c.b16 %v397, %v395
  %v526 = vpack.c.b16 %v400, %v398
  %v527 = vpack.c.b16 %v401, %v399
  %v528 = vpack.c.b16 %v404, %v402
  %v529 = vpack.c.b16 %v405, %v403
  %v530 = vpack.c.b16 %v408, %v406
  %v531 = vpack.c.b16 %v409, %v407
  %v532 = vpack.c.b16 %v412, %v410
  %v533 = vpack.c.b16 %v413, %v411
  %v534 = vpack.c.b16 %v416, %v414
  %v535 = vpack.c.b16 %v417, %v415
  %v536 = vpack.c.b16 %v420, %v418
  %v537 = vpack.c.b16 %v421, %v419
  %v538 = vpack.c.b16 %v424, %v422
  %v539 = vpack.c.b16 %v425, %v423
  %v540 = vpack.c.b16 %v428, %v426
  %v541 = vpack.c.b16 %v429, %v427
  %v542 = vpack.c.b16 %v432, %v430
  %v543 = vpack.c.b16 %v433, %v431
  %v544 = vpack.c.b16 %v436, %v434
  %v545 = vpack.c.b16 %v437, %v435
  %v546 = vpack.c.b16 %v440, %v438
  %v547 = vpack.c.b16 %v441, %v439
  %v548 = vpack.c.b16 %v444, %v442
  %v549 = vpack.c.b16 %v445, %v443
  %v550 = vpack.c.b16 %v448, %v446
  %v551 = vpack.c.b16 %v449, %v447
  %v552 = vpack.c.b16 %v452, %v450
  %v553 = vpack.c.b16 %v453, %v451
  %v686 = vunpack.c.l.b16 %v115
  %v687 = vunpack.c.l.b16 %v116
  %v688 = vunpack.c.l.b16 %v117
  %v689 = vunpack.c.l.b16 %v118
  %v690 = vunpack.c.l.b16 %v119
  %v691 = vunpack.c.l.b16 %v120
  %v692 = vunpack.c.l.b16 %v121
  %v693 = vunpack.c.l.b16 %v122
  %v694 = vunpack.c.l.b16 %v123
  %v695 = vunpack.c.l.b16 %v124
  %v696 = vunpack.c.l.b16 %v125
  %v697 = vunpack.c.l.b16 %v126
  %v698 = vunpack.c.l.b16 %v127
  %v699 = vunpack.c.l.b16 %v128
  %v700 = vunpack.c.l.b16 %v129
  %v701 = vunpack.c.l.b16 %v130
  %v702 = vunpack.c.l.b16 %v131
  %v703 = vunpack.c.l.b16 %v132
  %v704 = vunpack.c.l.b16 %v133
  %v705 = vunpack.c.l.b16 %v134
  %v706 = vunpack.c.l.b16 %v135
  %v707 = vunpack.c.l.b16 %v136
  %v708 = vunpack.c.l.b16 %v137
  %v709 = vunpack.c.l.b16 %v138
  %v710 = vunpack.c.l.b16 %v139
  %v711 = vunpack.c.l.b16 %v140
  %v712 = vunpack.c.l.b16 %v141
  %v713 = vunpack.c.l.b16 %v142
  %v714 = vunpack.c.l.b16 %v143
  %v715 = vunpack.c.l.b16 %v144
  %v716 = vunpack.c.l.b16 %v145
  %v717 = vunpack.c.l.b16 %v146
  %v718 = vpack.c.b16 %v687, %v686
  %v719 = vpack.c.b16 %v689, %v688
  %v720 = vpack.c.b16 %v691, %v690
  %v721 = vpack.c.b16 %v693, %v692
  %v722 = vpack.c.b16 %v695, %v694
  %v723 = vpack.c.b16 %v697, %v696
  %v724 = vpack.c.b16 %v699, %v698
  %v725 = vpack.c.b16 %v701, %v700
  %v726 = vpack.c.b16 %v703, %v702
  %v727 = vpack.c.b16 %v705, %v704
  %v728 = vpack.c.b16 %v707, %v706
  %v729 = vpack.c.b16 %v709, %v708
  %v730 = vpack.c.b16 %v711, %v710
  %v731 = vpack.c.b16 %v713, %v712
  %v732 = vpack.c.b16 %v715, %v714
  %v733 = vpack.c.b16 %v717, %v716
  %750 = vmatprep.subr.bf16.mxu0 0
  %751 = vmatpush1.bf16.msra.mxu0 %v718
  %752 = vmatprep.subr.bf16.mxu0 0
  %753 = vmatpush1.bf16.msra.mxu0 %v719
  %754 = vmatprep.subr.bf16.mxu0 0
  %755 = vmatpush1.bf16.msra.mxu0 %v720
  %756 = vmatprep.subr.bf16.mxu0 0
  %757 = vmatpush1.bf16.msra.mxu0 %v721
  %758 = vmatprep.subr.bf16.mxu0 0
  %759 = vmatpush1.bf16.msra.mxu0 %v722
  %760 = vmatprep.subr.bf16.mxu0 0
  %761 = vmatpush1.bf16.msra.mxu0 %v723
  %762 = vmatprep.subr.bf16.mxu0 0
  %763 = vmatpush1.bf16.msra.mxu0 %v724
  %764 = vmatprep.subr.bf16.mxu0 0
  %765 = vmatpush1.bf16.msra.mxu0 %v725
  %766 = vmatprep.subr.bf16.mxu0 0
  %767 = vmatpush1.bf16.msra.mxu0 %v726
  %768 = vmatprep.subr.bf16.mxu0 0
  %769 = vmatpush1.bf16.msra.mxu0 %v727
  %770 = vmatprep.subr.bf16.mxu0 0
  %771 = vmatpush1.bf16.msra.mxu0 %v728
  %772 = vmatprep.subr.bf16.mxu0 0
  %773 = vmatpush1.bf16.msra.mxu0 %v729
  %774 = vmatprep.subr.bf16.mxu0 0
  %775 = vmatpush1.bf16.msra.mxu0 %v730
  %776 = vmatprep.subr.bf16.mxu0 0
  %777 = vmatpush1.bf16.msra.mxu0 %v731
  %778 = vmatprep.subr.bf16.mxu0 0
  %779 = vmatpush1.bf16.msra.mxu0 %v732
  %780 = vmatprep.subr.bf16.mxu0 0
  %781 = vmatpush1.bf16.msra.mxu0 %v733
  %782 = vmatprep.mubr.bf16.mxu0 %v455
  %783 = vmatmul.mubr.bf16.gmra.mrb[0].mxu0 %v454
  %v784 = vpop.f32.mrb[0].mxu0
  %v785 = vadd.f32 %v152, %v784
  %v786 = vpop.f32.mrb[0].mxu0
  %v787 = vpop.f32.mrb[0].mxu0
  %v788 = vadd.f32 %v152, %v787
  %v789 = vpop.f32.mrb[0].mxu0
  %790 = vmatprep.mubr.bf16.mxu0 %v457
  %791 = vmatmul.mubr.bf16.gmra.mrb[0].mxu0 %v456
  %v792 = vpop.f32.mrb[0].mxu0
  %v793 = vadd.f32 %v152, %v792
  %v794 = vpop.f32.mrb[0].mxu0
  %v795 = vpop.f32.mrb[0].mxu0
  %v796 = vadd.f32 %v152, %v795
  %v797 = vpop.f32.mrb[0].mxu0
  %798 = vmatprep.mubr.bf16.mxu0 %v459
  %799 = vmatmul.mubr.bf16.gmra.mrb[0].mxu0 %v458
  %v800 = vpop.f32.mrb[0].mxu0
  %v801 = vadd.f32 %v152, %v800
  %v802 = vpop.f32.mrb[0].mxu0
  %v803 = vpop.f32.mrb[0].mxu0
  %v804 = vadd.f32 %v152, %v803
  %v805 = vpop.f32.mrb[0].mxu0
  %806 = vmatprep.mubr.bf16.mxu0 %v461
  %807 = vmatmul.mubr.bf16.gmra.mrb[0].mxu0 %v460
  %v808 = vpop.f32.mrb[0].mxu0
  %v809 = vadd.f32 %v152, %v808
  %v810 = vpop.f32.mrb[0].mxu0
  %v811 = vpop.f32.mrb[0].mxu0
  %v812 = vadd.f32 %v152, %v811
  %v813 = vpop.f32.mrb[0].mxu0
  %814 = vmatprep.mubr.bf16.mxu0 %v463
  %815 = vmatmul.mubr.bf16.gmra.mrb[0].mxu0 %v462
  %v816 = vpop.f32.mrb[0].mxu0
  %v817 = vadd.f32 %v152, %v816
  %v818 = vpop.f32.mrb[0].mxu0
  %v819 = vpop.f32.mrb[0].mxu0
  %v820 = vadd.f32 %v152, %v819
  %v821 = vpop.f32.mrb[0].mxu0
  %822 = vmatprep.mubr.bf16.mxu0 %v465
  %823 = vmatmul.mubr.bf16.gmra.mrb[0].mxu0 %v464
  %v824 = vpop.f32.mrb[0].mxu0
  %v825 = vadd.f32 %v152, %v824
  %v826 = vpop.f32.mrb[0].mxu0
  %v827 = vpop.f32.mrb[0].mxu0
  %v828 = vadd.f32 %v152, %v827
  %v829 = vpop.f32.mrb[0].mxu0
  %830 = vmatprep.mubr.bf16.mxu0 %v467
  %831 = vmatmul.mubr.bf16.gmra.mrb[0].mxu0 %v466
  %v832 = vpop.f32.mrb[0].mxu0
  %v833 = vadd.f32 %v152, %v832
  %v834 = vpop.f32.mrb[0].mxu0
  %v835 = vpop.f32.mrb[0].mxu0
  %v836 = vadd.f32 %v152, %v835
  %v837 = vpop.f32.mrb[0].mxu0
  %838 = vmatprep.mubr.bf16.mxu0 %v469
  %839 = vmatmul.mubr.bf16.gmra.mrb[0].mxu0 %v468
  %v840 = vpop.f32.mrb[0].mxu0
  %v841 = vadd.f32 %v152, %v840
  %v842 = vpop.f32.mrb[0].mxu0
  %v843 = vpop.f32.mrb[0].mxu0
  %v844 = vadd.f32 %v152, %v843
  %v845 = vpop.f32.mrb[0].mxu0
  %846 = vmatprep.mubr.bf16.mxu0 %v471
  %847 = vmatmul.mubr.bf16.gmra.mrb[0].mxu0 %v470
  %v848 = vpop.f32.mrb[0].mxu0
  %v849 = vadd.f32 %v152, %v848
  %v850 = vpop.f32.mrb[0].mxu0
  %v851 = vpop.f32.mrb[0].mxu0
  %v852 = vadd.f32 %v152, %v851
  %v853 = vpop.f32.mrb[0].mxu0
  %854 = vmatprep.mubr.bf16.mxu0 %v473
  %855 = vmatmul.mubr.bf16.gmra.mrb[0].mxu0 %v472
  %v856 = vpop.f32.mrb[0].mxu0
  %v857 = vadd.f32 %v152, %v856
  %v858 = vpop.f32.mrb[0].mxu0
  %v859 = vpop.f32.mrb[0].mxu0
  %v860 = vadd.f32 %v152, %v859
  %v861 = vpop.f32.mrb[0].mxu0
  %862 = vmatprep.mubr.bf16.mxu0 %v475
  %863 = vmatmul.mubr.bf16.gmra.mrb[0].mxu0 %v474
  %v864 = vpop.f32.mrb[0].mxu0
  %v865 = vadd.f32 %v152, %v864
  %v866 = vpop.f32.mrb[0].mxu0
  %v867 = vpop.f32.mrb[0].mxu0
  %v868 = vadd.f32 %v152, %v867
  %v869 = vpop.f32.mrb[0].mxu0
  %870 = vmatprep.mubr.bf16.mxu0 %v477
  %871 = vmatmul.mubr.bf16.gmra.mrb[0].mxu0 %v476
  %v872 = vpop.f32.mrb[0].mxu0
  %v873 = vadd.f32 %v152, %v872
  %v874 = vpop.f32.mrb[0].mxu0
  %v875 = vpop.f32.mrb[0].mxu0
  %v876 = vadd.f32 %v152, %v875
  %v877 = vpop.f32.mrb[0].mxu0
  %878 = vmatprep.mubr.bf16.mxu0 %v479
  %879 = vmatmul.mubr.bf16.gmra.mrb[0].mxu0 %v478
  %v880 = vpop.f32.mrb[0].mxu0
  %v881 = vadd.f32 %v152, %v880
  %v882 = vpop.f32.mrb[0].mxu0
  %v883 = vpop.f32.mrb[0].mxu0
  %v884 = vadd.f32 %v152, %v883
  %v885 = vpop.f32.mrb[0].mxu0
  %886 = vmatprep.mubr.bf16.mxu0 %v481
  %887 = vmatmul.mubr.bf16.gmra.mrb[0].mxu0 %v480
  %v888 = vpop.f32.mrb[0].mxu0
  %v889 = vadd.f32 %v152, %v888
  %v890 = vpop.f32.mrb[0].mxu0
  %v891 = vpop.f32.mrb[0].mxu0
  %v892 = vadd.f32 %v152, %v891
  %v893 = vpop.f32.mrb[0].mxu0
  %894 = vmatprep.mubr.bf16.mxu0 %v483
  %895 = vmatmul.mubr.bf16.gmra.mrb[0].mxu0 %v482
  %v896 = vpop.f32.mrb[0].mxu0
  %v897 = vadd.f32 %v152, %v896
  %v898 = vpop.f32.mrb[0].mxu0
  %v899 = vpop.f32.mrb[0].mxu0
  %v900 = vadd.f32 %v152, %v899
  %v901 = vpop.f32.mrb[0].mxu0
  %902 = vmatprep.mubr.bf16.mxu0 %v485
  %903 = vmatmul.mubr.bf16.gmra.mrb[0].mxu0 %v484
  %v904 = vpop.f32.mrb[0].mxu0
  %v905 = vadd.f32 %v152, %v904
  %v906 = vpop.f32.mrb[0].mxu0
  %v907 = vpop.f32.mrb[0].mxu0
  %v908 = vadd.f32 %v152, %v907
  %v909 = vpop.f32.mrb[0].mxu0
  %910 = vmatprep.mubr.bf16.mxu0 %v487
  %911 = vmatmul.mubr.bf16.gmra.mrb[0].mxu0 %v486
  %v912 = vpop.f32.mrb[0].mxu0
  %v913 = vadd.f32 %v152, %v912
  %v914 = vpop.f32.mrb[0].mxu0
  %v915 = vpop.f32.mrb[0].mxu0
  %v916 = vadd.f32 %v152, %v915
  %v917 = vpop.f32.mrb[0].mxu0
  %918 = vmatprep.mubr.bf16.mxu0 %v489
  %919 = vmatmul.mubr.bf16.gmra.mrb[0].mxu0 %v488
  %v920 = vpop.f32.mrb[0].mxu0
  %v921 = vadd.f32 %v152, %v920
  %v922 = vpop.f32.mrb[0].mxu0
  %v923 = vpop.f32.mrb[0].mxu0
  %v924 = vadd.f32 %v152, %v923
  %v925 = vpop.f32.mrb[0].mxu0
  %926 = vmatprep.mubr.bf16.mxu0 %v491
  %927 = vmatmul.mubr.bf16.gmra.mrb[0].mxu0 %v490
  %v928 = vpop.f32.mrb[0].mxu0
  %v929 = vadd.f32 %v152, %v928
  %v930 = vpop.f32.mrb[0].mxu0
  %v931 = vpop.f32.mrb[0].mxu0
  %v932 = vadd.f32 %v152, %v931
  %v933 = vpop.f32.mrb[0].mxu0
  %934 = vmatprep.mubr.bf16.mxu0 %v493
  %935 = vmatmul.mubr.bf16.gmra.mrb[0].mxu0 %v492
  %v936 = vpop.f32.mrb[0].mxu0
  %v937 = vadd.f32 %v152, %v936
  %v938 = vpop.f32.mrb[0].mxu0
  %v939 = vpop.f32.mrb[0].mxu0
  %v940 = vadd.f32 %v152, %v939
  %v941 = vpop.f32.mrb[0].mxu0
  %942 = vmatprep.mubr.bf16.mxu0 %v495
  %943 = vmatmul.mubr.bf16.gmra.mrb[0].mxu0 %v494
  %v944 = vpop.f32.mrb[0].mxu0
  %v945 = vadd.f32 %v152, %v944
  %v946 = vpop.f32.mrb[0].mxu0
  %v947 = vpop.f32.mrb[0].mxu0
  %v948 = vadd.f32 %v152, %v947
  %v949 = vpop.f32.mrb[0].mxu0
  %950 = vmatprep.mubr.bf16.mxu0 %v497
  %951 = vmatmul.mubr.bf16.gmra.mrb[0].mxu0 %v496
  %v952 = vpop.f32.mrb[0].mxu0
  %v953 = vadd.f32 %v152, %v952
  %v954 = vpop.f32.mrb[0].mxu0
  %v955 = vpop.f32.mrb[0].mxu0
  %v956 = vadd.f32 %v152, %v955
  %v957 = vpop.f32.mrb[0].mxu0
  %958 = vmatprep.mubr.bf16.mxu0 %v499
  %959 = vmatmul.mubr.bf16.gmra.mrb[0].mxu0 %v498
  %v960 = vpop.f32.mrb[0].mxu0
  %v961 = vadd.f32 %v152, %v960
  %v962 = vpop.f32.mrb[0].mxu0
  %v963 = vpop.f32.mrb[0].mxu0
  %v964 = vadd.f32 %v152, %v963
  %v965 = vpop.f32.mrb[0].mxu0
  %966 = vmatprep.mubr.bf16.mxu0 %v501
  %967 = vmatmul.mubr.bf16.gmra.mrb[0].mxu0 %v500
  %v968 = vpop.f32.mrb[0].mxu0
  %v969 = vadd.f32 %v152, %v968
  %v970 = vpop.f32.mrb[0].mxu0
  %v971 = vpop.f32.mrb[0].mxu0
  %v972 = vadd.f32 %v152, %v971
  %v973 = vpop.f32.mrb[0].mxu0
  %974 = vmatprep.mubr.bf16.mxu0 %v503
  %975 = vmatmul.mubr.bf16.gmra.mrb[0].mxu0 %v502
  %v976 = vpop.f32.mrb[0].mxu0
  %v977 = vadd.f32 %v152, %v976
  %v978 = vpop.f32.mrb[0].mxu0
  %v979 = vpop.f32.mrb[0].mxu0
  %v980 = vadd.f32 %v152, %v979
  %v981 = vpop.f32.mrb[0].mxu0
  %982 = vmatprep.mubr.bf16.mxu0 %v505
  %983 = vmatmul.mubr.bf16.gmra.mrb[0].mxu0 %v504
  %v984 = vpop.f32.mrb[0].mxu0
  %v985 = vadd.f32 %v152, %v984
  %v986 = vpop.f32.mrb[0].mxu0
  %v987 = vpop.f32.mrb[0].mxu0
  %v988 = vadd.f32 %v152, %v987
  %v989 = vpop.f32.mrb[0].mxu0
  %990 = vmatprep.mubr.bf16.mxu0 %v507
  %991 = vmatmul.mubr.bf16.gmra.mrb[0].mxu0 %v506
  %v992 = vpop.f32.mrb[0].mxu0
  %v993 = vadd.f32 %v152, %v992
  %v994 = vpop.f32.mrb[0].mxu0
  %v995 = vpop.f32.mrb[0].mxu0
  %v996 = vadd.f32 %v152, %v995
  %v997 = vpop.f32.mrb[0].mxu0
  %998 = vmatprep.mubr.bf16.mxu0 %v509
  %999 = vmatmul.mubr.bf16.gmra.mrb[0].mxu0 %v508
  %v1000 = vpop.f32.mrb[0].mxu0
  %v1001 = vadd.f32 %v152, %v1000
  %v1002 = vpop.f32.mrb[0].mxu0
  %v1003 = vpop.f32.mrb[0].mxu0
  %v1004 = vadd.f32 %v152, %v1003
  %v1005 = vpop.f32.mrb[0].mxu0
  %1006 = vmatprep.mubr.bf16.mxu0 %v511
  %1007 = vmatmul.mubr.bf16.gmra.mrb[0].mxu0 %v510
  %v1008 = vpop.f32.mrb[0].mxu0
  %v1009 = vadd.f32 %v152, %v1008
  %v1010 = vpop.f32.mrb[0].mxu0
  %v1011 = vpop.f32.mrb[0].mxu0
  %v1012 = vadd.f32 %v152, %v1011
  %v1013 = vpop.f32.mrb[0].mxu0
  %1014 = vmatprep.mubr.bf16.mxu0 %v513
  %1015 = vmatmul.mubr.bf16.gmra.mrb[0].mxu0 %v512
  %v1016 = vpop.f32.mrb[0].mxu0
  %v1017 = vadd.f32 %v152, %v1016
  %v1018 = vpop.f32.mrb[0].mxu0
  %v1019 = vpop.f32.mrb[0].mxu0
  %v1020 = vadd.f32 %v152, %v1019
  %v1021 = vpop.f32.mrb[0].mxu0
  %1022 = vmatprep.mubr.bf16.mxu0 %v515
  %1023 = vmatmul.mubr.bf16.gmra.mrb[0].mxu0 %v514
  %v1024 = vpop.f32.mrb[0].mxu0
  %v1025 = vadd.f32 %v152, %v1024
  %v1026 = vpop.f32.mrb[0].mxu0
  %v1027 = vpop.f32.mrb[0].mxu0
  %v1028 = vadd.f32 %v152, %v1027
  %v1029 = vpop.f32.mrb[0].mxu0
  %1030 = vmatprep.mubr.bf16.mxu0 %v517
  %1031 = vmatmul.mubr.bf16.gmra.mrb[0].mxu0 %v516
  %v1032 = vpop.f32.mrb[0].mxu0
  %v1033 = vadd.f32 %v152, %v1032
  %v1034 = vpop.f32.mrb[0].mxu0
  %v1035 = vpop.f32.mrb[0].mxu0
  %v1036 = vadd.f32 %v152, %v1035
  %v1037 = vpop.f32.mrb[0].mxu0
  %1038 = vmatprep.mubr.bf16.mxu0 %v519
  %1039 = vmatmul.mubr.bf16.gmra.mrb[0].mxu0 %v518
  %v1040 = vpop.f32.mrb[0].mxu0
  %v1041 = vadd.f32 %v152, %v1040
  %v1042 = vpop.f32.mrb[0].mxu0
  %v1043 = vpop.f32.mrb[0].mxu0
  %v1044 = vadd.f32 %v152, %v1043
  %v1045 = vpop.f32.mrb[0].mxu0
  %1046 = vmatprep.mubr.bf16.mxu0 %v521
  %1047 = vmatmul.mubr.bf16.gmra.mrb[0].mxu0 %v520
  %v1048 = vpop.f32.mrb[0].mxu0
  %v1049 = vadd.f32 %v152, %v1048
  %v1050 = vpop.f32.mrb[0].mxu0
  %v1051 = vpop.f32.mrb[0].mxu0
  %v1052 = vadd.f32 %v152, %v1051
  %v1053 = vpop.f32.mrb[0].mxu0
  %1054 = vmatprep.mubr.bf16.mxu0 %v523
  %1055 = vmatmul.mubr.bf16.gmra.mrb[0].mxu0 %v522
  %v1056 = vpop.f32.mrb[0].mxu0
  %v1057 = vadd.f32 %v152, %v1056
  %v1058 = vpop.f32.mrb[0].mxu0
  %v1059 = vpop.f32.mrb[0].mxu0
  %v1060 = vadd.f32 %v152, %v1059
  %v1061 = vpop.f32.mrb[0].mxu0
  %1062 = vmatprep.mubr.bf16.mxu0 %v525
  %1063 = vmatmul.mubr.bf16.gmra.mrb[0].mxu0 %v524
  %v1064 = vpop.f32.mrb[0].mxu0
  %v1065 = vadd.f32 %v152, %v1064
  %v1066 = vpop.f32.mrb[0].mxu0
  %v1067 = vpop.f32.mrb[0].mxu0
  %v1068 = vadd.f32 %v152, %v1067
  %v1069 = vpop.f32.mrb[0].mxu0
  %1070 = vmatprep.mubr.bf16.mxu0 %v527
  %1071 = vmatmul.mubr.bf16.gmra.mrb[0].mxu0 %v526
  %v1072 = vpop.f32.mrb[0].mxu0
  %v1073 = vadd.f32 %v152, %v1072
  %v1074 = vpop.f32.mrb[0].mxu0
  %v1075 = vpop.f32.mrb[0].mxu0
  %v1076 = vadd.f32 %v152, %v1075
  %v1077 = vpop.f32.mrb[0].mxu0
  %1078 = vmatprep.mubr.bf16.mxu0 %v529
  %1079 = vmatmul.mubr.bf16.gmra.mrb[0].mxu0 %v528
  %v1080 = vpop.f32.mrb[0].mxu0
  %v1081 = vadd.f32 %v152, %v1080
  %v1082 = vpop.f32.mrb[0].mxu0
  %v1083 = vpop.f32.mrb[0].mxu0
  %v1084 = vadd.f32 %v152, %v1083
  %v1085 = vpop.f32.mrb[0].mxu0
  %1086 = vmatprep.mubr.bf16.mxu0 %v531
  %1087 = vmatmul.mubr.bf16.gmra.mrb[0].mxu0 %v530
  %v1088 = vpop.f32.mrb[0].mxu0
  %v1089 = vadd.f32 %v152, %v1088
  %v1090 = vpop.f32.mrb[0].mxu0
  %v1091 = vpop.f32.mrb[0].mxu0
  %v1092 = vadd.f32 %v152, %v1091
  %v1093 = vpop.f32.mrb[0].mxu0
  %1094 = vmatprep.mubr.bf16.mxu0 %v533
  %1095 = vmatmul.mubr.bf16.gmra.mrb[0].mxu0 %v532
  %v1096 = vpop.f32.mrb[0].mxu0
  %v1097 = vadd.f32 %v152, %v1096
  %v1098 = vpop.f32.mrb[0].mxu0
  %v1099 = vpop.f32.mrb[0].mxu0
  %v1100 = vadd.f32 %v152, %v1099
  %v1101 = vpop.f32.mrb[0].mxu0
  %1102 = vmatprep.mubr.bf16.mxu0 %v535
  %1103 = vmatmul.mubr.bf16.gmra.mrb[0].mxu0 %v534
  %v1104 = vpop.f32.mrb[0].mxu0
  %v1105 = vadd.f32 %v152, %v1104
  %v1106 = vpop.f32.mrb[0].mxu0
  %v1107 = vpop.f32.mrb[0].mxu0
  %v1108 = vadd.f32 %v152, %v1107
  %v1109 = vpop.f32.mrb[0].mxu0
  %1110 = vmatprep.mubr.bf16.mxu0 %v537
  %1111 = vmatmul.mubr.bf16.gmra.mrb[0].mxu0 %v536
  %v1112 = vpop.f32.mrb[0].mxu0
  %v1113 = vadd.f32 %v152, %v1112
  %v1114 = vpop.f32.mrb[0].mxu0
  %v1115 = vpop.f32.mrb[0].mxu0
  %v1116 = vadd.f32 %v152, %v1115
  %v1117 = vpop.f32.mrb[0].mxu0
  %1118 = vmatprep.mubr.bf16.mxu0 %v539
  %1119 = vmatmul.mubr.bf16.gmra.mrb[0].mxu0 %v538
  %v1120 = vpop.f32.mrb[0].mxu0
  %v1121 = vadd.f32 %v152, %v1120
  %v1122 = vpop.f32.mrb[0].mxu0
  %v1123 = vpop.f32.mrb[0].mxu0
  %v1124 = vadd.f32 %v152, %v1123
  %v1125 = vpop.f32.mrb[0].mxu0
  %1126 = vmatprep.mubr.bf16.mxu0 %v541
  %1127 = vmatmul.mubr.bf16.gmra.mrb[0].mxu0 %v540
  %v1128 = vpop.f32.mrb[0].mxu0
  %v1129 = vadd.f32 %v152, %v1128
  %v1130 = vpop.f32.mrb[0].mxu0
  %v1131 = vpop.f32.mrb[0].mxu0
  %v1132 = vadd.f32 %v152, %v1131
  %v1133 = vpop.f32.mrb[0].mxu0
  %1134 = vmatprep.mubr.bf16.mxu0 %v543
  %1135 = vmatmul.mubr.bf16.gmra.mrb[0].mxu0 %v542
  %v1136 = vpop.f32.mrb[0].mxu0
  %v1137 = vadd.f32 %v152, %v1136
  %v1138 = vpop.f32.mrb[0].mxu0
  %v1139 = vpop.f32.mrb[0].mxu0
  %v1140 = vadd.f32 %v152, %v1139
  %v1141 = vpop.f32.mrb[0].mxu0
  %1142 = vmatprep.mubr.bf16.mxu0 %v545
  %1143 = vmatmul.mubr.bf16.gmra.mrb[0].mxu0 %v544
  %v1144 = vpop.f32.mrb[0].mxu0
  %v1145 = vadd.f32 %v152, %v1144
  %v1146 = vpop.f32.mrb[0].mxu0
  %v1147 = vpop.f32.mrb[0].mxu0
  %v1148 = vadd.f32 %v152, %v1147
  %v1149 = vpop.f32.mrb[0].mxu0
  %1150 = vmatprep.mubr.bf16.mxu0 %v547
  %1151 = vmatmul.mubr.bf16.gmra.mrb[0].mxu0 %v546
  %v1152 = vpop.f32.mrb[0].mxu0
  %v1153 = vadd.f32 %v152, %v1152
  %v1154 = vpop.f32.mrb[0].mxu0
  %v1155 = vpop.f32.mrb[0].mxu0
  %v1156 = vadd.f32 %v152, %v1155
  %v1157 = vpop.f32.mrb[0].mxu0
  %1158 = vmatprep.mubr.bf16.mxu0 %v549
  %1159 = vmatmul.mubr.bf16.gmra.mrb[0].mxu0 %v548
  %v1160 = vpop.f32.mrb[0].mxu0
  %v1161 = vadd.f32 %v152, %v1160
  %v1162 = vpop.f32.mrb[0].mxu0
  %v1163 = vpop.f32.mrb[0].mxu0
  %v1164 = vadd.f32 %v152, %v1163
  %v1165 = vpop.f32.mrb[0].mxu0
  %1166 = vmatprep.mubr.bf16.mxu0 %v551
  %1167 = vmatmul.mubr.bf16.gmra.mrb[0].mxu0 %v550
  %v1168 = vpop.f32.mrb[0].mxu0
  %v1169 = vadd.f32 %v152, %v1168
  %v1170 = vpop.f32.mrb[0].mxu0
  %v1171 = vpop.f32.mrb[0].mxu0
  %v1172 = vadd.f32 %v152, %v1171
  %v1173 = vpop.f32.mrb[0].mxu0
  %1174 = vmatprep.mubr.bf16.mxu0 %v553
  %1175 = vmatmul.mubr.bf16.gmra.mrb[0].mxu0 %v552
  %v1176 = vpop.f32.mrb[0].mxu0
  %v1177 = vadd.f32 %v152, %v1176
  %v1178 = vpop.f32.mrb[0].mxu0
  %v1179 = vpop.f32.mrb[0].mxu0
  %v1180 = vadd.f32 %v152, %v1179
  %v1181 = vpop.f32.mrb[0].mxu0
  %1182 = vdwg.mxu0
  %v1183 = vmax.f32 %v785, 0.0
  %v1184 = vmax.f32 %v788, 0.0
  %v1185 = vmax.f32 %v793, 0.0
  %v1186 = vmax.f32 %v796, 0.0
  %v1187 = vmax.f32 %v801, 0.0
  %v1188 = vmax.f32 %v804, 0.0
  %v1189 = vmax.f32 %v809, 0.0
  %v1190 = vmax.f32 %v812, 0.0
  %v1191 = vmax.f32 %v817, 0.0
  %v1192 = vmax.f32 %v820, 0.0
  %v1193 = vmax.f32 %v825, 0.0
  %v1194 = vmax.f32 %v828, 0.0
  %v1195 = vmax.f32 %v833, 0.0
  %v1196 = vmax.f32 %v836, 0.0
  %v1197 = vmax.f32 %v841, 0.0
  %v1198 = vmax.f32 %v844, 0.0
  %v1199 = vmax.f32 %v849, 0.0
  %v1200 = vmax.f32 %v852, 0.0
  %v1201 = vmax.f32 %v857, 0.0
  %v1202 = vmax.f32 %v860, 0.0
  %v1203 = vmax.f32 %v865, 0.0
  %v1204 = vmax.f32 %v868, 0.0
  %v1205 = vmax.f32 %v873, 0.0
  %v1206 = vmax.f32 %v876, 0.0
  %v1207 = vmax.f32 %v881, 0.0
  %v1208 = vmax.f32 %v884, 0.0
  %v1209 = vmax.f32 %v889, 0.0
  %v1210 = vmax.f32 %v892, 0.0
  %v1211 = vmax.f32 %v897, 0.0
  %v1212 = vmax.f32 %v900, 0.0
  %v1213 = vmax.f32 %v905, 0.0
  %v1214 = vmax.f32 %v908, 0.0
  %v1215 = vmax.f32 %v913, 0.0
  %v1216 = vmax.f32 %v916, 0.0
  %v1217 = vmax.f32 %v921, 0.0
  %v1218 = vmax.f32 %v924, 0.0
  %v1219 = vmax.f32 %v929, 0.0
  %v1220 = vmax.f32 %v932, 0.0
  %v1221 = vmax.f32 %v937, 0.0
  %v1222 = vmax.f32 %v940, 0.0
  %v1223 = vmax.f32 %v945, 0.0
  %v1224 = vmax.f32 %v948, 0.0
  %v1225 = vmax.f32 %v953, 0.0
  %v1226 = vmax.f32 %v956, 0.0
  %v1227 = vmax.f32 %v961, 0.0
  %v1228 = vmax.f32 %v964, 0.0
  %v1229 = vmax.f32 %v969, 0.0
  %v1230 = vmax.f32 %v972, 0.0
  %v1231 = vmax.f32 %v977, 0.0
  %v1232 = vmax.f32 %v980, 0.0
  %v1233 = vmax.f32 %v985, 0.0
  %v1234 = vmax.f32 %v988, 0.0
  %v1235 = vmax.f32 %v993, 0.0
  %v1236 = vmax.f32 %v996, 0.0
  %v1237 = vmax.f32 %v1001, 0.0
  %v1238 = vmax.f32 %v1004, 0.0
  %v1239 = vmax.f32 %v1009, 0.0
  %v1240 = vmax.f32 %v1012, 0.0
  %v1241 = vmax.f32 %v1017, 0.0
  %v1242 = vmax.f32 %v1020, 0.0
  %v1243 = vmax.f32 %v1025, 0.0
  %v1244 = vmax.f32 %v1028, 0.0
  %v1245 = vmax.f32 %v1033, 0.0
  %v1246 = vmax.f32 %v1036, 0.0
  %v1247 = vmax.f32 %v1041, 0.0
  %v1248 = vmax.f32 %v1044, 0.0
  %v1249 = vmax.f32 %v1049, 0.0
  %v1250 = vmax.f32 %v1052, 0.0
  %v1251 = vmax.f32 %v1057, 0.0
  %v1252 = vmax.f32 %v1060, 0.0
  %v1253 = vmax.f32 %v1065, 0.0
  %v1254 = vmax.f32 %v1068, 0.0
  %v1255 = vmax.f32 %v1073, 0.0
  %v1256 = vmax.f32 %v1076, 0.0
  %v1257 = vmax.f32 %v1081, 0.0
  %v1258 = vmax.f32 %v1084, 0.0
  %v1259 = vmax.f32 %v1089, 0.0
  %v1260 = vmax.f32 %v1092, 0.0
  %v1261 = vmax.f32 %v1097, 0.0
  %v1262 = vmax.f32 %v1100, 0.0
  %v1263 = vmax.f32 %v1105, 0.0
  %v1264 = vmax.f32 %v1108, 0.0
  %v1265 = vmax.f32 %v1113, 0.0
  %v1266 = vmax.f32 %v1116, 0.0
  %v1267 = vmax.f32 %v1121, 0.0
  %v1268 = vmax.f32 %v1124, 0.0
  %v1269 = vmax.f32 %v1129, 0.0
  %v1270 = vmax.f32 %v1132, 0.0
  %v1271 = vmax.f32 %v1137, 0.0
  %v1272 = vmax.f32 %v1140, 0.0
  %v1273 = vmax.f32 %v1145, 0.0
  %v1274 = vmax.f32 %v1148, 0.0
  %v1275 = vmax.f32 %v1153, 0.0
  %v1276 = vmax.f32 %v1156, 0.0
  %v1277 = vmax.f32 %v1161, 0.0
  %v1278 = vmax.f32 %v1164, 0.0
  %v1279 = vmax.f32 %v1169, 0.0
  %v1280 = vmax.f32 %v1172, 0.0
  %v1281 = vmax.f32 %v1177, 0.0
  %v1282 = vmax.f32 %v1180, 0.0
  %v1283 = vpack.c.bf16 %v1184, %v1183
  %v1284 = vpack.c.bf16 %v1186, %v1185
  %v1285 = vpack.c.bf16 %v1188, %v1187
  %v1286 = vpack.c.bf16 %v1190, %v1189
  %v1287 = vpack.c.bf16 %v1192, %v1191
  %v1288 = vpack.c.bf16 %v1194, %v1193
  %v1289 = vpack.c.bf16 %v1196, %v1195
  %v1290 = vpack.c.bf16 %v1198, %v1197
  %v1291 = vpack.c.bf16 %v1200, %v1199
  %v1292 = vpack.c.bf16 %v1202, %v1201
  %v1293 = vpack.c.bf16 %v1204, %v1203
  %v1294 = vpack.c.bf16 %v1206, %v1205
  %v1295 = vpack.c.bf16 %v1208, %v1207
  %v1296 = vpack.c.bf16 %v1210, %v1209
  %v1297 = vpack.c.bf16 %v1212, %v1211
  %v1298 = vpack.c.bf16 %v1214, %v1213
  %v1299 = vpack.c.bf16 %v1216, %v1215
  %v1300 = vpack.c.bf16 %v1218, %v1217
  %v1301 = vpack.c.bf16 %v1220, %v1219
  %v1302 = vpack.c.bf16 %v1222, %v1221
  %v1303 = vpack.c.bf16 %v1224, %v1223
  %v1304 = vpack.c.bf16 %v1226, %v1225
  %v1305 = vpack.c.bf16 %v1228, %v1227
  %v1306 = vpack.c.bf16 %v1230, %v1229
  %v1307 = vpack.c.bf16 %v1232, %v1231
  %v1308 = vpack.c.bf16 %v1234, %v1233
  %v1309 = vpack.c.bf16 %v1236, %v1235
  %v1310 = vpack.c.bf16 %v1238, %v1237
  %v1311 = vpack.c.bf16 %v1240, %v1239
  %v1312 = vpack.c.bf16 %v1242, %v1241
  %v1313 = vpack.c.bf16 %v1244, %v1243
  %v1314 = vpack.c.bf16 %v1246, %v1245
  %v1315 = vpack.c.bf16 %v1248, %v1247
  %v1316 = vpack.c.bf16 %v1250, %v1249
  %v1317 = vpack.c.bf16 %v1252, %v1251
  %v1318 = vpack.c.bf16 %v1254, %v1253
  %v1319 = vpack.c.bf16 %v1256, %v1255
  %v1320 = vpack.c.bf16 %v1258, %v1257
  %v1321 = vpack.c.bf16 %v1260, %v1259
  %v1322 = vpack.c.bf16 %v1262, %v1261
  %v1323 = vpack.c.bf16 %v1264, %v1263
  %v1324 = vpack.c.bf16 %v1266, %v1265
  %v1325 = vpack.c.bf16 %v1268, %v1267
  %v1326 = vpack.c.bf16 %v1270, %v1269
  %v1327 = vpack.c.bf16 %v1272, %v1271
  %v1328 = vpack.c.bf16 %v1274, %v1273
  %v1329 = vpack.c.bf16 %v1276, %v1275
  %v1330 = vpack.c.bf16 %v1278, %v1277
  %v1331 = vpack.c.bf16 %v1280, %v1279
  %v1332 = vpack.c.bf16 %v1282, %v1281
  %v1383 = vunpack.c.l.b16 %v1283
  %v1384 = vunpack.c.h.b16 %v1283
  %v1385 = vunpack.c.l.b16 %v1284
  %v1386 = vunpack.c.h.b16 %v1284
  %v1387 = vunpack.c.l.b16 %v1285
  %v1388 = vunpack.c.h.b16 %v1285
  %v1389 = vunpack.c.l.b16 %v1286
  %v1390 = vunpack.c.h.b16 %v1286
  %v1391 = vunpack.c.l.b16 %v1287
  %v1392 = vunpack.c.h.b16 %v1287
  %v1393 = vunpack.c.l.b16 %v1288
  %v1394 = vunpack.c.h.b16 %v1288
  %v1395 = vunpack.c.l.b16 %v1289
  %v1396 = vunpack.c.h.b16 %v1289
  %v1397 = vunpack.c.l.b16 %v1290
  %v1398 = vunpack.c.h.b16 %v1290
  %v1399 = vunpack.c.l.b16 %v1291
  %v1400 = vunpack.c.h.b16 %v1291
  %v1401 = vunpack.c.l.b16 %v1292
  %v1402 = vunpack.c.h.b16 %v1292
  %v1403 = vunpack.c.l.b16 %v1293
  %v1404 = vunpack.c.h.b16 %v1293
  %v1405 = vunpack.c.l.b16 %v1294
  %v1406 = vunpack.c.h.b16 %v1294
  %v1407 = vunpack.c.l.b16 %v1295
  %v1408 = vunpack.c.h.b16 %v1295
  %v1409 = vunpack.c.l.b16 %v1296
  %v1410 = vunpack.c.h.b16 %v1296
  %v1411 = vunpack.c.l.b16 %v1297
  %v1412 = vunpack.c.h.b16 %v1297
  %v1413 = vunpack.c.l.b16 %v1298
  %v1414 = vunpack.c.h.b16 %v1298
  %v1415 = vunpack.c.l.b16 %v1299
  %v1416 = vunpack.c.h.b16 %v1299
  %v1417 = vunpack.c.l.b16 %v1300
  %v1418 = vunpack.c.h.b16 %v1300
  %v1419 = vunpack.c.l.b16 %v1301
  %v1420 = vunpack.c.h.b16 %v1301
  %v1421 = vunpack.c.l.b16 %v1302
  %v1422 = vunpack.c.h.b16 %v1302
  %v1423 = vunpack.c.l.b16 %v1303
  %v1424 = vunpack.c.h.b16 %v1303
  %v1425 = vunpack.c.l.b16 %v1304
  %v1426 = vunpack.c.h.b16 %v1304
  %v1427 = vunpack.c.l.b16 %v1305
  %v1428 = vunpack.c.h.b16 %v1305
  %v1429 = vunpack.c.l.b16 %v1306
  %v1430 = vunpack.c.h.b16 %v1306
  %v1431 = vunpack.c.l.b16 %v1307
  %v1432 = vunpack.c.h.b16 %v1307
  %v1433 = vunpack.c.l.b16 %v1308
  %v1434 = vunpack.c.h.b16 %v1308
  %v1435 = vunpack.c.l.b16 %v1309
  %v1436 = vunpack.c.h.b16 %v1309
  %v1437 = vunpack.c.l.b16 %v1310
  %v1438 = vunpack.c.h.b16 %v1310
  %v1439 = vunpack.c.l.b16 %v1311
  %v1440 = vunpack.c.h.b16 %v1311
  %v1441 = vunpack.c.l.b16 %v1312
  %v1442 = vunpack.c.h.b16 %v1312
  %v1443 = vunpack.c.l.b16 %v1313
  %v1444 = vunpack.c.h.b16 %v1313
  %v1445 = vunpack.c.l.b16 %v1314
  %v1446 = vunpack.c.h.b16 %v1314
  %v1447 = vunpack.c.l.b16 %v1315
  %v1448 = vunpack.c.h.b16 %v1315
  %v1449 = vunpack.c.l.b16 %v1316
  %v1450 = vunpack.c.h.b16 %v1316
  %v1451 = vunpack.c.l.b16 %v1317
  %v1452 = vunpack.c.h.b16 %v1317
  %v1453 = vunpack.c.l.b16 %v1318
  %v1454 = vunpack.c.h.b16 %v1318
  %v1455 = vunpack.c.l.b16 %v1319
  %v1456 = vunpack.c.h.b16 %v1319
  %v1457 = vunpack.c.l.b16 %v1320
  %v1458 = vunpack.c.h.b16 %v1320
  %v1459 = vunpack.c.l.b16 %v1321
  %v1460 = vunpack.c.h.b16 %v1321
  %v1461 = vunpack.c.l.b16 %v1322
  %v1462 = vunpack.c.h.b16 %v1322
  %v1463 = vunpack.c.l.b16 %v1323
  %v1464 = vunpack.c.h.b16 %v1323
  %v1465 = vunpack.c.l.b16 %v1324
  %v1466 = vunpack.c.h.b16 %v1324
  %v1467 = vunpack.c.l.b16 %v1325
  %v1468 = vunpack.c.h.b16 %v1325
  %v1469 = vunpack.c.l.b16 %v1326
  %v1470 = vunpack.c.h.b16 %v1326
  %v1471 = vunpack.c.l.b16 %v1327
  %v1472 = vunpack.c.h.b16 %v1327
  %v1473 = vunpack.c.l.b16 %v1328
  %v1474 = vunpack.c.h.b16 %v1328
  %v1475 = vunpack.c.l.b16 %v1329
  %v1476 = vunpack.c.h.b16 %v1329
  %v1477 = vunpack.c.l.b16 %v1330
  %v1478 = vunpack.c.h.b16 %v1330
  %v1479 = vunpack.c.l.b16 %v1331
  %v1480 = vunpack.c.h.b16 %v1331
  %v1481 = vunpack.c.l.b16 %v1332
  %v1482 = vunpack.c.h.b16 %v1332
  %v1483 = vpack.c.b16 %v1383, %v1383
  %v1484 = vpack.c.b16 %v1384, %v1384
  %v1485 = vpack.c.b16 %v1385, %v1385
  %v1486 = vpack.c.b16 %v1386, %v1386
  %v1487 = vpack.c.b16 %v1387, %v1387
  %v1488 = vpack.c.b16 %v1388, %v1388
  %v1489 = vpack.c.b16 %v1389, %v1389
  %v1490 = vpack.c.b16 %v1390, %v1390
  %v1491 = vpack.c.b16 %v1391, %v1391
  %v1492 = vpack.c.b16 %v1392, %v1392
  %v1493 = vpack.c.b16 %v1393, %v1393
  %v1494 = vpack.c.b16 %v1394, %v1394
  %v1495 = vpack.c.b16 %v1395, %v1395
  %v1496 = vpack.c.b16 %v1396, %v1396
  %v1497 = vpack.c.b16 %v1397, %v1397
  %v1498 = vpack.c.b16 %v1398, %v1398
  %v1499 = vpack.c.b16 %v1399, %v1399
  %v1500 = vpack.c.b16 %v1400, %v1400
  %v1501 = vpack.c.b16 %v1401, %v1401
  %v1502 = vpack.c.b16 %v1402, %v1402
  %v1503 = vpack.c.b16 %v1403, %v1403
  %v1504 = vpack.c.b16 %v1404, %v1404
  %v1505 = vpack.c.b16 %v1405, %v1405
  %v1506 = vpack.c.b16 %v1406, %v1406
  %v1507 = vpack.c.b16 %v1407, %v1407
  %v1508 = vpack.c.b16 %v1408, %v1408
  %v1509 = vpack.c.b16 %v1409, %v1409
  %v1510 = vpack.c.b16 %v1410, %v1410
  %v1511 = vpack.c.b16 %v1411, %v1411
  %v1512 = vpack.c.b16 %v1412, %v1412
  %v1513 = vpack.c.b16 %v1413, %v1413
  %v1514 = vpack.c.b16 %v1414, %v1414
  %v1515 = vpack.c.b16 %v1415, %v1415
  %v1516 = vpack.c.b16 %v1416, %v1416
  %v1517 = vpack.c.b16 %v1417, %v1417
  %v1518 = vpack.c.b16 %v1418, %v1418
  %v1519 = vpack.c.b16 %v1419, %v1419
  %v1520 = vpack.c.b16 %v1420, %v1420
  %v1521 = vpack.c.b16 %v1421, %v1421
  %v1522 = vpack.c.b16 %v1422, %v1422
  %v1523 = vpack.c.b16 %v1423, %v1423
  %v1524 = vpack.c.b16 %v1424, %v1424
  %v1525 = vpack.c.b16 %v1425, %v1425
  %v1526 = vpack.c.b16 %v1426, %v1426
  %v1527 = vpack.c.b16 %v1427, %v1427
  %v1528 = vpack.c.b16 %v1428, %v1428
  %v1529 = vpack.c.b16 %v1429, %v1429
  %v1530 = vpack.c.b16 %v1430, %v1430
  %v1531 = vpack.c.b16 %v1431, %v1431
  %v1532 = vpack.c.b16 %v1432, %v1432
  %v1533 = vpack.c.b16 %v1433, %v1433
  %v1534 = vpack.c.b16 %v1434, %v1434
  %v1535 = vpack.c.b16 %v1435, %v1435
  %v1536 = vpack.c.b16 %v1436, %v1436
  %v1537 = vpack.c.b16 %v1437, %v1437
  %v1538 = vpack.c.b16 %v1438, %v1438
  %v1539 = vpack.c.b16 %v1439, %v1439
  %v1540 = vpack.c.b16 %v1440, %v1440
  %v1541 = vpack.c.b16 %v1441, %v1441
  %v1542 = vpack.c.b16 %v1442, %v1442
  %v1543 = vpack.c.b16 %v1443, %v1443
  %v1544 = vpack.c.b16 %v1444, %v1444
  %v1545 = vpack.c.b16 %v1445, %v1445
  %v1546 = vpack.c.b16 %v1446, %v1446
  %v1547 = vpack.c.b16 %v1447, %v1447
  %v1548 = vpack.c.b16 %v1448, %v1448
  %v1549 = vpack.c.b16 %v1449, %v1449
  %v1550 = vpack.c.b16 %v1450, %v1450
  %v1551 = vpack.c.b16 %v1451, %v1451
  %v1552 = vpack.c.b16 %v1452, %v1452
  %v1553 = vpack.c.b16 %v1453, %v1453
  %v1554 = vpack.c.b16 %v1454, %v1454
  %v1555 = vpack.c.b16 %v1455, %v1455
  %v1556 = vpack.c.b16 %v1456, %v1456
  %v1557 = vpack.c.b16 %v1457, %v1457
  %v1558 = vpack.c.b16 %v1458, %v1458
  %v1559 = vpack.c.b16 %v1459, %v1459
  %v1560 = vpack.c.b16 %v1460, %v1460
  %v1561 = vpack.c.b16 %v1461, %v1461
  %v1562 = vpack.c.b16 %v1462, %v1462
  %v1563 = vpack.c.b16 %v1463, %v1463
  %v1564 = vpack.c.b16 %v1464, %v1464
  %v1565 = vpack.c.b16 %v1465, %v1465
  %v1566 = vpack.c.b16 %v1466, %v1466
  %v1567 = vpack.c.b16 %v1467, %v1467
  %v1568 = vpack.c.b16 %v1468, %v1468
  %v1569 = vpack.c.b16 %v1469, %v1469
  %v1570 = vpack.c.b16 %v1470, %v1470
  %v1571 = vpack.c.b16 %v1471, %v1471
  %v1572 = vpack.c.b16 %v1472, %v1472
  %v1573 = vpack.c.b16 %v1473, %v1473
  %v1574 = vpack.c.b16 %v1474, %v1474
  %v1575 = vpack.c.b16 %v1475, %v1475
  %v1576 = vpack.c.b16 %v1476, %v1476
  %v1577 = vpack.c.b16 %v1477, %v1477
  %v1578 = vpack.c.b16 %v1478, %v1478
  %v1579 = vpack.c.b16 %v1479, %v1479
  %v1580 = vpack.c.b16 %v1480, %v1480
  %v1581 = vpack.c.b16 %v1481, %v1481
  %v1582 = vpack.c.b16 %v1482, %v1482
  %vm1683 = vcmask 257024
  %1684 = vst.msk [vmem:[%s3] sm:$0xf] %vm1683, %v1483
  %1685 = vst.msk [vmem:[%s3 + $0x4] sm:$0xf] %vm1683, %v1484
  %1686 = vst.msk [vmem:[%s3 + $0x8] sm:$0xf] %vm1683, %v1485
  %1687 = vst.msk [vmem:[%s3 + $0xc] sm:$0xf] %vm1683, %v1486
  %1688 = vst.msk [vmem:[%s3 + $0x10] sm:$0xf] %vm1683, %v1487
  %1689 = vst.msk [vmem:[%s3 + $0x14] sm:$0xf] %vm1683, %v1488
  %1690 = vst.msk [vmem:[%s3 + $0x18] sm:$0xf] %vm1683, %v1489
  %1691 = vst.msk [vmem:[%s3 + $0x1c] sm:$0xf] %vm1683, %v1490
  %1692 = vst.msk [vmem:[%s3 + $0x20] sm:$0xf] %vm1683, %v1491
  %1693 = vst.msk [vmem:[%s3 + $0x24] sm:$0xf] %vm1683, %v1492
  %1694 = vst.msk [vmem:[%s3 + $0x28] sm:$0xf] %vm1683, %v1493
  %1695 = vst.msk [vmem:[%s3 + $0x2c] sm:$0xf] %vm1683, %v1494
  %1696 = vst.msk [vmem:[%s3 + $0x30] sm:$0xf] %vm1683, %v1495
  %1697 = vst.msk [vmem:[%s3 + $0x34] sm:$0xf] %vm1683, %v1496
  %1698 = vst.msk [vmem:[%s3 + $0x38] sm:$0xf] %vm1683, %v1497
  %1699 = vst.msk [vmem:[%s3 + $0x3c] sm:$0xf] %vm1683, %v1498
  %1700 = vst.msk [vmem:[%s3 + $0x40] sm:$0xf] %vm1683, %v1499
  %1701 = vst.msk [vmem:[%s3 + $0x44] sm:$0xf] %vm1683, %v1500
  %1702 = vst.msk [vmem:[%s3 + $0x48] sm:$0xf] %vm1683, %v1501
  %1703 = vst.msk [vmem:[%s3 + $0x4c] sm:$0xf] %vm1683, %v1502
  %1704 = vst.msk [vmem:[%s3 + $0x50] sm:$0xf] %vm1683, %v1503
  %1705 = vst.msk [vmem:[%s3 + $0x54] sm:$0xf] %vm1683, %v1504
  %1706 = vst.msk [vmem:[%s3 + $0x58] sm:$0xf] %vm1683, %v1505
  %1707 = vst.msk [vmem:[%s3 + $0x5c] sm:$0xf] %vm1683, %v1506
  %1708 = vst.msk [vmem:[%s3 + $0x60] sm:$0xf] %vm1683, %v1507
  %1709 = vst.msk [vmem:[%s3 + $0x64] sm:$0xf] %vm1683, %v1508
  %1710 = vst.msk [vmem:[%s3 + $0x68] sm:$0xf] %vm1683, %v1509
  %1711 = vst.msk [vmem:[%s3 + $0x6c] sm:$0xf] %vm1683, %v1510
  %1712 = vst.msk [vmem:[%s3 + $0x70] sm:$0xf] %vm1683, %v1511
  %1713 = vst.msk [vmem:[%s3 + $0x74] sm:$0xf] %vm1683, %v1512
  %1714 = vst.msk [vmem:[%s3 + $0x78] sm:$0xf] %vm1683, %v1513
  %1715 = vst.msk [vmem:[%s3 + $0x7c] sm:$0xf] %vm1683, %v1514
  %1716 = vst.msk [vmem:[%s3 + $0x80] sm:$0xf] %vm1683, %v1515
  %1717 = vst.msk [vmem:[%s3 + $0x84] sm:$0xf] %vm1683, %v1516
  %1718 = vst.msk [vmem:[%s3 + $0x88] sm:$0xf] %vm1683, %v1517
  %1719 = vst.msk [vmem:[%s3 + $0x8c] sm:$0xf] %vm1683, %v1518
  %1720 = vst.msk [vmem:[%s3 + $0x90] sm:$0xf] %vm1683, %v1519
  %1721 = vst.msk [vmem:[%s3 + $0x94] sm:$0xf] %vm1683, %v1520
  %1722 = vst.msk [vmem:[%s3 + $0x98] sm:$0xf] %vm1683, %v1521
  %1723 = vst.msk [vmem:[%s3 + $0x9c] sm:$0xf] %vm1683, %v1522
  %1724 = vst.msk [vmem:[%s3 + $0xa0] sm:$0xf] %vm1683, %v1523
  %1725 = vst.msk [vmem:[%s3 + $0xa4] sm:$0xf] %vm1683, %v1524
  %1726 = vst.msk [vmem:[%s3 + $0xa8] sm:$0xf] %vm1683, %v1525
  %1727 = vst.msk [vmem:[%s3 + $0xac] sm:$0xf] %vm1683, %v1526
  %1728 = vst.msk [vmem:[%s3 + $0xb0] sm:$0xf] %vm1683, %v1527
  %1729 = vst.msk [vmem:[%s3 + $0xb4] sm:$0xf] %vm1683, %v1528
  %1730 = vst.msk [vmem:[%s3 + $0xb8] sm:$0xf] %vm1683, %v1529
  %1731 = vst.msk [vmem:[%s3 + $0xbc] sm:$0xf] %vm1683, %v1530
  %1732 = vst.msk [vmem:[%s3 + $0xc0] sm:$0xf] %vm1683, %v1531
  %1733 = vst.msk [vmem:[%s3 + $0xc4] sm:$0xf] %vm1683, %v1532
  %1734 = vst.msk [vmem:[%s3 + $0xc8] sm:$0xf] %vm1683, %v1533
  %1735 = vst.msk [vmem:[%s3 + $0xcc] sm:$0xf] %vm1683, %v1534
  %1736 = vst.msk [vmem:[%s3 + $0xd0] sm:$0xf] %vm1683, %v1535
  %1737 = vst.msk [vmem:[%s3 + $0xd4] sm:$0xf] %vm1683, %v1536
  %1738 = vst.msk [vmem:[%s3 + $0xd8] sm:$0xf] %vm1683, %v1537
  %1739 = vst.msk [vmem:[%s3 + $0xdc] sm:$0xf] %vm1683, %v1538
  %1740 = vst.msk [vmem:[%s3 + $0xe0] sm:$0xf] %vm1683, %v1539
  %1741 = vst.msk [vmem:[%s3 + $0xe4] sm:$0xf] %vm1683, %v1540
  %1742 = vst.msk [vmem:[%s3 + $0xe8] sm:$0xf] %vm1683, %v1541
  %1743 = vst.msk [vmem:[%s3 + $0xec] sm:$0xf] %vm1683, %v1542
  %1744 = vst.msk [vmem:[%s3 + $0xf0] sm:$0xf] %vm1683, %v1543
  %1745 = vst.msk [vmem:[%s3 + $0xf4] sm:$0xf] %vm1683, %v1544
  %1746 = vst.msk [vmem:[%s3 + $0xf8] sm:$0xf] %vm1683, %v1545
  %1747 = vst.msk [vmem:[%s3 + $0xfc] sm:$0xf] %vm1683, %v1546
  %1748 = vst.msk [vmem:[%s3 + $0x100] sm:$0xf] %vm1683, %v1547
  %1749 = vst.msk [vmem:[%s3 + $0x104] sm:$0xf] %vm1683, %v1548
  %1750 = vst.msk [vmem:[%s3 + $0x108] sm:$0xf] %vm1683, %v1549
  %1751 = vst.msk [vmem:[%s3 + $0x10c] sm:$0xf] %vm1683, %v1550
  %1752 = vst.msk [vmem:[%s3 + $0x110] sm:$0xf] %vm1683, %v1551
  %1753 = vst.msk [vmem:[%s3 + $0x114] sm:$0xf] %vm1683, %v1552
  %1754 = vst.msk [vmem:[%s3 + $0x118] sm:$0xf] %vm1683, %v1553
  %1755 = vst.msk [vmem:[%s3 + $0x11c] sm:$0xf] %vm1683, %v1554
  %1756 = vst.msk [vmem:[%s3 + $0x120] sm:$0xf] %vm1683, %v1555
  %1757 = vst.msk [vmem:[%s3 + $0x124] sm:$0xf] %vm1683, %v1556
  %1758 = vst.msk [vmem:[%s3 + $0x128] sm:$0xf] %vm1683, %v1557
  %1759 = vst.msk [vmem:[%s3 + $0x12c] sm:$0xf] %vm1683, %v1558
  %1760 = vst.msk [vmem:[%s3 + $0x130] sm:$0xf] %vm1683, %v1559
  %1761 = vst.msk [vmem:[%s3 + $0x134] sm:$0xf] %vm1683, %v1560
  %1762 = vst.msk [vmem:[%s3 + $0x138] sm:$0xf] %vm1683, %v1561
  %1763 = vst.msk [vmem:[%s3 + $0x13c] sm:$0xf] %vm1683, %v1562
  %1764 = vst.msk [vmem:[%s3 + $0x140] sm:$0xf] %vm1683, %v1563
  %1765 = vst.msk [vmem:[%s3 + $0x144] sm:$0xf] %vm1683, %v1564
  %1766 = vst.msk [vmem:[%s3 + $0x148] sm:$0xf] %vm1683, %v1565
  %1767 = vst.msk [vmem:[%s3 + $0x14c] sm:$0xf] %vm1683, %v1566
  %1768 = vst.msk [vmem:[%s3 + $0x150] sm:$0xf] %vm1683, %v1567
  %1769 = vst.msk [vmem:[%s3 + $0x154] sm:$0xf] %vm1683, %v1568
  %1770 = vst.msk [vmem:[%s3 + $0x158] sm:$0xf] %vm1683, %v1569
  %1771 = vst.msk [vmem:[%s3 + $0x15c] sm:$0xf] %vm1683, %v1570
  %1772 = vst.msk [vmem:[%s3 + $0x160] sm:$0xf] %vm1683, %v1571
  %1773 = vst.msk [vmem:[%s3 + $0x164] sm:$0xf] %vm1683, %v1572
  %1774 = vst.msk [vmem:[%s3 + $0x168] sm:$0xf] %vm1683, %v1573
  %1775 = vst.msk [vmem:[%s3 + $0x16c] sm:$0xf] %vm1683, %v1574
  %1776 = vst.msk [vmem:[%s3 + $0x170] sm:$0xf] %vm1683, %v1575
  %1777 = vst.msk [vmem:[%s3 + $0x174] sm:$0xf] %vm1683, %v1576
  %1778 = vst.msk [vmem:[%s3 + $0x178] sm:$0xf] %vm1683, %v1577
  %1779 = vst.msk [vmem:[%s3 + $0x17c] sm:$0xf] %vm1683, %v1578
  %1780 = vst.msk [vmem:[%s3 + $0x180] sm:$0xf] %vm1683, %v1579
  %1781 = vst.msk [vmem:[%s3 + $0x184] sm:$0xf] %vm1683, %v1580
  %1782 = vst.msk [vmem:[%s3 + $0x188] sm:$0xf] %vm1683, %v1581
  %1783 = vst.msk [vmem:[%s3 + $0x18c] sm:$0xf] %vm1683, %v1582
  // Predicated region
  $region14: #{actgen_forward.4} parent=0 // pred_check
    _
  $region15: #{actgen_forward.4} parent=0 // pred_check_branch
    %1785 = sbr.rel (0) target = $region17
  $region16: #{actgen_forward.4} parent=0 // pred_region
    _
  $region17: #{actgen_forward.4} parent=0 // pred_fallthru
    _
  // Predicated region
  $region18: #{actgen_forward.4} parent=0 // pred_check
    _
  $region19: #{actgen_forward.4} parent=0 // pred_check_branch
    %1787 = sbr.rel (0) target = $region21
  $region20: #{actgen_forward.4} parent=0 // pred_region
    _
  $region21: #{actgen_forward.4} parent=0 // pred_fallthru
    _

// kernel: actgen_forward.5
$region0: #{actgen_forward.5}
  #allocation0 [shape = 'u32[]', space=smem, size = 0x4, offset = 0x4, fixed_abs, tag = 'smem constant byte address 0x4 - core index']
  #allocation1 [shape = 'u32[144,128]{1,0:T(1,128)}', space=vmem, size = 0x12000, scoped, tag = 'internal scratch']
  %s0 = inlined_call_operand.vmem [shape: bf16[168,512], index: 0, kind: input, shape index: {}]
  %s1 = inlined_call_operand.vmem [shape: bf16[512,64], index: 1, kind: input, shape index: {}]
  %s2 = inlined_call_operand.vmem [shape: f32[1,64], index: 2, kind: input, shape index: {}]
  %s3 = inlined_call_operand.vmem [shape: bf16[168,64], index: 3, kind: output, shape index: {}]
  %s4 = sld [smem:[#allocation0]]
  $region22: #{actgen_forward.5} parent=0
    _
  %s6 = ssub.s32 1, %s4
  %s7 = scalar_select 0, %s6, %s4
  // Predicated region
  $region2: #{actgen_forward.5} parent=0 // pred_check
    _
  $region3: #{actgen_forward.5} parent=0 // pred_check_branch
    %9 = sbr.rel (0) target = $region5
  $region4: #{actgen_forward.5} parent=0 // pred_region
    _
  $region5: #{actgen_forward.5} parent=0 // pred_fallthru
    _
  // Predicated region
  $region6: #{actgen_forward.5} parent=0 // pred_check
    _
  $region7: #{actgen_forward.5} parent=0 // pred_check_branch
    %11 = sbr.rel (0) target = $region9
  $region8: #{actgen_forward.5} parent=0 // pred_region
    _
  $region9: #{actgen_forward.5} parent=0 // pred_fallthru
    _
  // Predicated region
  $region10: #{actgen_forward.5} parent=0 // pred_check
    _
  $region11: #{actgen_forward.5} parent=0 // pred_check_branch
    %13 = sbr.rel (0) target = $region13
  $region12: #{actgen_forward.5} parent=0 // pred_region
    _
  $region13: #{actgen_forward.5} parent=0 // pred_fallthru
    _
  %v15 = vld [vmem:[%s0] sm:$0xff]
  %v16 = vld [vmem:[%s0 + $0x8] sm:$0xff]
  %v17 = vld [vmem:[%s0 + $0x10] sm:$0xff]
  %v18 = vld [vmem:[%s0 + $0x18] sm:$0xff]
  %v19 = vld [vmem:[%s0 + $0x20] sm:$0xff]
  %v20 = vld [vmem:[%s0 + $0x28] sm:$0xff]
  %v21 = vld [vmem:[%s0 + $0x30] sm:$0xff]
  %v22 = vld [vmem:[%s0 + $0x38] sm:$0xff]
  %v23 = vld [vmem:[%s0 + $0x40] sm:$0xff]
  %v24 = vld [vmem:[%s0 + $0x48] sm:$0xff]
  %v25 = vld [vmem:[%s0 + $0x50] sm:$0xff]
  %v26 = vld [vmem:[%s0 + $0x58] sm:$0xff]
  %v27 = vld [vmem:[%s0 + $0x60] sm:$0xff]
  %v28 = vld [vmem:[%s0 + $0x68] sm:$0xff]
  %v29 = vld [vmem:[%s0 + $0x70] sm:$0xff]
  %v30 = vld [vmem:[%s0 + $0x78] sm:$0xff]
  %v31 = vld [vmem:[%s0 + $0x80] sm:$0xff]
  %v32 = vld [vmem:[%s0 + $0x88] sm:$0xff]
  %v33 = vld [vmem:[%s0 + $0x90] sm:$0xff]
  %v34 = vld [vmem:[%s0 + $0x98] sm:$0xff]
  %v35 = vld [vmem:[%s0 + $0xa0] sm:$0xff]
  %v36 = vld [vmem:[%s0 + $0xa8] sm:$0xff]
  %v37 = vld [vmem:[%s0 + $0xb0] sm:$0xff]
  %v38 = vld [vmem:[%s0 + $0xb8] sm:$0xff]
  %v39 = vld [vmem:[%s0 + $0xc0] sm:$0xff]
  %v40 = vld [vmem:[%s0 + $0xc8] sm:$0xff]
  %v41 = vld [vmem:[%s0 + $0xd0] sm:$0xff]
  %v42 = vld [vmem:[%s0 + $0xd8] sm:$0xff]
  %v43 = vld [vmem:[%s0 + $0xe0] sm:$0xff]
  %v44 = vld [vmem:[%s0 + $0xe8] sm:$0xff]
  %v45 = vld [vmem:[%s0 + $0xf0] sm:$0xff]
  %v46 = vld [vmem:[%s0 + $0xf8] sm:$0xff]
  %v47 = vld [vmem:[%s0 + $0x100] sm:$0xff]
  %v48 = vld [vmem:[%s0 + $0x108] sm:$0xff]
  %v49 = vld [vmem:[%s0 + $0x110] sm:$0xff]
  %v50 = vld [vmem:[%s0 + $0x118] sm:$0xff]
  %v51 = vld [vmem:[%s0 + $0x120] sm:$0xff]
  %v52 = vld [vmem:[%s0 + $0x128] sm:$0xff]
  %v53 = vld [vmem:[%s0 + $0x130] sm:$0xff]
  %v54 = vld [vmem:[%s0 + $0x138] sm:$0xff]
  %v55 = vld [vmem:[%s0 + $0x140] sm:$0xff]
  %v56 = vld [vmem:[%s0 + $0x148] sm:$0xff]
  %v57 = vld [vmem:[%s1] sm:$0xf]
  %v58 = vld [vmem:[%s1 + $0x4] sm:$0xf]
  %v59 = vld [vmem:[%s1 + $0x8] sm:$0xf]
  %v60 = vld [vmem:[%s1 + $0xc] sm:$0xf]
  %v61 = vld [vmem:[%s1 + $0x10] sm:$0xf]
  %v62 = vld [vmem:[%s1 + $0x14] sm:$0xf]
  %v63 = vld [vmem:[%s1 + $0x18] sm:$0xf]
  %v64 = vld [vmem:[%s1 + $0x1c] sm:$0xf]
  %v65 = vld [vmem:[%s1 + $0x20] sm:$0xf]
  %v66 = vld [vmem:[%s1 + $0x24] sm:$0xf]
  %v67 = vld [vmem:[%s1 + $0x28] sm:$0xf]
  %v68 = vld [vmem:[%s1 + $0x2c] sm:$0xf]
  %v69 = vld [vmem:[%s1 + $0x30] sm:$0xf]
  %v70 = vld [vmem:[%s1 + $0x34] sm:$0xf]
  %v71 = vld [vmem:[%s1 + $0x38] sm:$0xf]
  %v72 = vld [vmem:[%s1 + $0x3c] sm:$0xf]
  %v73 = vld [vmem:[%s1 + $0x40] sm:$0xf]
  %v74 = vld [vmem:[%s1 + $0x44] sm:$0xf]
  %v75 = vld [vmem:[%s1 + $0x48] sm:$0xf]
  %v76 = vld [vmem:[%s1 + $0x4c] sm:$0xf]
  %v77 = vld [vmem:[%s1 + $0x50] sm:$0xf]
  %v78 = vld [vmem:[%s1 + $0x54] sm:$0xf]
  %v79 = vld [vmem:[%s1 + $0x58] sm:$0xf]
  %v80 = vld [vmem:[%s1 + $0x5c] sm:$0xf]
  %v81 = vld [vmem:[%s1 + $0x60] sm:$0xf]
  %v82 = vld [vmem:[%s1 + $0x64] sm:$0xf]
  %v83 = vld [vmem:[%s1 + $0x68] sm:$0xf]
  %v84 = vld [vmem:[%s1 + $0x6c] sm:$0xf]
  %v85 = vld [vmem:[%s1 + $0x70] sm:$0xf]
  %v86 = vld [vmem:[%s1 + $0x74] sm:$0xf]
  %v87 = vld [vmem:[%s1 + $0x78] sm:$0xf]
  %v88 = vld [vmem:[%s1 + $0x7c] sm:$0xf]
  %v89 = vld [vmem:[%s1 + $0x80] sm:$0xf]
  %v90 = vld [vmem:[%s1 + $0x84] sm:$0xf]
  %v91 = vld [vmem:[%s1 + $0x88] sm:$0xf]
  %v92 = vld [vmem:[%s1 + $0x8c] sm:$0xf]
  %v93 = vld [vmem:[%s1 + $0x90] sm:$0xf]
  %v94 = vld [vmem:[%s1 + $0x94] sm:$0xf]
  %v95 = vld [vmem:[%s1 + $0x98] sm:$0xf]
  %v96 = vld [vmem:[%s1 + $0x9c] sm:$0xf]
  %v97 = vld [vmem:[%s1 + $0xa0] sm:$0xf]
  %v98 = vld [vmem:[%s1 + $0xa4] sm:$0xf]
  %v99 = vld [vmem:[%s1 + $0xa8] sm:$0xf]
  %v100 = vld [vmem:[%s1 + $0xac] sm:$0xf]
  %v101 = vld [vmem:[%s1 + $0xb0] sm:$0xf]
  %v102 = vld [vmem:[%s1 + $0xb4] sm:$0xf]
  %v103 = vld [vmem:[%s1 + $0xb8] sm:$0xf]
  %v104 = vld [vmem:[%s1 + $0xbc] sm:$0xf]
  %v105 = vld [vmem:[%s1 + $0xc0] sm:$0xf]
  %v106 = vld [vmem:[%s1 + $0xc4] sm:$0xf]
  %v107 = vld [vmem:[%s1 + $0xc8] sm:$0xf]
  %v108 = vld [vmem:[%s1 + $0xcc] sm:$0xf]
  %v109 = vld [vmem:[%s1 + $0xd0] sm:$0xf]
  %v110 = vld [vmem:[%s1 + $0xd4] sm:$0xf]
  %v111 = vld [vmem:[%s1 + $0xd8] sm:$0xf]
  %v112 = vld [vmem:[%s1 + $0xdc] sm:$0xf]
  %v113 = vld [vmem:[%s1 + $0xe0] sm:$0xf]
  %v114 = vld [vmem:[%s1 + $0xe4] sm:$0xf]
  %v115 = vld [vmem:[%s1 + $0xe8] sm:$0xf]
  %v116 = vld [vmem:[%s1 + $0xec] sm:$0xf]
  %v117 = vld [vmem:[%s1 + $0xf0] sm:$0xf]
  %v118 = vld [vmem:[%s1 + $0xf4] sm:$0xf]
  %v119 = vld [vmem:[%s1 + $0xf8] sm:$0xf]
  %v120 = vld [vmem:[%s1 + $0xfc] sm:$0xf]
  %v121 = vld [vmem:[%s2] sm:$0x1]
  %v123 = vlaneseq
  %v124 = vshrl.u32 %v123, 7
  %v125 = vsub.s32 0, %v124
  %v126 = vrot.slane %v121, %v125
  %v170 = vunpack.c.l.b16 %v15
  %v171 = vunpack.c.h.b16 %v15
  %v172 = vunpack.c.l.b16 %v16
  %v173 = vunpack.c.h.b16 %v16
  %v174 = vunpack.c.l.b16 %v17
  %v175 = vunpack.c.h.b16 %v17
  %v176 = vunpack.c.l.b16 %v18
  %v177 = vunpack.c.h.b16 %v18
  %v178 = vunpack.c.l.b16 %v19
  %v179 = vunpack.c.h.b16 %v19
  %v180 = vunpack.c.l.b16 %v20
  %v181 = vunpack.c.h.b16 %v20
  %v182 = vunpack.c.l.b16 %v21
  %v183 = vunpack.c.h.b16 %v21
  %v184 = vunpack.c.l.b16 %v22
  %v185 = vunpack.c.h.b16 %v22
  %v186 = vunpack.c.l.b16 %v23
  %v187 = vunpack.c.h.b16 %v23
  %v188 = vunpack.c.l.b16 %v24
  %v189 = vunpack.c.h.b16 %v24
  %v190 = vunpack.c.l.b16 %v25
  %v191 = vunpack.c.h.b16 %v25
  %v192 = vunpack.c.l.b16 %v26
  %v193 = vunpack.c.h.b16 %v26
  %v194 = vunpack.c.l.b16 %v27
  %v195 = vunpack.c.h.b16 %v27
  %v196 = vunpack.c.l.b16 %v28
  %v197 = vunpack.c.h.b16 %v28
  %v198 = vunpack.c.l.b16 %v29
  %v199 = vunpack.c.h.b16 %v29
  %v200 = vunpack.c.l.b16 %v30
  %v201 = vunpack.c.h.b16 %v30
  %v202 = vunpack.c.l.b16 %v31
  %v203 = vunpack.c.h.b16 %v31
  %v204 = vunpack.c.l.b16 %v32
  %v205 = vunpack.c.h.b16 %v32
  %v206 = vunpack.c.l.b16 %v33
  %v207 = vunpack.c.h.b16 %v33
  %v208 = vunpack.c.l.b16 %v34
  %v209 = vunpack.c.h.b16 %v34
  %v210 = vunpack.c.l.b16 %v35
  %v211 = vunpack.c.h.b16 %v35
  %v212 = vunpack.c.l.b16 %v36
  %v213 = vunpack.c.h.b16 %v36
  %v214 = vunpack.c.l.b16 %v37
  %v215 = vunpack.c.h.b16 %v37
  %v216 = vunpack.c.l.b16 %v38
  %v217 = vunpack.c.h.b16 %v38
  %v218 = vunpack.c.l.b16 %v39
  %v219 = vunpack.c.h.b16 %v39
  %v220 = vunpack.c.l.b16 %v40
  %v221 = vunpack.c.h.b16 %v40
  %v222 = vunpack.c.l.b16 %v41
  %v223 = vunpack.c.h.b16 %v41
  %v224 = vunpack.c.l.b16 %v42
  %v225 = vunpack.c.h.b16 %v42
  %v226 = vunpack.c.l.b16 %v43
  %v227 = vunpack.c.h.b16 %v43
  %v228 = vunpack.c.l.b16 %v44
  %v229 = vunpack.c.h.b16 %v44
  %v230 = vunpack.c.l.b16 %v45
  %v231 = vunpack.c.h.b16 %v45
  %v232 = vunpack.c.l.b16 %v46
  %v233 = vunpack.c.h.b16 %v46
  %v234 = vunpack.c.l.b16 %v47
  %v235 = vunpack.c.h.b16 %v47
  %v236 = vunpack.c.l.b16 %v48
  %v237 = vunpack.c.h.b16 %v48
  %v238 = vunpack.c.l.b16 %v49
  %v239 = vunpack.c.h.b16 %v49
  %v240 = vunpack.c.l.b16 %v50
  %v241 = vunpack.c.h.b16 %v50
  %v242 = vunpack.c.l.b16 %v51
  %v243 = vunpack.c.h.b16 %v51
  %v244 = vunpack.c.l.b16 %v52
  %v245 = vunpack.c.h.b16 %v52
  %v246 = vunpack.c.l.b16 %v53
  %v247 = vunpack.c.h.b16 %v53
  %v248 = vunpack.c.l.b16 %v54
  %v249 = vunpack.c.h.b16 %v54
  %v250 = vunpack.c.l.b16 %v55
  %v251 = vunpack.c.h.b16 %v55
  %v252 = vunpack.c.l.b16 %v56
  %v253 = vunpack.c.h.b16 %v56
  %v254 = vpack.c.b16 %v174, %v170
  %v255 = vpack.c.b16 %v175, %v171
  %v256 = vpack.c.b16 %v176, %v172
  %v257 = vpack.c.b16 %v177, %v173
  %v258 = vpack.c.b16 %v182, %v178
  %v259 = vpack.c.b16 %v183, %v179
  %v260 = vpack.c.b16 %v184, %v180
  %v261 = vpack.c.b16 %v185, %v181
  %v262 = vpack.c.b16 %v190, %v186
  %v263 = vpack.c.b16 %v191, %v187
  %v264 = vpack.c.b16 %v192, %v188
  %v265 = vpack.c.b16 %v193, %v189
  %v266 = vpack.c.b16 %v198, %v194
  %v267 = vpack.c.b16 %v199, %v195
  %v268 = vpack.c.b16 %v200, %v196
  %v269 = vpack.c.b16 %v201, %v197
  %v270 = vpack.c.b16 %v206, %v202
  %v271 = vpack.c.b16 %v207, %v203
  %v272 = vpack.c.b16 %v208, %v204
  %v273 = vpack.c.b16 %v209, %v205
  %v274 = vpack.c.b16 %v214, %v210
  %v275 = vpack.c.b16 %v215, %v211
  %v276 = vpack.c.b16 %v216, %v212
  %v277 = vpack.c.b16 %v217, %v213
  %v278 = vpack.c.b16 %v222, %v218
  %v279 = vpack.c.b16 %v223, %v219
  %v280 = vpack.c.b16 %v224, %v220
  %v281 = vpack.c.b16 %v225, %v221
  %v282 = vpack.c.b16 %v230, %v226
  %v283 = vpack.c.b16 %v231, %v227
  %v284 = vpack.c.b16 %v232, %v228
  %v285 = vpack.c.b16 %v233, %v229
  %v286 = vpack.c.b16 %v238, %v234
  %v287 = vpack.c.b16 %v239, %v235
  %v288 = vpack.c.b16 %v240, %v236
  %v289 = vpack.c.b16 %v241, %v237
  %v290 = vpack.c.b16 %v246, %v242
  %v291 = vpack.c.b16 %v247, %v243
  %v292 = vpack.c.b16 %v248, %v244
  %v293 = vpack.c.b16 %v249, %v245
  %v294 = vpack.c.b16 %v250, %v250
  %v295 = vpack.c.b16 %v251, %v251
  %v296 = vpack.c.b16 %v252, %v252
  %v297 = vpack.c.b16 %v253, %v253
  %v406 = vunpack.c.l.b16 %v57
  %v407 = vunpack.c.l.b16 %v58
  %v408 = vunpack.c.l.b16 %v59
  %v409 = vunpack.c.l.b16 %v60
  %v410 = vunpack.c.l.b16 %v61
  %v411 = vunpack.c.l.b16 %v62
  %v412 = vunpack.c.l.b16 %v63
  %v413 = vunpack.c.l.b16 %v64
  %v414 = vunpack.c.l.b16 %v65
  %v415 = vunpack.c.l.b16 %v66
  %v416 = vunpack.c.l.b16 %v67
  %v417 = vunpack.c.l.b16 %v68
  %v418 = vunpack.c.l.b16 %v69
  %v419 = vunpack.c.l.b16 %v70
  %v420 = vunpack.c.l.b16 %v71
  %v421 = vunpack.c.l.b16 %v72
  %v422 = vunpack.c.l.b16 %v73
  %v423 = vunpack.c.l.b16 %v74
  %v424 = vunpack.c.l.b16 %v75
  %v425 = vunpack.c.l.b16 %v76
  %v426 = vunpack.c.l.b16 %v77
  %v427 = vunpack.c.l.b16 %v78
  %v428 = vunpack.c.l.b16 %v79
  %v429 = vunpack.c.l.b16 %v80
  %v430 = vunpack.c.l.b16 %v81
  %v431 = vunpack.c.l.b16 %v82
  %v432 = vunpack.c.l.b16 %v83
  %v433 = vunpack.c.l.b16 %v84
  %v434 = vunpack.c.l.b16 %v85
  %v435 = vunpack.c.l.b16 %v86
  %v436 = vunpack.c.l.b16 %v87
  %v437 = vunpack.c.l.b16 %v88
  %v438 = vunpack.c.l.b16 %v89
  %v439 = vunpack.c.l.b16 %v90
  %v440 = vunpack.c.l.b16 %v91
  %v441 = vunpack.c.l.b16 %v92
  %v442 = vunpack.c.l.b16 %v93
  %v443 = vunpack.c.l.b16 %v94
  %v444 = vunpack.c.l.b16 %v95
  %v445 = vunpack.c.l.b16 %v96
  %v446 = vunpack.c.l.b16 %v97
  %v447 = vunpack.c.l.b16 %v98
  %v448 = vunpack.c.l.b16 %v99
  %v449 = vunpack.c.l.b16 %v100
  %v450 = vunpack.c.l.b16 %v101
  %v451 = vunpack.c.l.b16 %v102
  %v452 = vunpack.c.l.b16 %v103
  %v453 = vunpack.c.l.b16 %v104
  %v454 = vunpack.c.l.b16 %v105
  %v455 = vunpack.c.l.b16 %v106
  %v456 = vunpack.c.l.b16 %v107
  %v457 = vunpack.c.l.b16 %v108
  %v458 = vunpack.c.l.b16 %v109
  %v459 = vunpack.c.l.b16 %v110
  %v460 = vunpack.c.l.b16 %v111
  %v461 = vunpack.c.l.b16 %v112
  %v462 = vunpack.c.l.b16 %v113
  %v463 = vunpack.c.l.b16 %v114
  %v464 = vunpack.c.l.b16 %v115
  %v465 = vunpack.c.l.b16 %v116
  %v466 = vunpack.c.l.b16 %v117
  %v467 = vunpack.c.l.b16 %v118
  %v468 = vunpack.c.l.b16 %v119
  %v469 = vunpack.c.l.b16 %v120
  %v470 = vpack.c.b16 %v407, %v406
  %v471 = vpack.c.b16 %v409, %v408
  %v472 = vpack.c.b16 %v411, %v410
  %v473 = vpack.c.b16 %v413, %v412
  %v474 = vpack.c.b16 %v415, %v414
  %v475 = vpack.c.b16 %v417, %v416
  %v476 = vpack.c.b16 %v419, %v418
  %v477 = vpack.c.b16 %v421, %v420
  %v478 = vpack.c.b16 %v423, %v422
  %v479 = vpack.c.b16 %v425, %v424
  %v480 = vpack.c.b16 %v427, %v426
  %v481 = vpack.c.b16 %v429, %v428
  %v482 = vpack.c.b16 %v431, %v430
  %v483 = vpack.c.b16 %v433, %v432
  %v484 = vpack.c.b16 %v435, %v434
  %v485 = vpack.c.b16 %v437, %v436
  %v486 = vpack.c.b16 %v439, %v438
  %v487 = vpack.c.b16 %v441, %v440
  %v488 = vpack.c.b16 %v443, %v442
  %v489 = vpack.c.b16 %v445, %v444
  %v490 = vpack.c.b16 %v447, %v446
  %v491 = vpack.c.b16 %v449, %v448
  %v492 = vpack.c.b16 %v451, %v450
  %v493 = vpack.c.b16 %v453, %v452
  %v494 = vpack.c.b16 %v455, %v454
  %v495 = vpack.c.b16 %v457, %v456
  %v496 = vpack.c.b16 %v459, %v458
  %v497 = vpack.c.b16 %v461, %v460
  %v498 = vpack.c.b16 %v463, %v462
  %v499 = vpack.c.b16 %v465, %v464
  %v500 = vpack.c.b16 %v467, %v466
  %v501 = vpack.c.b16 %v469, %v468
  %534 = vmatprep.subr.bf16.mxu0 0
  %535 = vmatpush1.bf16.msra.mxu0 %v470
  %536 = vmatprep.subr.bf16.mxu0 0
  %537 = vmatpush1.bf16.msra.mxu0 %v471
  %538 = vmatprep.subr.bf16.mxu0 0
  %539 = vmatpush1.bf16.msra.mxu0 %v472
  %540 = vmatprep.subr.bf16.mxu0 0
  %541 = vmatpush1.bf16.msra.mxu0 %v473
  %542 = vmatprep.subr.bf16.mxu0 0
  %543 = vmatpush1.bf16.msra.mxu0 %v474
  %544 = vmatprep.subr.bf16.mxu0 0
  %545 = vmatpush1.bf16.msra.mxu0 %v475
  %546 = vmatprep.subr.bf16.mxu0 0
  %547 = vmatpush1.bf16.msra.mxu0 %v476
  %548 = vmatprep.subr.bf16.mxu0 0
  %549 = vmatpush1.bf16.msra.mxu0 %v477
  %550 = vmatprep.subr.bf16.mxu0 0
  %551 = vmatpush1.bf16.msra.mxu0 %v478
  %552 = vmatprep.subr.bf16.mxu0 0
  %553 = vmatpush1.bf16.msra.mxu0 %v479
  %554 = vmatprep.subr.bf16.mxu0 0
  %555 = vmatpush1.bf16.msra.mxu0 %v480
  %556 = vmatprep.subr.bf16.mxu0 0
  %557 = vmatpush1.bf16.msra.mxu0 %v481
  %558 = vmatprep.subr.bf16.mxu0 0
  %559 = vmatpush1.bf16.msra.mxu0 %v482
  %560 = vmatprep.subr.bf16.mxu0 0
  %561 = vmatpush1.bf16.msra.mxu0 %v483
  %562 = vmatprep.subr.bf16.mxu0 0
  %563 = vmatpush1.bf16.msra.mxu0 %v484
  %564 = vmatprep.subr.bf16.mxu0 0
  %565 = vmatpush1.bf16.msra.mxu0 %v485
  %566 = vmatprep.mubr.bf16.mxu0 %v255
  %567 = vmatmul.mubr.bf16.gmra.mrb[0].mxu0 %v254
  %v568 = vpop.f32.mrb[0].mxu0
  %v569 = vadd.f32 %v126, %v568
  %v570 = vpop.f32.mrb[0].mxu0
  %v571 = vpop.f32.mrb[0].mxu0
  %v572 = vadd.f32 %v126, %v571
  %v573 = vpop.f32.mrb[0].mxu0
  %574 = vmatprep.mubr.bf16.mxu0 %v259
  %575 = vmatmul.mubr.bf16.gmra.mrb[0].mxu0 %v258
  %v576 = vpop.f32.mrb[0].mxu0
  %v577 = vadd.f32 %v126, %v576
  %v578 = vpop.f32.mrb[0].mxu0
  %v579 = vpop.f32.mrb[0].mxu0
  %v580 = vadd.f32 %v126, %v579
  %v581 = vpop.f32.mrb[0].mxu0
  %582 = vmatprep.mubr.bf16.mxu0 %v263
  %583 = vmatmul.mubr.bf16.gmra.mrb[0].mxu0 %v262
  %v584 = vpop.f32.mrb[0].mxu0
  %v585 = vadd.f32 %v126, %v584
  %v586 = vpop.f32.mrb[0].mxu0
  %v587 = vpop.f32.mrb[0].mxu0
  %v588 = vadd.f32 %v126, %v587
  %v589 = vpop.f32.mrb[0].mxu0
  %590 = vmatprep.mubr.bf16.mxu0 %v267
  %591 = vmatmul.mubr.bf16.gmra.mrb[0].mxu0 %v266
  %v592 = vpop.f32.mrb[0].mxu0
  %v593 = vadd.f32 %v126, %v592
  %v594 = vpop.f32.mrb[0].mxu0
  %v595 = vpop.f32.mrb[0].mxu0
  %v596 = vadd.f32 %v126, %v595
  %v597 = vpop.f32.mrb[0].mxu0
  %598 = vmatprep.mubr.bf16.mxu0 %v271
  %599 = vmatmul.mubr.bf16.gmra.mrb[0].mxu0 %v270
  %v600 = vpop.f32.mrb[0].mxu0
  %v601 = vadd.f32 %v126, %v600
  %v602 = vpop.f32.mrb[0].mxu0
  %v603 = vpop.f32.mrb[0].mxu0
  %v604 = vadd.f32 %v126, %v603
  %v605 = vpop.f32.mrb[0].mxu0
  %606 = vmatprep.mubr.bf16.mxu0 %v275
  %607 = vmatmul.mubr.bf16.gmra.mrb[0].mxu0 %v274
  %v608 = vpop.f32.mrb[0].mxu0
  %v609 = vadd.f32 %v126, %v608
  %v610 = vpop.f32.mrb[0].mxu0
  %v611 = vpop.f32.mrb[0].mxu0
  %v612 = vadd.f32 %v126, %v611
  %v613 = vpop.f32.mrb[0].mxu0
  %614 = vmatprep.mubr.bf16.mxu0 %v279
  %615 = vmatmul.mubr.bf16.gmra.mrb[0].mxu0 %v278
  %v616 = vpop.f32.mrb[0].mxu0
  %v617 = vadd.f32 %v126, %v616
  %v618 = vpop.f32.mrb[0].mxu0
  %v619 = vpop.f32.mrb[0].mxu0
  %v620 = vadd.f32 %v126, %v619
  %v621 = vpop.f32.mrb[0].mxu0
  %622 = vmatprep.mubr.bf16.mxu0 %v283
  %623 = vmatmul.mubr.bf16.gmra.mrb[0].mxu0 %v282
  %v624 = vpop.f32.mrb[0].mxu0
  %v625 = vadd.f32 %v126, %v624
  %v626 = vpop.f32.mrb[0].mxu0
  %v627 = vpop.f32.mrb[0].mxu0
  %v628 = vadd.f32 %v126, %v627
  %v629 = vpop.f32.mrb[0].mxu0
  %630 = vmatprep.mubr.bf16.mxu0 %v287
  %631 = vmatmul.mubr.bf16.gmra.mrb[0].mxu0 %v286
  %v632 = vpop.f32.mrb[0].mxu0
  %v633 = vadd.f32 %v126, %v632
  %v634 = vpop.f32.mrb[0].mxu0
  %v635 = vpop.f32.mrb[0].mxu0
  %v636 = vadd.f32 %v126, %v635
  %v637 = vpop.f32.mrb[0].mxu0
  %638 = vmatprep.mubr.bf16.mxu0 %v291
  %639 = vmatmul.mubr.bf16.gmra.mrb[0].mxu0 %v290
  %v640 = vpop.f32.mrb[0].mxu0
  %v641 = vadd.f32 %v126, %v640
  %v642 = vpop.f32.mrb[0].mxu0
  %v643 = vpop.f32.mrb[0].mxu0
  %v644 = vadd.f32 %v126, %v643
  %v645 = vpop.f32.mrb[0].mxu0
  %646 = vmatprep.mubr.bf16.mxu0 %v295
  %647 = vmatmul.mubr.bf16.gmra.mrb[0].mxu0 %v294
  %v648 = vpop.f32.mrb[0].mxu0
  %v649 = vadd.f32 %v126, %v648
  %v650 = vpop.f32.mrb[0].mxu0
  %v651 = vpop.f32.mrb[0].mxu0
  %v652 = vpop.f32.mrb[0].mxu0
  %653 = vdwg.mxu0
  %654 = vmatprep.subr.bf16.mxu0 0
  %655 = vmatpush1.bf16.msra.mxu0 %v486
  %656 = vmatprep.subr.bf16.mxu0 0
  %657 = vmatpush1.bf16.msra.mxu0 %v487
  %658 = vmatprep.subr.bf16.mxu0 0
  %659 = vmatpush1.bf16.msra.mxu0 %v488
  %660 = vmatprep.subr.bf16.mxu0 0
  %661 = vmatpush1.bf16.msra.mxu0 %v489
  %662 = vmatprep.subr.bf16.mxu0 0
  %663 = vmatpush1.bf16.msra.mxu0 %v490
  %664 = vmatprep.subr.bf16.mxu0 0
  %665 = vmatpush1.bf16.msra.mxu0 %v491
  %666 = vmatprep.subr.bf16.mxu0 0
  %667 = vmatpush1.bf16.msra.mxu0 %v492
  %668 = vmatprep.subr.bf16.mxu0 0
  %669 = vmatpush1.bf16.msra.mxu0 %v493
  %670 = vmatprep.subr.bf16.mxu0 0
  %671 = vmatpush1.bf16.msra.mxu0 %v494
  %672 = vmatprep.subr.bf16.mxu0 0
  %673 = vmatpush1.bf16.msra.mxu0 %v495
  %674 = vmatprep.subr.bf16.mxu0 0
  %675 = vmatpush1.bf16.msra.mxu0 %v496
  %676 = vmatprep.subr.bf16.mxu0 0
  %677 = vmatpush1.bf16.msra.mxu0 %v497
  %678 = vmatprep.subr.bf16.mxu0 0
  %679 = vmatpush1.bf16.msra.mxu0 %v498
  %680 = vmatprep.subr.bf16.mxu0 0
  %681 = vmatpush1.bf16.msra.mxu0 %v499
  %682 = vmatprep.subr.bf16.mxu0 0
  %683 = vmatpush1.bf16.msra.mxu0 %v500
  %684 = vmatprep.subr.bf16.mxu0 0
  %685 = vmatpush1.bf16.msra.mxu0 %v501
  %686 = vmatprep.mubr.bf16.mxu0 %v257
  %687 = vmatmul.mubr.bf16.gmra.mrb[0].mxu0 %v256
  %v688 = vpop.f32.mrb[0].mxu0
  %v689 = vadd.f32 %v569, %v688
  %v690 = vpop.f32.mrb[0].mxu0
  %v691 = vpop.f32.mrb[0].mxu0
  %v692 = vadd.f32 %v572, %v691
  %v693 = vpop.f32.mrb[0].mxu0
  %694 = vmatprep.mubr.bf16.mxu0 %v261
  %695 = vmatmul.mubr.bf16.gmra.mrb[0].mxu0 %v260
  %v696 = vpop.f32.mrb[0].mxu0
  %v697 = vadd.f32 %v577, %v696
  %v698 = vpop.f32.mrb[0].mxu0
  %v699 = vpop.f32.mrb[0].mxu0
  %v700 = vadd.f32 %v580, %v699
  %v701 = vpop.f32.mrb[0].mxu0
  %702 = vmatprep.mubr.bf16.mxu0 %v265
  %703 = vmatmul.mubr.bf16.gmra.mrb[0].mxu0 %v264
  %v704 = vpop.f32.mrb[0].mxu0
  %v705 = vadd.f32 %v585, %v704
  %v706 = vpop.f32.mrb[0].mxu0
  %v707 = vpop.f32.mrb[0].mxu0
  %v708 = vadd.f32 %v588, %v707
  %v709 = vpop.f32.mrb[0].mxu0
  %710 = vmatprep.mubr.bf16.mxu0 %v269
  %711 = vmatmul.mubr.bf16.gmra.mrb[0].mxu0 %v268
  %v712 = vpop.f32.mrb[0].mxu0
  %v713 = vadd.f32 %v593, %v712
  %v714 = vpop.f32.mrb[0].mxu0
  %v715 = vpop.f32.mrb[0].mxu0
  %v716 = vadd.f32 %v596, %v715
  %v717 = vpop.f32.mrb[0].mxu0
  %718 = vmatprep.mubr.bf16.mxu0 %v273
  %719 = vmatmul.mubr.bf16.gmra.mrb[0].mxu0 %v272
  %v720 = vpop.f32.mrb[0].mxu0
  %v721 = vadd.f32 %v601, %v720
  %v722 = vpop.f32.mrb[0].mxu0
  %v723 = vpop.f32.mrb[0].mxu0
  %v724 = vadd.f32 %v604, %v723
  %v725 = vpop.f32.mrb[0].mxu0
  %726 = vmatprep.mubr.bf16.mxu0 %v277
  %727 = vmatmul.mubr.bf16.gmra.mrb[0].mxu0 %v276
  %v728 = vpop.f32.mrb[0].mxu0
  %v729 = vadd.f32 %v609, %v728
  %v730 = vpop.f32.mrb[0].mxu0
  %v731 = vpop.f32.mrb[0].mxu0
  %v732 = vadd.f32 %v612, %v731
  %v733 = vpop.f32.mrb[0].mxu0
  %734 = vmatprep.mubr.bf16.mxu0 %v281
  %735 = vmatmul.mubr.bf16.gmra.mrb[0].mxu0 %v280
  %v736 = vpop.f32.mrb[0].mxu0
  %v737 = vadd.f32 %v617, %v736
  %v738 = vpop.f32.mrb[0].mxu0
  %v739 = vpop.f32.mrb[0].mxu0
  %v740 = vadd.f32 %v620, %v739
  %v741 = vpop.f32.mrb[0].mxu0
  %742 = vmatprep.mubr.bf16.mxu0 %v285
  %743 = vmatmul.mubr.bf16.gmra.mrb[0].mxu0 %v284
  %v744 = vpop.f32.mrb[0].mxu0
  %v745 = vadd.f32 %v625, %v744
  %v746 = vpop.f32.mrb[0].mxu0
  %v747 = vpop.f32.mrb[0].mxu0
  %v748 = vadd.f32 %v628, %v747
  %v749 = vpop.f32.mrb[0].mxu0
  %750 = vmatprep.mubr.bf16.mxu0 %v289
  %751 = vmatmul.mubr.bf16.gmra.mrb[0].mxu0 %v288
  %v752 = vpop.f32.mrb[0].mxu0
  %v753 = vadd.f32 %v633, %v752
  %v754 = vpop.f32.mrb[0].mxu0
  %v755 = vpop.f32.mrb[0].mxu0
  %v756 = vadd.f32 %v636, %v755
  %v757 = vpop.f32.mrb[0].mxu0
  %758 = vmatprep.mubr.bf16.mxu0 %v293
  %759 = vmatmul.mubr.bf16.gmra.mrb[0].mxu0 %v292
  %v760 = vpop.f32.mrb[0].mxu0
  %v761 = vadd.f32 %v641, %v760
  %v762 = vpop.f32.mrb[0].mxu0
  %v763 = vpop.f32.mrb[0].mxu0
  %v764 = vadd.f32 %v644, %v763
  %v765 = vpop.f32.mrb[0].mxu0
  %766 = vmatprep.mubr.bf16.mxu0 %v297
  %767 = vmatmul.mubr.bf16.gmra.mrb[0].mxu0 %v296
  %v768 = vpop.f32.mrb[0].mxu0
  %v769 = vadd.f32 %v649, %v768
  %v770 = vpop.f32.mrb[0].mxu0
  %v771 = vpop.f32.mrb[0].mxu0
  %v772 = vpop.f32.mrb[0].mxu0
  %773 = vdwg.mxu0
  %v774 = vmax.f32 %v689, 0.0
  %v775 = vmax.f32 %v692, 0.0
  %v776 = vmax.f32 %v697, 0.0
  %v777 = vmax.f32 %v700, 0.0
  %v778 = vmax.f32 %v705, 0.0
  %v779 = vmax.f32 %v708, 0.0
  %v780 = vmax.f32 %v713, 0.0
  %v781 = vmax.f32 %v716, 0.0
  %v782 = vmax.f32 %v721, 0.0
  %v783 = vmax.f32 %v724, 0.0
  %v784 = vmax.f32 %v729, 0.0
  %v785 = vmax.f32 %v732, 0.0
  %v786 = vmax.f32 %v737, 0.0
  %v787 = vmax.f32 %v740, 0.0
  %v788 = vmax.f32 %v745, 0.0
  %v789 = vmax.f32 %v748, 0.0
  %v790 = vmax.f32 %v753, 0.0
  %v791 = vmax.f32 %v756, 0.0
  %v792 = vmax.f32 %v761, 0.0
  %v793 = vmax.f32 %v764, 0.0
  %v794 = vmax.f32 %v769, 0.0
  %v795 = vpack.c.bf16 %v775, %v774
  %v796 = vpack.c.bf16 %v777, %v776
  %v797 = vpack.c.bf16 %v779, %v778
  %v798 = vpack.c.bf16 %v781, %v780
  %v799 = vpack.c.bf16 %v783, %v782
  %v800 = vpack.c.bf16 %v785, %v784
  %v801 = vpack.c.bf16 %v787, %v786
  %v802 = vpack.c.bf16 %v789, %v788
  %v803 = vpack.c.bf16 %v791, %v790
  %v804 = vpack.c.bf16 %v793, %v792
  %v805 = vpack.c.bf16 %v794, %v794
  %v817 = vunpack.c.l.b16 %v795
  %v818 = vunpack.c.h.b16 %v795
  %v819 = vunpack.c.l.b16 %v796
  %v820 = vunpack.c.h.b16 %v796
  %v821 = vunpack.c.l.b16 %v797
  %v822 = vunpack.c.h.b16 %v797
  %v823 = vunpack.c.l.b16 %v798
  %v824 = vunpack.c.h.b16 %v798
  %v825 = vunpack.c.l.b16 %v799
  %v826 = vunpack.c.h.b16 %v799
  %v827 = vunpack.c.l.b16 %v800
  %v828 = vunpack.c.h.b16 %v800
  %v829 = vunpack.c.l.b16 %v801
  %v830 = vunpack.c.h.b16 %v801
  %v831 = vunpack.c.l.b16 %v802
  %v832 = vunpack.c.h.b16 %v802
  %v833 = vunpack.c.l.b16 %v803
  %v834 = vunpack.c.h.b16 %v803
  %v835 = vunpack.c.l.b16 %v804
  %v836 = vunpack.c.h.b16 %v804
  %v837 = vunpack.c.l.b16 %v805
  %v838 = vpack.c.b16 %v817, %v817
  %v839 = vpack.c.b16 %v818, %v818
  %v840 = vpack.c.b16 %v819, %v819
  %v841 = vpack.c.b16 %v820, %v820
  %v842 = vpack.c.b16 %v821, %v821
  %v843 = vpack.c.b16 %v822, %v822
  %v844 = vpack.c.b16 %v823, %v823
  %v845 = vpack.c.b16 %v824, %v824
  %v846 = vpack.c.b16 %v825, %v825
  %v847 = vpack.c.b16 %v826, %v826
  %v848 = vpack.c.b16 %v827, %v827
  %v849 = vpack.c.b16 %v828, %v828
  %v850 = vpack.c.b16 %v829, %v829
  %v851 = vpack.c.b16 %v830, %v830
  %v852 = vpack.c.b16 %v831, %v831
  %v853 = vpack.c.b16 %v832, %v832
  %v854 = vpack.c.b16 %v833, %v833
  %v855 = vpack.c.b16 %v834, %v834
  %v856 = vpack.c.b16 %v835, %v835
  %v857 = vpack.c.b16 %v836, %v836
  %v858 = vpack.c.b16 %v837, %v837
  %vm880 = vcmask 519168
  %881 = vst.msk [vmem:[%s3] sm:$0xf] %vm880, %v838
  %882 = vst.msk [vmem:[%s3 + $0x4] sm:$0xf] %vm880, %v839
  %883 = vst.msk [vmem:[%s3 + $0x8] sm:$0xf] %vm880, %v840
  %884 = vst.msk [vmem:[%s3 + $0xc] sm:$0xf] %vm880, %v841
  %885 = vst.msk [vmem:[%s3 + $0x10] sm:$0xf] %vm880, %v842
  %886 = vst.msk [vmem:[%s3 + $0x14] sm:$0xf] %vm880, %v843
  %887 = vst.msk [vmem:[%s3 + $0x18] sm:$0xf] %vm880, %v844
  %888 = vst.msk [vmem:[%s3 + $0x1c] sm:$0xf] %vm880, %v845
  %889 = vst.msk [vmem:[%s3 + $0x20] sm:$0xf] %vm880, %v846
  %890 = vst.msk [vmem:[%s3 + $0x24] sm:$0xf] %vm880, %v847
  %891 = vst.msk [vmem:[%s3 + $0x28] sm:$0xf] %vm880, %v848
  %892 = vst.msk [vmem:[%s3 + $0x2c] sm:$0xf] %vm880, %v849
  %893 = vst.msk [vmem:[%s3 + $0x30] sm:$0xf] %vm880, %v850
  %894 = vst.msk [vmem:[%s3 + $0x34] sm:$0xf] %vm880, %v851
  %895 = vst.msk [vmem:[%s3 + $0x38] sm:$0xf] %vm880, %v852
  %896 = vst.msk [vmem:[%s3 + $0x3c] sm:$0xf] %vm880, %v853
  %897 = vst.msk [vmem:[%s3 + $0x40] sm:$0xf] %vm880, %v854
  %898 = vst.msk [vmem:[%s3 + $0x44] sm:$0xf] %vm880, %v855
  %899 = vst.msk [vmem:[%s3 + $0x48] sm:$0xf] %vm880, %v856
  %900 = vst.msk [vmem:[%s3 + $0x4c] sm:$0xf] %vm880, %v857
  %901 = vst.msk [vmem:[%s3 + $0x50] sm:$0xf] %vm880, %v858
  // Predicated region
  $region14: #{actgen_forward.5} parent=0 // pred_check
    _
  $region15: #{actgen_forward.5} parent=0 // pred_check_branch
    %903 = sbr.rel (0) target = $region17
  $region16: #{actgen_forward.5} parent=0 // pred_region
    _
  $region17: #{actgen_forward.5} parent=0 // pred_fallthru
    _
  // Predicated region
  $region18: #{actgen_forward.5} parent=0 // pred_check
    _
  $region19: #{actgen_forward.5} parent=0 // pred_check_branch
    %905 = sbr.rel (0) target = $region21
  $region20: #{actgen_forward.5} parent=0 // pred_region
    _
  $region21: #{actgen_forward.5} parent=0 // pred_fallthru
    _

// kernel: actgen_forward.6
$region0: #{actgen_forward.6}
  #allocation0 [shape = 'u32[]', space=smem, size = 0x4, offset = 0x4, fixed_abs, tag = 'smem constant byte address 0x4 - core index']
  #allocation1 [shape = 'u32[144,128]{1,0:T(1,128)}', space=vmem, size = 0x12000, scoped, tag = 'internal scratch']
  %s0 = inlined_call_operand.vmem [shape: bf16[104,640], index: 0, kind: input, shape index: {}]
  %s1 = inlined_call_operand.vmem [shape: bf16[640,32], index: 1, kind: input, shape index: {}]
  %s2 = inlined_call_operand.vmem [shape: f32[1,32], index: 2, kind: input, shape index: {}]
  %s3 = inlined_call_operand.vmem [shape: bf16[104,32], index: 3, kind: output, shape index: {}]
  %s4 = sld [smem:[#allocation0]]
  $region22: #{actgen_forward.6} parent=0
    _
  %s6 = ssub.s32 1, %s4
  %s7 = scalar_select 0, %s6, %s4
  // Predicated region
  $region2: #{actgen_forward.6} parent=0 // pred_check
    _
  $region3: #{actgen_forward.6} parent=0 // pred_check_branch
    %9 = sbr.rel (0) target = $region5
  $region4: #{actgen_forward.6} parent=0 // pred_region
    _
  $region5: #{actgen_forward.6} parent=0 // pred_fallthru
    _
  // Predicated region
  $region6: #{actgen_forward.6} parent=0 // pred_check
    _
  $region7: #{actgen_forward.6} parent=0 // pred_check_branch
    %11 = sbr.rel (0) target = $region9
  $region8: #{actgen_forward.6} parent=0 // pred_region
    _
  $region9: #{actgen_forward.6} parent=0 // pred_fallthru
    _
  // Predicated region
  $region10: #{actgen_forward.6} parent=0 // pred_check
    _
  $region11: #{actgen_forward.6} parent=0 // pred_check_branch
    %13 = sbr.rel (0) target = $region13
  $region12: #{actgen_forward.6} parent=0 // pred_region
    _
  $region13: #{actgen_forward.6} parent=0 // pred_fallthru
    _
  %v15 = vld [vmem:[%s0] sm:$0xff]
  %v16 = vld [vmem:[%s0 + $0x8] sm:$0xff]
  %v17 = vld [vmem:[%s0 + $0x10] sm:$0xf]
  %v18 = vld [vmem:[%s0 + $0x14] sm:$0xff]
  %v19 = vld [vmem:[%s0 + $0x1c] sm:$0xff]
  %v20 = vld [vmem:[%s0 + $0x24] sm:$0xf]
  %v21 = vld [vmem:[%s0 + $0x28] sm:$0xff]
  %v22 = vld [vmem:[%s0 + $0x30] sm:$0xff]
  %v23 = vld [vmem:[%s0 + $0x38] sm:$0xf]
  %v24 = vld [vmem:[%s0 + $0x3c] sm:$0xff]
  %v25 = vld [vmem:[%s0 + $0x44] sm:$0xff]
  %v26 = vld [vmem:[%s0 + $0x4c] sm:$0xf]
  %v27 = vld [vmem:[%s0 + $0x50] sm:$0xff]
  %v28 = vld [vmem:[%s0 + $0x58] sm:$0xff]
  %v29 = vld [vmem:[%s0 + $0x60] sm:$0xf]
  %v30 = vld [vmem:[%s0 + $0x64] sm:$0xff]
  %v31 = vld [vmem:[%s0 + $0x6c] sm:$0xff]
  %v32 = vld [vmem:[%s0 + $0x74] sm:$0xf]
  %v33 = vld [vmem:[%s0 + $0x78] sm:$0xff]
  %v34 = vld [vmem:[%s0 + $0x80] sm:$0xff]
  %v35 = vld [vmem:[%s0 + $0x88] sm:$0xf]
  %v36 = vld [vmem:[%s0 + $0x8c] sm:$0xff]
  %v37 = vld [vmem:[%s0 + $0x94] sm:$0xff]
  %v38 = vld [vmem:[%s0 + $0x9c] sm:$0xf]
  %v39 = vld [vmem:[%s0 + $0xa0] sm:$0xff]
  %v40 = vld [vmem:[%s0 + $0xa8] sm:$0xff]
  %v41 = vld [vmem:[%s0 + $0xb0] sm:$0xf]
  %v42 = vld [vmem:[%s0 + $0xb4] sm:$0xff]
  %v43 = vld [vmem:[%s0 + $0xbc] sm:$0xff]
  %v44 = vld [vmem:[%s0 + $0xc4] sm:$0xf]
  %v45 = vld [vmem:[%s0 + $0xc8] sm:$0xff]
  %v46 = vld [vmem:[%s0 + $0xd0] sm:$0xff]
  %v47 = vld [vmem:[%s0 + $0xd8] sm:$0xf]
  %v48 = vld [vmem:[%s0 + $0xdc] sm:$0xff]
  %v49 = vld [vmem:[%s0 + $0xe4] sm:$0xff]
  %v50 = vld [vmem:[%s0 + $0xec] sm:$0xf]
  %v51 = vld [vmem:[%s0 + $0xf0] sm:$0xff]
  %v52 = vld [vmem:[%s0 + $0xf8] sm:$0xff]
  %v53 = vld [vmem:[%s0 + $0x100] sm:$0xf]
  %v54 = vld [vmem:[%s1] sm:$0xf]
  %v55 = vld [vmem:[%s1 + $0x4] sm:$0xf]
  %v56 = vld [vmem:[%s1 + $0x8] sm:$0xf]
  %v57 = vld [vmem:[%s1 + $0xc] sm:$0xf]
  %v58 = vld [vmem:[%s1 + $0x10] sm:$0xf]
  %v59 = vld [vmem:[%s1 + $0x14] sm:$0xf]
  %v60 = vld [vmem:[%s1 + $0x18] sm:$0xf]
  %v61 = vld [vmem:[%s1 + $0x1c] sm:$0xf]
  %v62 = vld [vmem:[%s1 + $0x20] sm:$0xf]
  %v63 = vld [vmem:[%s1 + $0x24] sm:$0xf]
  %v64 = vld [vmem:[%s1 + $0x28] sm:$0xf]
  %v65 = vld [vmem:[%s1 + $0x2c] sm:$0xf]
  %v66 = vld [vmem:[%s1 + $0x30] sm:$0xf]
  %v67 = vld [vmem:[%s1 + $0x34] sm:$0xf]
  %v68 = vld [vmem:[%s1 + $0x38] sm:$0xf]
  %v69 = vld [vmem:[%s1 + $0x3c] sm:$0xf]
  %v70 = vld [vmem:[%s1 + $0x40] sm:$0xf]
  %v71 = vld [vmem:[%s1 + $0x44] sm:$0xf]
  %v72 = vld [vmem:[%s1 + $0x48] sm:$0xf]
  %v73 = vld [vmem:[%s1 + $0x4c] sm:$0xf]
  %v74 = vld [vmem:[%s1 + $0x50] sm:$0xf]
  %v75 = vld [vmem:[%s1 + $0x54] sm:$0xf]
  %v76 = vld [vmem:[%s1 + $0x58] sm:$0xf]
  %v77 = vld [vmem:[%s1 + $0x5c] sm:$0xf]
  %v78 = vld [vmem:[%s1 + $0x60] sm:$0xf]
  %v79 = vld [vmem:[%s1 + $0x64] sm:$0xf]
  %v80 = vld [vmem:[%s1 + $0x68] sm:$0xf]
  %v81 = vld [vmem:[%s1 + $0x6c] sm:$0xf]
  %v82 = vld [vmem:[%s1 + $0x70] sm:$0xf]
  %v83 = vld [vmem:[%s1 + $0x74] sm:$0xf]
  %v84 = vld [vmem:[%s1 + $0x78] sm:$0xf]
  %v85 = vld [vmem:[%s1 + $0x7c] sm:$0xf]
  %v86 = vld [vmem:[%s1 + $0x80] sm:$0xf]
  %v87 = vld [vmem:[%s1 + $0x84] sm:$0xf]
  %v88 = vld [vmem:[%s1 + $0x88] sm:$0xf]
  %v89 = vld [vmem:[%s1 + $0x8c] sm:$0xf]
  %v90 = vld [vmem:[%s1 + $0x90] sm:$0xf]
  %v91 = vld [vmem:[%s1 + $0x94] sm:$0xf]
  %v92 = vld [vmem:[%s1 + $0x98] sm:$0xf]
  %v93 = vld [vmem:[%s1 + $0x9c] sm:$0xf]
  %v94 = vld [vmem:[%s1 + $0xa0] sm:$0xf]
  %v95 = vld [vmem:[%s1 + $0xa4] sm:$0xf]
  %v96 = vld [vmem:[%s1 + $0xa8] sm:$0xf]
  %v97 = vld [vmem:[%s1 + $0xac] sm:$0xf]
  %v98 = vld [vmem:[%s1 + $0xb0] sm:$0xf]
  %v99 = vld [vmem:[%s1 + $0xb4] sm:$0xf]
  %v100 = vld [vmem:[%s1 + $0xb8] sm:$0xf]
  %v101 = vld [vmem:[%s1 + $0xbc] sm:$0xf]
  %v102 = vld [vmem:[%s1 + $0xc0] sm:$0xf]
  %v103 = vld [vmem:[%s1 + $0xc4] sm:$0xf]
  %v104 = vld [vmem:[%s1 + $0xc8] sm:$0xf]
  %v105 = vld [vmem:[%s1 + $0xcc] sm:$0xf]
  %v106 = vld [vmem:[%s1 + $0xd0] sm:$0xf]
  %v107 = vld [vmem:[%s1 + $0xd4] sm:$0xf]
  %v108 = vld [vmem:[%s1 + $0xd8] sm:$0xf]
  %v109 = vld [vmem:[%s1 + $0xdc] sm:$0xf]
  %v110 = vld [vmem:[%s1 + $0xe0] sm:$0xf]
  %v111 = vld [vmem:[%s1 + $0xe4] sm:$0xf]
  %v112 = vld [vmem:[%s1 + $0xe8] sm:$0xf]
  %v113 = vld [vmem:[%s1 + $0xec] sm:$0xf]
  %v114 = vld [vmem:[%s1 + $0xf0] sm:$0xf]
  %v115 = vld [vmem:[%s1 + $0xf4] sm:$0xf]
  %v116 = vld [vmem:[%s1 + $0xf8] sm:$0xf]
  %v117 = vld [vmem:[%s1 + $0xfc] sm:$0xf]
  %v118 = vld [vmem:[%s1 + $0x100] sm:$0xf]
  %v119 = vld [vmem:[%s1 + $0x104] sm:$0xf]
  %v120 = vld [vmem:[%s1 + $0x108] sm:$0xf]
  %v121 = vld [vmem:[%s1 + $0x10c] sm:$0xf]
  %v122 = vld [vmem:[%s1 + $0x110] sm:$0xf]
  %v123 = vld [vmem:[%s1 + $0x114] sm:$0xf]
  %v124 = vld [vmem:[%s1 + $0x118] sm:$0xf]
  %v125 = vld [vmem:[%s1 + $0x11c] sm:$0xf]
  %v126 = vld [vmem:[%s1 + $0x120] sm:$0xf]
  %v127 = vld [vmem:[%s1 + $0x124] sm:$0xf]
  %v128 = vld [vmem:[%s1 + $0x128] sm:$0xf]
  %v129 = vld [vmem:[%s1 + $0x12c] sm:$0xf]
  %v130 = vld [vmem:[%s1 + $0x130] sm:$0xf]
  %v131 = vld [vmem:[%s1 + $0x134] sm:$0xf]
  %v132 = vld [vmem:[%s1 + $0x138] sm:$0xf]
  %v133 = vld [vmem:[%s1 + $0x13c] sm:$0xf]
  %v134 = vld [vmem:[%s2] sm:$0x1]
  %v136 = vlaneseq
  %v137 = vshrl.u32 %v136, 7
  %v138 = vsub.s32 0, %v137
  %v139 = vrot.slane %v134, %v138
  %v180 = vunpack.c.l.b16 %v15
  %v181 = vunpack.c.h.b16 %v15
  %v182 = vunpack.c.l.b16 %v16
  %v183 = vunpack.c.h.b16 %v16
  %v184 = vunpack.c.l.b16 %v17
  %v185 = vunpack.c.l.b16 %v18
  %v186 = vunpack.c.h.b16 %v18
  %v187 = vunpack.c.l.b16 %v19
  %v188 = vunpack.c.h.b16 %v19
  %v189 = vunpack.c.l.b16 %v20
  %v190 = vunpack.c.l.b16 %v21
  %v191 = vunpack.c.h.b16 %v21
  %v192 = vunpack.c.l.b16 %v22
  %v193 = vunpack.c.h.b16 %v22
  %v194 = vunpack.c.l.b16 %v23
  %v195 = vunpack.c.l.b16 %v24
  %v196 = vunpack.c.h.b16 %v24
  %v197 = vunpack.c.l.b16 %v25
  %v198 = vunpack.c.h.b16 %v25
  %v199 = vunpack.c.l.b16 %v26
  %v200 = vunpack.c.l.b16 %v27
  %v201 = vunpack.c.h.b16 %v27
  %v202 = vunpack.c.l.b16 %v28
  %v203 = vunpack.c.h.b16 %v28
  %v204 = vunpack.c.l.b16 %v29
  %v205 = vunpack.c.l.b16 %v30
  %v206 = vunpack.c.h.b16 %v30
  %v207 = vunpack.c.l.b16 %v31
  %v208 = vunpack.c.h.b16 %v31
  %v209 = vunpack.c.l.b16 %v32
  %v210 = vunpack.c.l.b16 %v33
  %v211 = vunpack.c.h.b16 %v33
  %v212 = vunpack.c.l.b16 %v34
  %v213 = vunpack.c.h.b16 %v34
  %v214 = vunpack.c.l.b16 %v35
  %v215 = vunpack.c.l.b16 %v36
  %v216 = vunpack.c.h.b16 %v36
  %v217 = vunpack.c.l.b16 %v37
  %v218 = vunpack.c.h.b16 %v37
  %v219 = vunpack.c.l.b16 %v38
  %v220 = vunpack.c.l.b16 %v39
  %v221 = vunpack.c.h.b16 %v39
  %v222 = vunpack.c.l.b16 %v40
  %v223 = vunpack.c.h.b16 %v40
  %v224 = vunpack.c.l.b16 %v41
  %v225 = vunpack.c.l.b16 %v42
  %v226 = vunpack.c.h.b16 %v42
  %v227 = vunpack.c.l.b16 %v43
  %v228 = vunpack.c.h.b16 %v43
  %v229 = vunpack.c.l.b16 %v44
  %v230 = vunpack.c.l.b16 %v45
  %v231 = vunpack.c.h.b16 %v45
  %v232 = vunpack.c.l.b16 %v46
  %v233 = vunpack.c.h.b16 %v46
  %v234 = vunpack.c.l.b16 %v47
  %v235 = vunpack.c.l.b16 %v48
  %v236 = vunpack.c.h.b16 %v48
  %v237 = vunpack.c.l.b16 %v49
  %v238 = vunpack.c.h.b16 %v49
  %v239 = vunpack.c.l.b16 %v50
  %v240 = vunpack.c.l.b16 %v51
  %v241 = vunpack.c.h.b16 %v51
  %v242 = vunpack.c.l.b16 %v52
  %v243 = vunpack.c.h.b16 %v52
  %v244 = vunpack.c.l.b16 %v53
  %v245 = vpack.c.b16 %v185, %v180
  %v246 = vpack.c.b16 %v186, %v181
  %v247 = vpack.c.b16 %v187, %v182
  %v248 = vpack.c.b16 %v188, %v183
  %v249 = vpack.c.b16 %v189, %v184
  %v250 = vpack.c.b16 %v195, %v190
  %v251 = vpack.c.b16 %v196, %v191
  %v252 = vpack.c.b16 %v197, %v192
  %v253 = vpack.c.b16 %v198, %v193
  %v254 = vpack.c.b16 %v199, %v194
  %v255 = vpack.c.b16 %v205, %v200
  %v256 = vpack.c.b16 %v206, %v201
  %v257 = vpack.c.b16 %v207, %v202
  %v258 = vpack.c.b16 %v208, %v203
  %v259 = vpack.c.b16 %v209, %v204
  %v260 = vpack.c.b16 %v215, %v210
  %v261 = vpack.c.b16 %v216, %v211
  %v262 = vpack.c.b16 %v217, %v212
  %v263 = vpack.c.b16 %v218, %v213
  %v264 = vpack.c.b16 %v219, %v214
  %v265 = vpack.c.b16 %v225, %v220
  %v266 = vpack.c.b16 %v226, %v221
  %v267 = vpack.c.b16 %v227, %v222
  %v268 = vpack.c.b16 %v228, %v223
  %v269 = vpack.c.b16 %v229, %v224
  %v270 = vpack.c.b16 %v235, %v230
  %v271 = vpack.c.b16 %v236, %v231
  %v272 = vpack.c.b16 %v237, %v232
  %v273 = vpack.c.b16 %v238, %v233
  %v274 = vpack.c.b16 %v239, %v234
  %v275 = vpack.c.b16 %v240, %v240
  %v276 = vpack.c.b16 %v241, %v241
  %v277 = vpack.c.b16 %v242, %v242
  %v278 = vpack.c.b16 %v243, %v243
  %v279 = vpack.c.b16 %v244, %v244
  %v395 = vunpack.c.l.b16 %v54
  %v396 = vunpack.c.l.b16 %v55
  %v397 = vunpack.c.l.b16 %v56
  %v398 = vunpack.c.l.b16 %v57
  %v399 = vunpack.c.l.b16 %v58
  %v400 = vunpack.c.l.b16 %v59
  %v401 = vunpack.c.l.b16 %v60
  %v402 = vunpack.c.l.b16 %v61
  %v403 = vunpack.c.l.b16 %v62
  %v404 = vunpack.c.l.b16 %v63
  %v405 = vunpack.c.l.b16 %v64
  %v406 = vunpack.c.l.b16 %v65
  %v407 = vunpack.c.l.b16 %v66
  %v408 = vunpack.c.l.b16 %v67
  %v409 = vunpack.c.l.b16 %v68
  %v410 = vunpack.c.l.b16 %v69
  %v411 = vunpack.c.l.b16 %v70
  %v412 = vunpack.c.l.b16 %v71
  %v413 = vunpack.c.l.b16 %v72
  %v414 = vunpack.c.l.b16 %v73
  %v415 = vunpack.c.l.b16 %v74
  %v416 = vunpack.c.l.b16 %v75
  %v417 = vunpack.c.l.b16 %v76
  %v418 = vunpack.c.l.b16 %v77
  %v419 = vunpack.c.l.b16 %v78
  %v420 = vunpack.c.l.b16 %v79
  %v421 = vunpack.c.l.b16 %v80
  %v422 = vunpack.c.l.b16 %v81
  %v423 = vunpack.c.l.b16 %v82
  %v424 = vunpack.c.l.b16 %v83
  %v425 = vunpack.c.l.b16 %v84
  %v426 = vunpack.c.l.b16 %v85
  %v427 = vunpack.c.l.b16 %v86
  %v428 = vunpack.c.l.b16 %v87
  %v429 = vunpack.c.l.b16 %v88
  %v430 = vunpack.c.l.b16 %v89
  %v431 = vunpack.c.l.b16 %v90
  %v432 = vunpack.c.l.b16 %v91
  %v433 = vunpack.c.l.b16 %v92
  %v434 = vunpack.c.l.b16 %v93
  %v435 = vunpack.c.l.b16 %v94
  %v436 = vunpack.c.l.b16 %v95
  %v437 = vunpack.c.l.b16 %v96
  %v438 = vunpack.c.l.b16 %v97
  %v439 = vunpack.c.l.b16 %v98
  %v440 = vunpack.c.l.b16 %v99
  %v441 = vunpack.c.l.b16 %v100
  %v442 = vunpack.c.l.b16 %v101
  %v443 = vunpack.c.l.b16 %v102
  %v444 = vunpack.c.l.b16 %v103
  %v445 = vunpack.c.l.b16 %v104
  %v446 = vunpack.c.l.b16 %v105
  %v447 = vunpack.c.l.b16 %v106
  %v448 = vunpack.c.l.b16 %v107
  %v449 = vunpack.c.l.b16 %v108
  %v450 = vunpack.c.l.b16 %v109
  %v451 = vunpack.c.l.b16 %v110
  %v452 = vunpack.c.l.b16 %v111
  %v453 = vunpack.c.l.b16 %v112
  %v454 = vunpack.c.l.b16 %v113
  %v455 = vunpack.c.l.b16 %v114
  %v456 = vunpack.c.l.b16 %v115
  %v457 = vunpack.c.l.b16 %v116
  %v458 = vunpack.c.l.b16 %v117
  %v459 = vunpack.c.l.b16 %v118
  %v460 = vunpack.c.l.b16 %v119
  %v461 = vunpack.c.l.b16 %v120
  %v462 = vunpack.c.l.b16 %v121
  %v463 = vunpack.c.l.b16 %v122
  %v464 = vunpack.c.l.b16 %v123
  %v465 = vunpack.c.l.b16 %v124
  %v466 = vunpack.c.l.b16 %v125
  %v467 = vunpack.c.l.b16 %v126
  %v468 = vunpack.c.l.b16 %v127
  %v469 = vunpack.c.l.b16 %v128
  %v470 = vunpack.c.l.b16 %v129
  %v471 = vunpack.c.l.b16 %v130
  %v472 = vunpack.c.l.b16 %v131
  %v473 = vunpack.c.l.b16 %v132
  %v474 = vunpack.c.l.b16 %v133
  %v475 = vpack.c.b16 %v396, %v395
  %v476 = vpack.c.b16 %v398, %v397
  %v477 = vpack.c.b16 %v400, %v399
  %v478 = vpack.c.b16 %v402, %v401
  %v479 = vpack.c.b16 %v404, %v403
  %v480 = vpack.c.b16 %v406, %v405
  %v481 = vpack.c.b16 %v408, %v407
  %v482 = vpack.c.b16 %v410, %v409
  %v483 = vpack.c.b16 %v412, %v411
  %v484 = vpack.c.b16 %v414, %v413
  %v485 = vpack.c.b16 %v416, %v415
  %v486 = vpack.c.b16 %v418, %v417
  %v487 = vpack.c.b16 %v420, %v419
  %v488 = vpack.c.b16 %v422, %v421
  %v489 = vpack.c.b16 %v424, %v423
  %v490 = vpack.c.b16 %v426, %v425
  %v491 = vpack.c.b16 %v428, %v427
  %v492 = vpack.c.b16 %v430, %v429
  %v493 = vpack.c.b16 %v432, %v431
  %v494 = vpack.c.b16 %v434, %v433
  %v495 = vpack.c.b16 %v436, %v435
  %v496 = vpack.c.b16 %v438, %v437
  %v497 = vpack.c.b16 %v440, %v439
  %v498 = vpack.c.b16 %v442, %v441
  %v499 = vpack.c.b16 %v444, %v443
  %v500 = vpack.c.b16 %v446, %v445
  %v501 = vpack.c.b16 %v448, %v447
  %v502 = vpack.c.b16 %v450, %v449
  %v503 = vpack.c.b16 %v452, %v451
  %v504 = vpack.c.b16 %v454, %v453
  %v505 = vpack.c.b16 %v456, %v455
  %v506 = vpack.c.b16 %v458, %v457
  %v507 = vpack.c.b16 %v460, %v459
  %v508 = vpack.c.b16 %v462, %v461
  %v509 = vpack.c.b16 %v464, %v463
  %v510 = vpack.c.b16 %v466, %v465
  %v511 = vpack.c.b16 %v468, %v467
  %v512 = vpack.c.b16 %v470, %v469
  %v513 = vpack.c.b16 %v472, %v471
  %v514 = vpack.c.b16 %v474, %v473
  %555 = vmatprep.subr.bf16.mxu0 0
  %556 = vmatpush1.bf16.msra.mxu0 %v475
  %557 = vmatprep.subr.bf16.mxu0 0
  %558 = vmatpush1.bf16.msra.mxu0 %v476
  %559 = vmatprep.subr.bf16.mxu0 0
  %560 = vmatpush1.bf16.msra.mxu0 %v477
  %561 = vmatprep.subr.bf16.mxu0 0
  %562 = vmatpush1.bf16.msra.mxu0 %v478
  %563 = vmatprep.subr.bf16.mxu0 0
  %564 = vmatpush1.bf16.msra.mxu0 %v479
  %565 = vmatprep.subr.bf16.mxu0 0
  %566 = vmatpush1.bf16.msra.mxu0 %v480
  %567 = vmatprep.subr.bf16.mxu0 0
  %568 = vmatpush1.bf16.msra.mxu0 %v481
  %569 = vmatprep.subr.bf16.mxu0 0
  %570 = vmatpush1.bf16.msra.mxu0 %v482
  %571 = vmatprep.subr.bf16.mxu0 0
  %572 = vmatpush1.bf16.msra.mxu0 %v483
  %573 = vmatprep.subr.bf16.mxu0 0
  %574 = vmatpush1.bf16.msra.mxu0 %v484
  %575 = vmatprep.subr.bf16.mxu0 0
  %576 = vmatpush1.bf16.msra.mxu0 %v485
  %577 = vmatprep.subr.bf16.mxu0 0
  %578 = vmatpush1.bf16.msra.mxu0 %v486
  %579 = vmatprep.subr.bf16.mxu0 0
  %580 = vmatpush1.bf16.msra.mxu0 %v487
  %581 = vmatprep.subr.bf16.mxu0 0
  %582 = vmatpush1.bf16.msra.mxu0 %v488
  %583 = vmatprep.subr.bf16.mxu0 0
  %584 = vmatpush1.bf16.msra.mxu0 %v489
  %585 = vmatprep.subr.bf16.mxu0 0
  %586 = vmatpush1.bf16.msra.mxu0 %v490
  %587 = vmatprep.mubr.bf16.mxu0 %v246
  %588 = vmatmul.mubr.bf16.gmra.mrb[0].mxu0 %v245
  %v589 = vpop.f32.mrb[0].mxu0
  %v590 = vadd.f32 %v139, %v589
  %v591 = vpop.f32.mrb[0].mxu0
  %v592 = vpop.f32.mrb[0].mxu0
  %v593 = vadd.f32 %v139, %v592
  %v594 = vpop.f32.mrb[0].mxu0
  %595 = vmatprep.mubr.bf16.mxu0 %v251
  %596 = vmatmul.mubr.bf16.gmra.mrb[0].mxu0 %v250
  %v597 = vpop.f32.mrb[0].mxu0
  %v598 = vadd.f32 %v139, %v597
  %v599 = vpop.f32.mrb[0].mxu0
  %v600 = vpop.f32.mrb[0].mxu0
  %v601 = vadd.f32 %v139, %v600
  %v602 = vpop.f32.mrb[0].mxu0
  %603 = vmatprep.mubr.bf16.mxu0 %v256
  %604 = vmatmul.mubr.bf16.gmra.mrb[0].mxu0 %v255
  %v605 = vpop.f32.mrb[0].mxu0
  %v606 = vadd.f32 %v139, %v605
  %v607 = vpop.f32.mrb[0].mxu0
  %v608 = vpop.f32.mrb[0].mxu0
  %v609 = vadd.f32 %v139, %v608
  %v610 = vpop.f32.mrb[0].mxu0
  %611 = vmatprep.mubr.bf16.mxu0 %v261
  %612 = vmatmul.mubr.bf16.gmra.mrb[0].mxu0 %v260
  %v613 = vpop.f32.mrb[0].mxu0
  %v614 = vadd.f32 %v139, %v613
  %v615 = vpop.f32.mrb[0].mxu0
  %v616 = vpop.f32.mrb[0].mxu0
  %v617 = vadd.f32 %v139, %v616
  %v618 = vpop.f32.mrb[0].mxu0
  %619 = vmatprep.mubr.bf16.mxu0 %v266
  %620 = vmatmul.mubr.bf16.gmra.mrb[0].mxu0 %v265
  %v621 = vpop.f32.mrb[0].mxu0
  %v622 = vadd.f32 %v139, %v621
  %v623 = vpop.f32.mrb[0].mxu0
  %v624 = vpop.f32.mrb[0].mxu0
  %v625 = vadd.f32 %v139, %v624
  %v626 = vpop.f32.mrb[0].mxu0
  %627 = vmatprep.mubr.bf16.mxu0 %v271
  %628 = vmatmul.mubr.bf16.gmra.mrb[0].mxu0 %v270
  %v629 = vpop.f32.mrb[0].mxu0
  %v630 = vadd.f32 %v139, %v629
  %v631 = vpop.f32.mrb[0].mxu0
  %v632 = vpop.f32.mrb[0].mxu0
  %v633 = vadd.f32 %v139, %v632
  %v634 = vpop.f32.mrb[0].mxu0
  %635 = vmatprep.mubr.bf16.mxu0 %v276
  %636 = vmatmul.mubr.bf16.gmra.mrb[0].mxu0 %v275
  %v637 = vpop.f32.mrb[0].mxu0
  %v638 = vadd.f32 %v139, %v637
  %v639 = vpop.f32.mrb[0].mxu0
  %v640 = vpop.f32.mrb[0].mxu0
  %v641 = vpop.f32.mrb[0].mxu0
  %642 = vdwg.mxu0
  %643 = vmatprep.subr.bf16.mxu0 0
  %644 = vmatpush1.bf16.msra.mxu0 %v491
  %645 = vmatprep.subr.bf16.mxu0 0
  %646 = vmatpush1.bf16.msra.mxu0 %v492
  %647 = vmatprep.subr.bf16.mxu0 0
  %648 = vmatpush1.bf16.msra.mxu0 %v493
  %649 = vmatprep.subr.bf16.mxu0 0
  %650 = vmatpush1.bf16.msra.mxu0 %v494
  %651 = vmatprep.subr.bf16.mxu0 0
  %652 = vmatpush1.bf16.msra.mxu0 %v495
  %653 = vmatprep.subr.bf16.mxu0 0
  %654 = vmatpush1.bf16.msra.mxu0 %v496
  %655 = vmatprep.subr.bf16.mxu0 0
  %656 = vmatpush1.bf16.msra.mxu0 %v497
  %657 = vmatprep.subr.bf16.mxu0 0
  %658 = vmatpush1.bf16.msra.mxu0 %v498
  %659 = vmatprep.subr.bf16.mxu0 0
  %660 = vmatpush1.bf16.msra.mxu0 %v499
  %661 = vmatprep.subr.bf16.mxu0 0
  %662 = vmatpush1.bf16.msra.mxu0 %v500
  %663 = vmatprep.subr.bf16.mxu0 0
  %664 = vmatpush1.bf16.msra.mxu0 %v501
  %665 = vmatprep.subr.bf16.mxu0 0
  %666 = vmatpush1.bf16.msra.mxu0 %v502
  %667 = vmatprep.subr.bf16.mxu0 0
  %668 = vmatpush1.bf16.msra.mxu0 %v503
  %669 = vmatprep.subr.bf16.mxu0 0
  %670 = vmatpush1.bf16.msra.mxu0 %v504
  %671 = vmatprep.subr.bf16.mxu0 0
  %672 = vmatpush1.bf16.msra.mxu0 %v505
  %673 = vmatprep.subr.bf16.mxu0 0
  %674 = vmatpush1.bf16.msra.mxu0 %v506
  %675 = vmatprep.mubr.bf16.mxu0 %v248
  %676 = vmatmul.mubr.bf16.gmra.mrb[0].mxu0 %v247
  %v677 = vpop.f32.mrb[0].mxu0
  %v678 = vadd.f32 %v590, %v677
  %v679 = vpop.f32.mrb[0].mxu0
  %v680 = vpop.f32.mrb[0].mxu0
  %v681 = vadd.f32 %v593, %v680
  %v682 = vpop.f32.mrb[0].mxu0
  %683 = vmatprep.mubr.bf16.mxu0 %v253
  %684 = vmatmul.mubr.bf16.gmra.mrb[0].mxu0 %v252
  %v685 = vpop.f32.mrb[0].mxu0
  %v686 = vadd.f32 %v598, %v685
  %v687 = vpop.f32.mrb[0].mxu0
  %v688 = vpop.f32.mrb[0].mxu0
  %v689 = vadd.f32 %v601, %v688
  %v690 = vpop.f32.mrb[0].mxu0
  %691 = vmatprep.mubr.bf16.mxu0 %v258
  %692 = vmatmul.mubr.bf16.gmra.mrb[0].mxu0 %v257
  %v693 = vpop.f32.mrb[0].mxu0
  %v694 = vadd.f32 %v606, %v693
  %v695 = vpop.f32.mrb[0].mxu0
  %v696 = vpop.f32.mrb[0].mxu0
  %v697 = vadd.f32 %v609, %v696
  %v698 = vpop.f32.mrb[0].mxu0
  %699 = vmatprep.mubr.bf16.mxu0 %v263
  %700 = vmatmul.mubr.bf16.gmra.mrb[0].mxu0 %v262
  %v701 = vpop.f32.mrb[0].mxu0
  %v702 = vadd.f32 %v614, %v701
  %v703 = vpop.f32.mrb[0].mxu0
  %v704 = vpop.f32.mrb[0].mxu0
  %v705 = vadd.f32 %v617, %v704
  %v706 = vpop.f32.mrb[0].mxu0
  %707 = vmatprep.mubr.bf16.mxu0 %v268
  %708 = vmatmul.mubr.bf16.gmra.mrb[0].mxu0 %v267
  %v709 = vpop.f32.mrb[0].mxu0
  %v710 = vadd.f32 %v622, %v709
  %v711 = vpop.f32.mrb[0].mxu0
  %v712 = vpop.f32.mrb[0].mxu0
  %v713 = vadd.f32 %v625, %v712
  %v714 = vpop.f32.mrb[0].mxu0
  %715 = vmatprep.mubr.bf16.mxu0 %v273
  %716 = vmatmul.mubr.bf16.gmra.mrb[0].mxu0 %v272
  %v717 = vpop.f32.mrb[0].mxu0
  %v718 = vadd.f32 %v630, %v717
  %v719 = vpop.f32.mrb[0].mxu0
  %v720 = vpop.f32.mrb[0].mxu0
  %v721 = vadd.f32 %v633, %v720
  %v722 = vpop.f32.mrb[0].mxu0
  %723 = vmatprep.mubr.bf16.mxu0 %v278
  %724 = vmatmul.mubr.bf16.gmra.mrb[0].mxu0 %v277
  %v725 = vpop.f32.mrb[0].mxu0
  %v726 = vadd.f32 %v638, %v725
  %v727 = vpop.f32.mrb[0].mxu0
  %v728 = vpop.f32.mrb[0].mxu0
  %v729 = vpop.f32.mrb[0].mxu0
  %730 = vdwg.mxu0
  %731 = vmatprep.subr.bf16.mxu0 0
  %732 = vmatpush1.bf16.msra.mxu0 %v507
  %733 = vmatprep.subr.bf16.mxu0 0
  %734 = vmatpush1.bf16.msra.mxu0 %v508
  %735 = vmatprep.subr.bf16.mxu0 0
  %736 = vmatpush1.bf16.msra.mxu0 %v509
  %737 = vmatprep.subr.bf16.mxu0 0
  %738 = vmatpush1.bf16.msra.mxu0 %v510
  %739 = vmatprep.subr.bf16.mxu0 0
  %740 = vmatpush1.bf16.msra.mxu0 %v511
  %741 = vmatprep.subr.bf16.mxu0 0
  %742 = vmatpush1.bf16.msra.mxu0 %v512
  %743 = vmatprep.subr.bf16.mxu0 0
  %744 = vmatpush1.bf16.msra.mxu0 %v513
  %745 = vmatprep.subr.bf16.mxu0 0
  %746 = vmatpush1.bf16.msra.mxu0 %v514
  %747 = vmatprep.subr.bf16.mxu0 0
  %748 = vmatpush1.bf16.msra.mxu0 0
  %749 = vmatprep.subr.bf16.mxu0 0
  %750 = vmatpush1.bf16.msra.mxu0 0
  %751 = vmatprep.subr.bf16.mxu0 0
  %752 = vmatpush1.bf16.msra.mxu0 0
  %753 = vmatprep.subr.bf16.mxu0 0
  %754 = vmatpush1.bf16.msra.mxu0 0
  %755 = vmatprep.subr.bf16.mxu0 0
  %756 = vmatpush1.bf16.msra.mxu0 0
  %757 = vmatprep.subr.bf16.mxu0 0
  %758 = vmatpush1.bf16.msra.mxu0 0
  %759 = vmatprep.subr.bf16.mxu0 0
  %760 = vmatpush1.bf16.msra.mxu0 0
  %761 = vmatprep.subr.bf16.mxu0 0
  %762 = vmatpush1.bf16.msra.mxu0 0
  %763 = vmatprep.mubr.bf16.mxu0 0
  %764 = vmatmul.mubr.bf16.gmra.mrb[0].mxu0 %v249
  %v765 = vpop.f32.mrb[0].mxu0
  %v766 = vadd.f32 %v678, %v765
  %v767 = vpop.f32.mrb[0].mxu0
  %v768 = vpop.f32.mrb[0].mxu0
  %v769 = vadd.f32 %v681, %v768
  %v770 = vpop.f32.mrb[0].mxu0
  %771 = vmatprep.mubr.bf16.mxu0 0
  %772 = vmatmul.mubr.bf16.gmra.mrb[0].mxu0 %v254
  %v773 = vpop.f32.mrb[0].mxu0
  %v774 = vadd.f32 %v686, %v773
  %v775 = vpop.f32.mrb[0].mxu0
  %v776 = vpop.f32.mrb[0].mxu0
  %v777 = vadd.f32 %v689, %v776
  %v778 = vpop.f32.mrb[0].mxu0
  %779 = vmatprep.mubr.bf16.mxu0 0
  %780 = vmatmul.mubr.bf16.gmra.mrb[0].mxu0 %v259
  %v781 = vpop.f32.mrb[0].mxu0
  %v782 = vadd.f32 %v694, %v781
  %v783 = vpop.f32.mrb[0].mxu0
  %v784 = vpop.f32.mrb[0].mxu0
  %v785 = vadd.f32 %v697, %v784
  %v786 = vpop.f32.mrb[0].mxu0
  %787 = vmatprep.mubr.bf16.mxu0 0
  %788 = vmatmul.mubr.bf16.gmra.mrb[0].mxu0 %v264
  %v789 = vpop.f32.mrb[0].mxu0
  %v790 = vadd.f32 %v702, %v789
  %v791 = vpop.f32.mrb[0].mxu0
  %v792 = vpop.f32.mrb[0].mxu0
  %v793 = vadd.f32 %v705, %v792
  %v794 = vpop.f32.mrb[0].mxu0
  %795 = vmatprep.mubr.bf16.mxu0 0
  %796 = vmatmul.mubr.bf16.gmra.mrb[0].mxu0 %v269
  %v797 = vpop.f32.mrb[0].mxu0
  %v798 = vadd.f32 %v710, %v797
  %v799 = vpop.f32.mrb[0].mxu0
  %v800 = vpop.f32.mrb[0].mxu0
  %v801 = vadd.f32 %v713, %v800
  %v802 = vpop.f32.mrb[0].mxu0
  %803 = vmatprep.mubr.bf16.mxu0 0
  %804 = vmatmul.mubr.bf16.gmra.mrb[0].mxu0 %v274
  %v805 = vpop.f32.mrb[0].mxu0
  %v806 = vadd.f32 %v718, %v805
  %v807 = vpop.f32.mrb[0].mxu0
  %v808 = vpop.f32.mrb[0].mxu0
  %v809 = vadd.f32 %v721, %v808
  %v810 = vpop.f32.mrb[0].mxu0
  %811 = vmatprep.mubr.bf16.mxu0 0
  %812 = vmatmul.mubr.bf16.gmra.mrb[0].mxu0 %v279
  %v813 = vpop.f32.mrb[0].mxu0
  %v814 = vadd.f32 %v726, %v813
  %v815 = vpop.f32.mrb[0].mxu0
  %v816 = vpop.f32.mrb[0].mxu0
  %v817 = vpop.f32.mrb[0].mxu0
  %818 = vdwg.mxu0
  %v819 = vmax.f32 %v766, 0.0
  %v820 = vmax.f32 %v769, 0.0
  %v821 = vmax.f32 %v774, 0.0
  %v822 = vmax.f32 %v777, 0.0
  %v823 = vmax.f32 %v782, 0.0
  %v824 = vmax.f32 %v785, 0.0
  %v825 = vmax.f32 %v790, 0.0
  %v826 = vmax.f32 %v793, 0.0
  %v827 = vmax.f32 %v798, 0.0
  %v828 = vmax.f32 %v801, 0.0
  %v829 = vmax.f32 %v806, 0.0
  %v830 = vmax.f32 %v809, 0.0
  %v831 = vmax.f32 %v814, 0.0
  %v832 = vpack.c.bf16 %v820, %v819
  %v833 = vpack.c.bf16 %v822, %v821
  %v834 = vpack.c.bf16 %v824, %v823
  %v835 = vpack.c.bf16 %v826, %v825
  %v836 = vpack.c.bf16 %v828, %v827
  %v837 = vpack.c.bf16 %v830, %v829
  %v838 = vpack.c.bf16 %v831, %v831
  %v846 = vunpack.c.l.b16 %v832
  %v847 = vunpack.c.h.b16 %v832
  %v848 = vunpack.c.l.b16 %v833
  %v849 = vunpack.c.h.b16 %v833
  %v850 = vunpack.c.l.b16 %v834
  %v851 = vunpack.c.h.b16 %v834
  %v852 = vunpack.c.l.b16 %v835
  %v853 = vunpack.c.h.b16 %v835
  %v854 = vunpack.c.l.b16 %v836
  %v855 = vunpack.c.h.b16 %v836
  %v856 = vunpack.c.l.b16 %v837
  %v857 = vunpack.c.h.b16 %v837
  %v858 = vunpack.c.l.b16 %v838
  %v859 = vpack.c.b16 %v846, %v846
  %v860 = vpack.c.b16 %v847, %v847
  %v861 = vpack.c.b16 %v848, %v848
  %v862 = vpack.c.b16 %v849, %v849
  %v863 = vpack.c.b16 %v850, %v850
  %v864 = vpack.c.b16 %v851, %v851
  %v865 = vpack.c.b16 %v852, %v852
  %v866 = vpack.c.b16 %v853, %v853
  %v867 = vpack.c.b16 %v854, %v854
  %v868 = vpack.c.b16 %v855, %v855
  %v869 = vpack.c.b16 %v856, %v856
  %v870 = vpack.c.b16 %v857, %v857
  %v871 = vpack.c.b16 %v858, %v858
  %vm885 = vcmask 257024
  %886 = vst.msk [vmem:[%s3] sm:$0xf] %vm885, %v859
  %887 = vst.msk [vmem:[%s3 + $0x4] sm:$0xf] %vm885, %v860
  %888 = vst.msk [vmem:[%s3 + $0x8] sm:$0xf] %vm885, %v861
  %889 = vst.msk [vmem:[%s3 + $0xc] sm:$0xf] %vm885, %v862
  %890 = vst.msk [vmem:[%s3 + $0x10] sm:$0xf] %vm885, %v863
  %891 = vst.msk [vmem:[%s3 + $0x14] sm:$0xf] %vm885, %v864
  %892 = vst.msk [vmem:[%s3 + $0x18] sm:$0xf] %vm885, %v865
  %893 = vst.msk [vmem:[%s3 + $0x1c] sm:$0xf] %vm885, %v866
  %894 = vst.msk [vmem:[%s3 + $0x20] sm:$0xf] %vm885, %v867
  %895 = vst.msk [vmem:[%s3 + $0x24] sm:$0xf] %vm885, %v868
  %896 = vst.msk [vmem:[%s3 + $0x28] sm:$0xf] %vm885, %v869
  %897 = vst.msk [vmem:[%s3 + $0x2c] sm:$0xf] %vm885, %v870
  %898 = vst.msk [vmem:[%s3 + $0x30] sm:$0xf] %vm885, %v871
  // Predicated region
  $region14: #{actgen_forward.6} parent=0 // pred_check
    _
  $region15: #{actgen_forward.6} parent=0 // pred_check_branch
    %900 = sbr.rel (0) target = $region17
  $region16: #{actgen_forward.6} parent=0 // pred_region
    _
  $region17: #{actgen_forward.6} parent=0 // pred_fallthru
    _
  // Predicated region
  $region18: #{actgen_forward.6} parent=0 // pred_check
    _
  $region19: #{actgen_forward.6} parent=0 // pred_check_branch
    %902 = sbr.rel (0) target = $region21
  $region20: #{actgen_forward.6} parent=0 // pred_region
    _
  $region21: #{actgen_forward.6} parent=0 // pred_fallthru
    _

// kernel: actgen_forward.7
$region0: #{actgen_forward.7}
  #allocation0 [shape = 'u32[]', space=smem, size = 0x4, offset = 0x4, fixed_abs, tag = 'smem constant byte address 0x4 - core index']
  #allocation1 [shape = 'u32[144,128]{1,0:T(1,128)}', space=vmem, size = 0x12000, scoped, tag = 'internal scratch']
  %s0 = inlined_call_operand.vmem [shape: bf16[8,1568], index: 0, kind: input, shape index: {}]
  %s1 = inlined_call_operand.vmem [shape: bf16[1568,512], index: 1, kind: input, shape index: {}]
  %s2 = inlined_call_operand.vmem [shape: f32[1,512], index: 2, kind: input, shape index: {}]
  %s3 = inlined_call_operand.vmem [shape: bf16[512,128], index: 3, kind: input, shape index: {}]
  %s4 = inlined_call_operand.vmem [shape: f32[1,128], index: 4, kind: input, shape index: {}]
  %s5 = inlined_call_operand.vmem [shape: f32[8,128], index: 5, kind: output, shape index: {}]
  %s6 = sld [smem:[#allocation0]]
  $region30: #{actgen_forward.7} parent=0
    _
  %s8 = ssub.s32 1, %s6
  %s9 = scalar_select 0, %s8, %s6
  // Predicated region
  $region2: #{actgen_forward.7} parent=0 // pred_check
    _
  $region3: #{actgen_forward.7} parent=0 // pred_check_branch
    %11 = sbr.rel (0) target = $region5
  $region4: #{actgen_forward.7} parent=0 // pred_region
    _
  $region5: #{actgen_forward.7} parent=0 // pred_fallthru
    _
  // Predicated region
  $region6: #{actgen_forward.7} parent=0 // pred_check
    _
  $region7: #{actgen_forward.7} parent=0 // pred_check_branch
    %13 = sbr.rel (0) target = $region9
  $region8: #{actgen_forward.7} parent=0 // pred_region
    _
  $region9: #{actgen_forward.7} parent=0 // pred_fallthru
    _
  // Predicated region
  $region10: #{actgen_forward.7} parent=0 // pred_check
    _
  $region11: #{actgen_forward.7} parent=0 // pred_check_branch
    %15 = sbr.rel (0) target = $region13
  $region12: #{actgen_forward.7} parent=0 // pred_region
    _
  $region13: #{actgen_forward.7} parent=0 // pred_fallthru
    _
  // Predicated region
  $region14: #{actgen_forward.7} parent=0 // pred_check
    _
  $region15: #{actgen_forward.7} parent=0 // pred_check_branch
    %17 = sbr.rel (0) target = $region17
  $region16: #{actgen_forward.7} parent=0 // pred_region
    _
  $region17: #{actgen_forward.7} parent=0 // pred_fallthru
    _
  // Predicated region
  $region18: #{actgen_forward.7} parent=0 // pred_check
    _
  $region19: #{actgen_forward.7} parent=0 // pred_check_branch
    %19 = sbr.rel (0) target = $region21
  $region20: #{actgen_forward.7} parent=0 // pred_region
    _
  $region21: #{actgen_forward.7} parent=0 // pred_fallthru
    _
  %v21 = vld [vmem:[%s0] sm:$0xff]
  %v22 = vld [vmem:[%s0 + $0x8] sm:$0xff]
  %v23 = vld [vmem:[%s0 + $0x10] sm:$0xff]
  %v24 = vld [vmem:[%s0 + $0x18] sm:$0xff]
  %v25 = vld [vmem:[%s0 + $0x20] sm:$0xff]
  %v26 = vld [vmem:[%s0 + $0x28] sm:$0xff]
  %v27 = vld [vmem:[%s0 + $0x30] sm:$0xf]
  %v28 = vld [vmem:[%s1] sm:$0xff]
  %v29 = vld [vmem:[%s1 + $0x8] sm:$0xff]
  %v30 = vld [vmem:[%s1 + $0x10] sm:$0xff]
  %v31 = vld [vmem:[%s1 + $0x18] sm:$0xff]
  %v32 = vld [vmem:[%s1 + $0x20] sm:$0xff]
  %v33 = vld [vmem:[%s1 + $0x28] sm:$0xff]
  %v34 = vld [vmem:[%s1 + $0x30] sm:$0xff]
  %v35 = vld [vmem:[%s1 + $0x38] sm:$0xff]
  %v36 = vld [vmem:[%s1 + $0x40] sm:$0xff]
  %v37 = vld [vmem:[%s1 + $0x48] sm:$0xff]
  %v38 = vld [vmem:[%s1 + $0x50] sm:$0xff]
  %v39 = vld [vmem:[%s1 + $0x58] sm:$0xff]
  %v40 = vld [vmem:[%s1 + $0x60] sm:$0xff]
  %v41 = vld [vmem:[%s1 + $0x68] sm:$0xff]
  %v42 = vld [vmem:[%s1 + $0x70] sm:$0xff]
  %v43 = vld [vmem:[%s1 + $0x78] sm:$0xff]
  %v44 = vld [vmem:[%s1 + $0x80] sm:$0xff]
  %v45 = vld [vmem:[%s1 + $0x88] sm:$0xff]
  %v46 = vld [vmem:[%s1 + $0x90] sm:$0xff]
  %v47 = vld [vmem:[%s1 + $0x98] sm:$0xff]
  %v48 = vld [vmem:[%s1 + $0xa0] sm:$0xff]
  %v49 = vld [vmem:[%s1 + $0xa8] sm:$0xff]
  %v50 = vld [vmem:[%s1 + $0xb0] sm:$0xff]
  %v51 = vld [vmem:[%s1 + $0xb8] sm:$0xff]
  %v52 = vld [vmem:[%s1 + $0xc0] sm:$0xff]
  %v53 = vld [vmem:[%s1 + $0xc8] sm:$0xff]
  %v54 = vld [vmem:[%s1 + $0xd0] sm:$0xff]
  %v55 = vld [vmem:[%s1 + $0xd8] sm:$0xff]
  %v56 = vld [vmem:[%s1 + $0xe0] sm:$0xff]
  %v57 = vld [vmem:[%s1 + $0xe8] sm:$0xff]
  %v58 = vld [vmem:[%s1 + $0xf0] sm:$0xff]
  %v59 = vld [vmem:[%s1 + $0xf8] sm:$0xff]
  %v60 = vld [vmem:[%s1 + $0x100] sm:$0xff]
  %v61 = vld [vmem:[%s1 + $0x108] sm:$0xff]
  %v62 = vld [vmem:[%s1 + $0x110] sm:$0xff]
  %v63 = vld [vmem:[%s1 + $0x118] sm:$0xff]
  %v64 = vld [vmem:[%s1 + $0x120] sm:$0xff]
  %v65 = vld [vmem:[%s1 + $0x128] sm:$0xff]
  %v66 = vld [vmem:[%s1 + $0x130] sm:$0xff]
  %v67 = vld [vmem:[%s1 + $0x138] sm:$0xff]
  %v68 = vld [vmem:[%s1 + $0x140] sm:$0xff]
  %v69 = vld [vmem:[%s1 + $0x148] sm:$0xff]
  %v70 = vld [vmem:[%s1 + $0x150] sm:$0xff]
  %v71 = vld [vmem:[%s1 + $0x158] sm:$0xff]
  %v72 = vld [vmem:[%s1 + $0x160] sm:$0xff]
  %v73 = vld [vmem:[%s1 + $0x168] sm:$0xff]
  %v74 = vld [vmem:[%s1 + $0x170] sm:$0xff]
  %v75 = vld [vmem:[%s1 + $0x178] sm:$0xff]
  %v76 = vld [vmem:[%s1 + $0x180] sm:$0xff]
  %v77 = vld [vmem:[%s1 + $0x188] sm:$0xff]
  %v78 = vld [vmem:[%s1 + $0x190] sm:$0xff]
  %v79 = vld [vmem:[%s1 + $0x198] sm:$0xff]
  %v80 = vld [vmem:[%s1 + $0x1a0] sm:$0xff]
  %v81 = vld [vmem:[%s1 + $0x1a8] sm:$0xff]
  %v82 = vld [vmem:[%s1 + $0x1b0] sm:$0xff]
  %v83 = vld [vmem:[%s1 + $0x1b8] sm:$0xff]
  %v84 = vld [vmem:[%s1 + $0x1c0] sm:$0xff]
  %v85 = vld [vmem:[%s1 + $0x1c8] sm:$0xff]
  %v86 = vld [vmem:[%s1 + $0x1d0] sm:$0xff]
  %v87 = vld [vmem:[%s1 + $0x1d8] sm:$0xff]
  %v88 = vld [vmem:[%s1 + $0x1e0] sm:$0xff]
  %v89 = vld [vmem:[%s1 + $0x1e8] sm:$0xff]
  %v90 = vld [vmem:[%s1 + $0x1f0] sm:$0xff]
  %v91 = vld [vmem:[%s1 + $0x1f8] sm:$0xff]
  %v92 = vld [vmem:[%s1 + $0x200] sm:$0xff]
  %v93 = vld [vmem:[%s1 + $0x208] sm:$0xff]
  %v94 = vld [vmem:[%s1 + $0x210] sm:$0xff]
  %v95 = vld [vmem:[%s1 + $0x218] sm:$0xff]
  %v96 = vld [vmem:[%s1 + $0x220] sm:$0xff]
  %v97 = vld [vmem:[%s1 + $0x228] sm:$0xff]
  %v98 = vld [vmem:[%s1 + $0x230] sm:$0xff]
  %v99 = vld [vmem:[%s1 + $0x238] sm:$0xff]
  %v100 = vld [vmem:[%s1 + $0x240] sm:$0xff]
  %v101 = vld [vmem:[%s1 + $0x248] sm:$0xff]
  %v102 = vld [vmem:[%s1 + $0x250] sm:$0xff]
  %v103 = vld [vmem:[%s1 + $0x258] sm:$0xff]
  %v104 = vld [vmem:[%s1 + $0x260] sm:$0xff]
  %v105 = vld [vmem:[%s1 + $0x268] sm:$0xff]
  %v106 = vld [vmem:[%s1 + $0x270] sm:$0xff]
  %v107 = vld [vmem:[%s1 + $0x278] sm:$0xff]
  %v108 = vld [vmem:[%s1 + $0x280] sm:$0xff]
  %v109 = vld [vmem:[%s1 + $0x288] sm:$0xff]
  %v110 = vld [vmem:[%s1 + $0x290] sm:$0xff]
  %v111 = vld [vmem:[%s1 + $0x298] sm:$0xff]
  %v112 = vld [vmem:[%s1 + $0x2a0] sm:$0xff]
  %v113 = vld [vmem:[%s1 + $0x2a8] sm:$0xff]
  %v114 = vld [vmem:[%s1 + $0x2b0] sm:$0xff]
  %v115 = vld [vmem:[%s1 + $0x2b8] sm:$0xff]
  %v116 = vld [vmem:[%s1 + $0x2c0] sm:$0xff]
  %v117 = vld [vmem:[%s1 + $0x2c8] sm:$0xff]
  %v118 = vld [vmem:[%s1 + $0x2d0] sm:$0xff]
  %v119 = vld [vmem:[%s1 + $0x2d8] sm:$0xff]
  %v120 = vld [vmem:[%s1 + $0x2e0] sm:$0xff]
  %v121 = vld [vmem:[%s1 + $0x2e8] sm:$0xff]
  %v122 = vld [vmem:[%s1 + $0x2f0] sm:$0xff]
  %v123 = vld [vmem:[%s1 + $0x2f8] sm:$0xff]
  %v124 = vld [vmem:[%s1 + $0x300] sm:$0xff]
  %v125 = vld [vmem:[%s1 + $0x308] sm:$0xff]
  %v126 = vld [vmem:[%s1 + $0x310] sm:$0xff]
  %v127 = vld [vmem:[%s1 + $0x318] sm:$0xff]
  %v128 = vld [vmem:[%s1 + $0x320] sm:$0xff]
  %v129 = vld [vmem:[%s1 + $0x328] sm:$0xff]
  %v130 = vld [vmem:[%s1 + $0x330] sm:$0xff]
  %v131 = vld [vmem:[%s1 + $0x338] sm:$0xff]
  %v132 = vld [vmem:[%s1 + $0x340] sm:$0xff]
  %v133 = vld [vmem:[%s1 + $0x348] sm:$0xff]
  %v134 = vld [vmem:[%s1 + $0x350] sm:$0xff]
  %v135 = vld [vmem:[%s1 + $0x358] sm:$0xff]
  %v136 = vld [vmem:[%s1 + $0x360] sm:$0xff]
  %v137 = vld [vmem:[%s1 + $0x368] sm:$0xff]
  %v138 = vld [vmem:[%s1 + $0x370] sm:$0xff]
  %v139 = vld [vmem:[%s1 + $0x378] sm:$0xff]
  %v140 = vld [vmem:[%s1 + $0x380] sm:$0xff]
  %v141 = vld [vmem:[%s1 + $0x388] sm:$0xff]
  %v142 = vld [vmem:[%s1 + $0x390] sm:$0xff]
  %v143 = vld [vmem:[%s1 + $0x398] sm:$0xff]
  %v144 = vld [vmem:[%s1 + $0x3a0] sm:$0xff]
  %v145 = vld [vmem:[%s1 + $0x3a8] sm:$0xff]
  %v146 = vld [vmem:[%s1 + $0x3b0] sm:$0xff]
  %v147 = vld [vmem:[%s1 + $0x3b8] sm:$0xff]
  %v148 = vld [vmem:[%s1 + $0x3c0] sm:$0xff]
  %v149 = vld [vmem:[%s1 + $0x3c8] sm:$0xff]
  %v150 = vld [vmem:[%s1 + $0x3d0] sm:$0xff]
  %v151 = vld [vmem:[%s1 + $0x3d8] sm:$0xff]
  %v152 = vld [vmem:[%s1 + $0x3e0] sm:$0xff]
  %v153 = vld [vmem:[%s1 + $0x3e8] sm:$0xff]
  %v154 = vld [vmem:[%s1 + $0x3f0] sm:$0xff]
  %v155 = vld [vmem:[%s1 + $0x3f8] sm:$0xff]
  %v156 = vld [vmem:[%s1 + $0x400] sm:$0xff]
  %v157 = vld [vmem:[%s1 + $0x408] sm:$0xff]
  %v158 = vld [vmem:[%s1 + $0x410] sm:$0xff]
  %v159 = vld [vmem:[%s1 + $0x418] sm:$0xff]
  %v160 = vld [vmem:[%s1 + $0x420] sm:$0xff]
  %v161 = vld [vmem:[%s1 + $0x428] sm:$0xff]
  %v162 = vld [vmem:[%s1 + $0x430] sm:$0xff]
  %v163 = vld [vmem:[%s1 + $0x438] sm:$0xff]
  %v164 = vld [vmem:[%s1 + $0x440] sm:$0xff]
  %v165 = vld [vmem:[%s1 + $0x448] sm:$0xff]
  %v166 = vld [vmem:[%s1 + $0x450] sm:$0xff]
  %v167 = vld [vmem:[%s1 + $0x458] sm:$0xff]
  %v168 = vld [vmem:[%s1 + $0x460] sm:$0xff]
  %v169 = vld [vmem:[%s1 + $0x468] sm:$0xff]
  %v170 = vld [vmem:[%s1 + $0x470] sm:$0xff]
  %v171 = vld [vmem:[%s1 + $0x478] sm:$0xff]
  %v172 = vld [vmem:[%s1 + $0x480] sm:$0xff]
  %v173 = vld [vmem:[%s1 + $0x488] sm:$0xff]
  %v174 = vld [vmem:[%s1 + $0x490] sm:$0xff]
  %v175 = vld [vmem:[%s1 + $0x498] sm:$0xff]
  %v176 = vld [vmem:[%s1 + $0x4a0] sm:$0xff]
  %v177 = vld [vmem:[%s1 + $0x4a8] sm:$0xff]
  %v178 = vld [vmem:[%s1 + $0x4b0] sm:$0xff]
  %v179 = vld [vmem:[%s1 + $0x4b8] sm:$0xff]
  %v180 = vld [vmem:[%s1 + $0x4c0] sm:$0xff]
  %v181 = vld [vmem:[%s1 + $0x4c8] sm:$0xff]
  %v182 = vld [vmem:[%s1 + $0x4d0] sm:$0xff]
  %v183 = vld [vmem:[%s1 + $0x4d8] sm:$0xff]
  %v184 = vld [vmem:[%s1 + $0x4e0] sm:$0xff]
  %v185 = vld [vmem:[%s1 + $0x4e8] sm:$0xff]
  %v186 = vld [vmem:[%s1 + $0x4f0] sm:$0xff]
  %v187 = vld [vmem:[%s1 + $0x4f8] sm:$0xff]
  %v188 = vld [vmem:[%s1 + $0x500] sm:$0xff]
  %v189 = vld [vmem:[%s1 + $0x508] sm:$0xff]
  %v190 = vld [vmem:[%s1 + $0x510] sm:$0xff]
  %v191 = vld [vmem:[%s1 + $0x518] sm:$0xff]
  %v192 = vld [vmem:[%s1 + $0x520] sm:$0xff]
  %v193 = vld [vmem:[%s1 + $0x528] sm:$0xff]
  %v194 = vld [vmem:[%s1 + $0x530] sm:$0xff]
  %v195 = vld [vmem:[%s1 + $0x538] sm:$0xff]
  %v196 = vld [vmem:[%s1 + $0x540] sm:$0xff]
  %v197 = vld [vmem:[%s1 + $0x548] sm:$0xff]
  %v198 = vld [vmem:[%s1 + $0x550] sm:$0xff]
  %v199 = vld [vmem:[%s1 + $0x558] sm:$0xff]
  %v200 = vld [vmem:[%s1 + $0x560] sm:$0xff]
  %v201 = vld [vmem:[%s1 + $0x568] sm:$0xff]
  %v202 = vld [vmem:[%s1 + $0x570] sm:$0xff]
  %v203 = vld [vmem:[%s1 + $0x578] sm:$0xff]
  %v204 = vld [vmem:[%s1 + $0x580] sm:$0xff]
  %v205 = vld [vmem:[%s1 + $0x588] sm:$0xff]
  %v206 = vld [vmem:[%s1 + $0x590] sm:$0xff]
  %v207 = vld [vmem:[%s1 + $0x598] sm:$0xff]
  %v208 = vld [vmem:[%s1 + $0x5a0] sm:$0xff]
  %v209 = vld [vmem:[%s1 + $0x5a8] sm:$0xff]
  %v210 = vld [vmem:[%s1 + $0x5b0] sm:$0xff]
  %v211 = vld [vmem:[%s1 + $0x5b8] sm:$0xff]
  %v212 = vld [vmem:[%s1 + $0x5c0] sm:$0xff]
  %v213 = vld [vmem:[%s1 + $0x5c8] sm:$0xff]
  %v214 = vld [vmem:[%s1 + $0x5d0] sm:$0xff]
  %v215 = vld [vmem:[%s1 + $0x5d8] sm:$0xff]
  %v216 = vld [vmem:[%s1 + $0x5e0] sm:$0xff]
  %v217 = vld [vmem:[%s1 + $0x5e8] sm:$0xff]
  %v218 = vld [vmem:[%s1 + $0x5f0] sm:$0xff]
  %v219 = vld [vmem:[%s1 + $0x5f8] sm:$0xff]
  %v220 = vld [vmem:[%s1 + $0x600] sm:$0xff]
  %v221 = vld [vmem:[%s1 + $0x608] sm:$0xff]
  %v222 = vld [vmem:[%s1 + $0x610] sm:$0xff]
  %v223 = vld [vmem:[%s1 + $0x618] sm:$0xff]
  %v224 = vld [vmem:[%s1 + $0x620] sm:$0xff]
  %v225 = vld [vmem:[%s1 + $0x628] sm:$0xff]
  %v226 = vld [vmem:[%s1 + $0x630] sm:$0xff]
  %v227 = vld [vmem:[%s1 + $0x638] sm:$0xff]
  %v228 = vld [vmem:[%s1 + $0x640] sm:$0xff]
  %v229 = vld [vmem:[%s1 + $0x648] sm:$0xff]
  %v230 = vld [vmem:[%s1 + $0x650] sm:$0xff]
  %v231 = vld [vmem:[%s1 + $0x658] sm:$0xff]
  %v232 = vld [vmem:[%s1 + $0x660] sm:$0xff]
  %v233 = vld [vmem:[%s1 + $0x668] sm:$0xff]
  %v234 = vld [vmem:[%s1 + $0x670] sm:$0xff]
  %v235 = vld [vmem:[%s1 + $0x678] sm:$0xff]
  %v236 = vld [vmem:[%s1 + $0x680] sm:$0xff]
  %v237 = vld [vmem:[%s1 + $0x688] sm:$0xff]
  %v238 = vld [vmem:[%s1 + $0x690] sm:$0xff]
  %v239 = vld [vmem:[%s1 + $0x698] sm:$0xff]
  %v240 = vld [vmem:[%s1 + $0x6a0] sm:$0xff]
  %v241 = vld [vmem:[%s1 + $0x6a8] sm:$0xff]
  %v242 = vld [vmem:[%s1 + $0x6b0] sm:$0xff]
  %v243 = vld [vmem:[%s1 + $0x6b8] sm:$0xff]
  %v244 = vld [vmem:[%s1 + $0x6c0] sm:$0xff]
  %v245 = vld [vmem:[%s1 + $0x6c8] sm:$0xff]
  %v246 = vld [vmem:[%s1 + $0x6d0] sm:$0xff]
  %v247 = vld [vmem:[%s1 + $0x6d8] sm:$0xff]
  %v248 = vld [vmem:[%s1 + $0x6e0] sm:$0xff]
  %v249 = vld [vmem:[%s1 + $0x6e8] sm:$0xff]
  %v250 = vld [vmem:[%s1 + $0x6f0] sm:$0xff]
  %v251 = vld [vmem:[%s1 + $0x6f8] sm:$0xff]
  %v252 = vld [vmem:[%s1 + $0x700] sm:$0xff]
  %v253 = vld [vmem:[%s1 + $0x708] sm:$0xff]
  %v254 = vld [vmem:[%s1 + $0x710] sm:$0xff]
  %v255 = vld [vmem:[%s1 + $0x718] sm:$0xff]
  %v256 = vld [vmem:[%s1 + $0x720] sm:$0xff]
  %v257 = vld [vmem:[%s1 + $0x728] sm:$0xff]
  %v258 = vld [vmem:[%s1 + $0x730] sm:$0xff]
  %v259 = vld [vmem:[%s1 + $0x738] sm:$0xff]
  %v260 = vld [vmem:[%s1 + $0x740] sm:$0xff]
  %v261 = vld [vmem:[%s1 + $0x748] sm:$0xff]
  %v262 = vld [vmem:[%s1 + $0x750] sm:$0xff]
  %v263 = vld [vmem:[%s1 + $0x758] sm:$0xff]
  %v264 = vld [vmem:[%s1 + $0x760] sm:$0xff]
  %v265 = vld [vmem:[%s1 + $0x768] sm:$0xff]
  %v266 = vld [vmem:[%s1 + $0x770] sm:$0xff]
  %v267 = vld [vmem:[%s1 + $0x778] sm:$0xff]
  %v268 = vld [vmem:[%s1 + $0x780] sm:$0xff]
  %v269 = vld [vmem:[%s1 + $0x788] sm:$0xff]
  %v270 = vld [vmem:[%s1 + $0x790] sm:$0xff]
  %v271 = vld [vmem:[%s1 + $0x798] sm:$0xff]
  %v272 = vld [vmem:[%s1 + $0x7a0] sm:$0xff]
  %v273 = vld [vmem:[%s1 + $0x7a8] sm:$0xff]
  %v274 = vld [vmem:[%s1 + $0x7b0] sm:$0xff]
  %v275 = vld [vmem:[%s1 + $0x7b8] sm:$0xff]
  %v276 = vld [vmem:[%s1 + $0x7c0] sm:$0xff]
  %v277 = vld [vmem:[%s1 + $0x7c8] sm:$0xff]
  %v278 = vld [vmem:[%s1 + $0x7d0] sm:$0xff]
  %v279 = vld [vmem:[%s1 + $0x7d8] sm:$0xff]
  %v280 = vld [vmem:[%s1 + $0x7e0] sm:$0xff]
  %v281 = vld [vmem:[%s1 + $0x7e8] sm:$0xff]
  %v282 = vld [vmem:[%s1 + $0x7f0] sm:$0xff]
  %v283 = vld [vmem:[%s1 + $0x7f8] sm:$0xff]
  %v284 = vld [vmem:[%s1 + $0x800] sm:$0xff]
  %v285 = vld [vmem:[%s1 + $0x808] sm:$0xff]
  %v286 = vld [vmem:[%s1 + $0x810] sm:$0xff]
  %v287 = vld [vmem:[%s1 + $0x818] sm:$0xff]
  %v288 = vld [vmem:[%s1 + $0x820] sm:$0xff]
  %v289 = vld [vmem:[%s1 + $0x828] sm:$0xff]
  %v290 = vld [vmem:[%s1 + $0x830] sm:$0xff]
  %v291 = vld [vmem:[%s1 + $0x838] sm:$0xff]
  %v292 = vld [vmem:[%s1 + $0x840] sm:$0xff]
  %v293 = vld [vmem:[%s1 + $0x848] sm:$0xff]
  %v294 = vld [vmem:[%s1 + $0x850] sm:$0xff]
  %v295 = vld [vmem:[%s1 + $0x858] sm:$0xff]
  %v296 = vld [vmem:[%s1 + $0x860] sm:$0xff]
  %v297 = vld [vmem:[%s1 + $0x868] sm:$0xff]
  %v298 = vld [vmem:[%s1 + $0x870] sm:$0xff]
  %v299 = vld [vmem:[%s1 + $0x878] sm:$0xff]
  %v300 = vld [vmem:[%s1 + $0x880] sm:$0xff]
  %v301 = vld [vmem:[%s1 + $0x888] sm:$0xff]
  %v302 = vld [vmem:[%s1 + $0x890] sm:$0xff]
  %v303 = vld [vmem:[%s1 + $0x898] sm:$0xff]
  %v304 = vld [vmem:[%s1 + $0x8a0] sm:$0xff]
  %v305 = vld [vmem:[%s1 + $0x8a8] sm:$0xff]
  %v306 = vld [vmem:[%s1 + $0x8b0] sm:$0xff]
  %v307 = vld [vmem:[%s1 + $0x8b8] sm:$0xff]
  %v308 = vld [vmem:[%s1 + $0x8c0] sm:$0xff]
  %v309 = vld [vmem:[%s1 + $0x8c8] sm:$0xff]
  %v310 = vld [vmem:[%s1 + $0x8d0] sm:$0xff]
  %v311 = vld [vmem:[%s1 + $0x8d8] sm:$0xff]
  %v312 = vld [vmem:[%s1 + $0x8e0] sm:$0xff]
  %v313 = vld [vmem:[%s1 + $0x8e8] sm:$0xff]
  %v314 = vld [vmem:[%s1 + $0x8f0] sm:$0xff]
  %v315 = vld [vmem:[%s1 + $0x8f8] sm:$0xff]
  %v316 = vld [vmem:[%s1 + $0x900] sm:$0xff]
  %v317 = vld [vmem:[%s1 + $0x908] sm:$0xff]
  %v318 = vld [vmem:[%s1 + $0x910] sm:$0xff]
  %v319 = vld [vmem:[%s1 + $0x918] sm:$0xff]
  %v320 = vld [vmem:[%s1 + $0x920] sm:$0xff]
  %v321 = vld [vmem:[%s1 + $0x928] sm:$0xff]
  %v322 = vld [vmem:[%s1 + $0x930] sm:$0xff]
  %v323 = vld [vmem:[%s1 + $0x938] sm:$0xff]
  %v324 = vld [vmem:[%s1 + $0x940] sm:$0xff]
  %v325 = vld [vmem:[%s1 + $0x948] sm:$0xff]
  %v326 = vld [vmem:[%s1 + $0x950] sm:$0xff]
  %v327 = vld [vmem:[%s1 + $0x958] sm:$0xff]
  %v328 = vld [vmem:[%s1 + $0x960] sm:$0xff]
  %v329 = vld [vmem:[%s1 + $0x968] sm:$0xff]
  %v330 = vld [vmem:[%s1 + $0x970] sm:$0xff]
  %v331 = vld [vmem:[%s1 + $0x978] sm:$0xff]
  %v332 = vld [vmem:[%s1 + $0x980] sm:$0xff]
  %v333 = vld [vmem:[%s1 + $0x988] sm:$0xff]
  %v334 = vld [vmem:[%s1 + $0x990] sm:$0xff]
  %v335 = vld [vmem:[%s1 + $0x998] sm:$0xff]
  %v336 = vld [vmem:[%s1 + $0x9a0] sm:$0xff]
  %v337 = vld [vmem:[%s1 + $0x9a8] sm:$0xff]
  %v338 = vld [vmem:[%s1 + $0x9b0] sm:$0xff]
  %v339 = vld [vmem:[%s1 + $0x9b8] sm:$0xff]
  %v340 = vld [vmem:[%s1 + $0x9c0] sm:$0xff]
  %v341 = vld [vmem:[%s1 + $0x9c8] sm:$0xff]
  %v342 = vld [vmem:[%s1 + $0x9d0] sm:$0xff]
  %v343 = vld [vmem:[%s1 + $0x9d8] sm:$0xff]
  %v344 = vld [vmem:[%s1 + $0x9e0] sm:$0xff]
  %v345 = vld [vmem:[%s1 + $0x9e8] sm:$0xff]
  %v346 = vld [vmem:[%s1 + $0x9f0] sm:$0xff]
  %v347 = vld [vmem:[%s1 + $0x9f8] sm:$0xff]
  %v348 = vld [vmem:[%s1 + $0xa00] sm:$0xff]
  %v349 = vld [vmem:[%s1 + $0xa08] sm:$0xff]
  %v350 = vld [vmem:[%s1 + $0xa10] sm:$0xff]
  %v351 = vld [vmem:[%s1 + $0xa18] sm:$0xff]
  %v352 = vld [vmem:[%s1 + $0xa20] sm:$0xff]
  %v353 = vld [vmem:[%s1 + $0xa28] sm:$0xff]
  %v354 = vld [vmem:[%s1 + $0xa30] sm:$0xff]
  %v355 = vld [vmem:[%s1 + $0xa38] sm:$0xff]
  %v356 = vld [vmem:[%s1 + $0xa40] sm:$0xff]
  %v357 = vld [vmem:[%s1 + $0xa48] sm:$0xff]
  %v358 = vld [vmem:[%s1 + $0xa50] sm:$0xff]
  %v359 = vld [vmem:[%s1 + $0xa58] sm:$0xff]
  %v360 = vld [vmem:[%s1 + $0xa60] sm:$0xff]
  %v361 = vld [vmem:[%s1 + $0xa68] sm:$0xff]
  %v362 = vld [vmem:[%s1 + $0xa70] sm:$0xff]
  %v363 = vld [vmem:[%s1 + $0xa78] sm:$0xff]
  %v364 = vld [vmem:[%s1 + $0xa80] sm:$0xff]
  %v365 = vld [vmem:[%s1 + $0xa88] sm:$0xff]
  %v366 = vld [vmem:[%s1 + $0xa90] sm:$0xff]
  %v367 = vld [vmem:[%s1 + $0xa98] sm:$0xff]
  %v368 = vld [vmem:[%s1 + $0xaa0] sm:$0xff]
  %v369 = vld [vmem:[%s1 + $0xaa8] sm:$0xff]
  %v370 = vld [vmem:[%s1 + $0xab0] sm:$0xff]
  %v371 = vld [vmem:[%s1 + $0xab8] sm:$0xff]
  %v372 = vld [vmem:[%s1 + $0xac0] sm:$0xff]
  %v373 = vld [vmem:[%s1 + $0xac8] sm:$0xff]
  %v374 = vld [vmem:[%s1 + $0xad0] sm:$0xff]
  %v375 = vld [vmem:[%s1 + $0xad8] sm:$0xff]
  %v376 = vld [vmem:[%s1 + $0xae0] sm:$0xff]
  %v377 = vld [vmem:[%s1 + $0xae8] sm:$0xff]
  %v378 = vld [vmem:[%s1 + $0xaf0] sm:$0xff]
  %v379 = vld [vmem:[%s1 + $0xaf8] sm:$0xff]
  %v380 = vld [vmem:[%s1 + $0xb00] sm:$0xff]
  %v381 = vld [vmem:[%s1 + $0xb08] sm:$0xff]
  %v382 = vld [vmem:[%s1 + $0xb10] sm:$0xff]
  %v383 = vld [vmem:[%s1 + $0xb18] sm:$0xff]
  %v384 = vld [vmem:[%s1 + $0xb20] sm:$0xff]
  %v385 = vld [vmem:[%s1 + $0xb28] sm:$0xff]
  %v386 = vld [vmem:[%s1 + $0xb30] sm:$0xff]
  %v387 = vld [vmem:[%s1 + $0xb38] sm:$0xff]
  %v388 = vld [vmem:[%s1 + $0xb40] sm:$0xff]
  %v389 = vld [vmem:[%s1 + $0xb48] sm:$0xff]
  %v390 = vld [vmem:[%s1 + $0xb50] sm:$0xff]
  %v391 = vld [vmem:[%s1 + $0xb58] sm:$0xff]
  %v392 = vld [vmem:[%s1 + $0xb60] sm:$0xff]
  %v393 = vld [vmem:[%s1 + $0xb68] sm:$0xff]
  %v394 = vld [vmem:[%s1 + $0xb70] sm:$0xff]
  %v395 = vld [vmem:[%s1 + $0xb78] sm:$0xff]
  %v396 = vld [vmem:[%s1 + $0xb80] sm:$0xff]
  %v397 = vld [vmem:[%s1 + $0xb88] sm:$0xff]
  %v398 = vld [vmem:[%s1 + $0xb90] sm:$0xff]
  %v399 = vld [vmem:[%s1 + $0xb98] sm:$0xff]
  %v400 = vld [vmem:[%s1 + $0xba0] sm:$0xff]
  %v401 = vld [vmem:[%s1 + $0xba8] sm:$0xff]
  %v402 = vld [vmem:[%s1 + $0xbb0] sm:$0xff]
  %v403 = vld [vmem:[%s1 + $0xbb8] sm:$0xff]
  %v404 = vld [vmem:[%s1 + $0xbc0] sm:$0xff]
  %v405 = vld [vmem:[%s1 + $0xbc8] sm:$0xff]
  %v406 = vld [vmem:[%s1 + $0xbd0] sm:$0xff]
  %v407 = vld [vmem:[%s1 + $0xbd8] sm:$0xff]
  %v408 = vld [vmem:[%s1 + $0xbe0] sm:$0xff]
  %v409 = vld [vmem:[%s1 + $0xbe8] sm:$0xff]
  %v410 = vld [vmem:[%s1 + $0xbf0] sm:$0xff]
  %v411 = vld [vmem:[%s1 + $0xbf8] sm:$0xff]
  %v412 = vld [vmem:[%s1 + $0xc00] sm:$0xff]
  %v413 = vld [vmem:[%s1 + $0xc08] sm:$0xff]
  %v414 = vld [vmem:[%s1 + $0xc10] sm:$0xff]
  %v415 = vld [vmem:[%s1 + $0xc18] sm:$0xff]
  %v416 = vld [vmem:[%s1 + $0xc20] sm:$0xff]
  %v417 = vld [vmem:[%s1 + $0xc28] sm:$0xff]
  %v418 = vld [vmem:[%s1 + $0xc30] sm:$0xff]
  %v419 = vld [vmem:[%s1 + $0xc38] sm:$0xff]
  %v420 = vld [vmem:[%s2] sm:$0xf]
  %v422 = vlaneseq
  %v423 = vshrl.u32 %v422, 7
  %v424 = vsub.s32 0, %v423
  %v425 = vrot.slane %v420, %v424
  %v426 = vlaneseq
  %v427 = vshrl.u32 %v426, 7
  %v428 = vsub.s32 1, %v427
  %v429 = vrot.slane %v420, %v428
  %v430 = vlaneseq
  %v431 = vshrl.u32 %v430, 7
  %v432 = vsub.s32 2, %v431
  %v433 = vrot.slane %v420, %v432
  %v434 = vlaneseq
  %v435 = vshrl.u32 %v434, 7
  %v436 = vsub.s32 3, %v435
  %v437 = vrot.slane %v420, %v436
  %v449 = vunpack.c.l.b16 %v21
  %v450 = vunpack.c.h.b16 %v21
  %v451 = vunpack.c.l.b16 %v22
  %v452 = vunpack.c.h.b16 %v22
  %v453 = vunpack.c.l.b16 %v23
  %v454 = vunpack.c.h.b16 %v23
  %v455 = vunpack.c.l.b16 %v24
  %v456 = vunpack.c.h.b16 %v24
  %v457 = vunpack.c.l.b16 %v25
  %v458 = vunpack.c.h.b16 %v25
  %v459 = vunpack.c.l.b16 %v26
  %v460 = vunpack.c.h.b16 %v26
  %v461 = vunpack.c.l.b16 %v27
  %v462 = vpack.c.b16 %v449, %v449
  %v463 = vpack.c.b16 %v450, %v450
  %v464 = vpack.c.b16 %v451, %v451
  %v465 = vpack.c.b16 %v452, %v452
  %v466 = vpack.c.b16 %v453, %v453
  %v467 = vpack.c.b16 %v454, %v454
  %v468 = vpack.c.b16 %v455, %v455
  %v469 = vpack.c.b16 %v456, %v456
  %v470 = vpack.c.b16 %v457, %v457
  %v471 = vpack.c.b16 %v458, %v458
  %v472 = vpack.c.b16 %v459, %v459
  %v473 = vpack.c.b16 %v460, %v460
  %v474 = vpack.c.b16 %v461, %v461
  %v879 = vunpack.c.l.b16 %v28
  %v880 = vunpack.c.h.b16 %v28
  %v881 = vunpack.c.l.b16 %v29
  %v882 = vunpack.c.h.b16 %v29
  %v883 = vunpack.c.l.b16 %v30
  %v884 = vunpack.c.h.b16 %v30
  %v885 = vunpack.c.l.b16 %v31
  %v886 = vunpack.c.h.b16 %v31
  %v887 = vunpack.c.l.b16 %v32
  %v888 = vunpack.c.h.b16 %v32
  %v889 = vunpack.c.l.b16 %v33
  %v890 = vunpack.c.h.b16 %v33
  %v891 = vunpack.c.l.b16 %v34
  %v892 = vunpack.c.h.b16 %v34
  %v893 = vunpack.c.l.b16 %v35
  %v894 = vunpack.c.h.b16 %v35
  %v895 = vunpack.c.l.b16 %v36
  %v896 = vunpack.c.h.b16 %v36
  %v897 = vunpack.c.l.b16 %v37
  %v898 = vunpack.c.h.b16 %v37
  %v899 = vunpack.c.l.b16 %v38
  %v900 = vunpack.c.h.b16 %v38
  %v901 = vunpack.c.l.b16 %v39
  %v902 = vunpack.c.h.b16 %v39
  %v903 = vunpack.c.l.b16 %v40
  %v904 = vunpack.c.h.b16 %v40
  %v905 = vunpack.c.l.b16 %v41
  %v906 = vunpack.c.h.b16 %v41
  %v907 = vunpack.c.l.b16 %v42
  %v908 = vunpack.c.h.b16 %v42
  %v909 = vunpack.c.l.b16 %v43
  %v910 = vunpack.c.h.b16 %v43
  %v911 = vunpack.c.l.b16 %v44
  %v912 = vunpack.c.h.b16 %v44
  %v913 = vunpack.c.l.b16 %v45
  %v914 = vunpack.c.h.b16 %v45
  %v915 = vunpack.c.l.b16 %v46
  %v916 = vunpack.c.h.b16 %v46
  %v917 = vunpack.c.l.b16 %v47
  %v918 = vunpack.c.h.b16 %v47
  %v919 = vunpack.c.l.b16 %v48
  %v920 = vunpack.c.h.b16 %v48
  %v921 = vunpack.c.l.b16 %v49
  %v922 = vunpack.c.h.b16 %v49
  %v923 = vunpack.c.l.b16 %v50
  %v924 = vunpack.c.h.b16 %v50
  %v925 = vunpack.c.l.b16 %v51
  %v926 = vunpack.c.h.b16 %v51
  %v927 = vunpack.c.l.b16 %v52
  %v928 = vunpack.c.h.b16 %v52
  %v929 = vunpack.c.l.b16 %v53
  %v930 = vunpack.c.h.b16 %v53
  %v931 = vunpack.c.l.b16 %v54
  %v932 = vunpack.c.h.b16 %v54
  %v933 = vunpack.c.l.b16 %v55
  %v934 = vunpack.c.h.b16 %v55
  %v935 = vunpack.c.l.b16 %v56
  %v936 = vunpack.c.h.b16 %v56
  %v937 = vunpack.c.l.b16 %v57
  %v938 = vunpack.c.h.b16 %v57
  %v939 = vunpack.c.l.b16 %v58
  %v940 = vunpack.c.h.b16 %v58
  %v941 = vunpack.c.l.b16 %v59
  %v942 = vunpack.c.h.b16 %v59
  %v943 = vunpack.c.l.b16 %v60
  %v944 = vunpack.c.h.b16 %v60
  %v945 = vunpack.c.l.b16 %v61
  %v946 = vunpack.c.h.b16 %v61
  %v947 = vunpack.c.l.b16 %v62
  %v948 = vunpack.c.h.b16 %v62
  %v949 = vunpack.c.l.b16 %v63
  %v950 = vunpack.c.h.b16 %v63
  %v951 = vunpack.c.l.b16 %v64
  %v952 = vunpack.c.h.b16 %v64
  %v953 = vunpack.c.l.b16 %v65
  %v954 = vunpack.c.h.b16 %v65
  %v955 = vunpack.c.l.b16 %v66
  %v956 = vunpack.c.h.b16 %v66
  %v957 = vunpack.c.l.b16 %v67
  %v958 = vunpack.c.h.b16 %v67
  %v959 = vunpack.c.l.b16 %v68
  %v960 = vunpack.c.h.b16 %v68
  %v961 = vunpack.c.l.b16 %v69
  %v962 = vunpack.c.h.b16 %v69
  %v963 = vunpack.c.l.b16 %v70
  %v964 = vunpack.c.h.b16 %v70
  %v965 = vunpack.c.l.b16 %v71
  %v966 = vunpack.c.h.b16 %v71
  %v967 = vunpack.c.l.b16 %v72
  %v968 = vunpack.c.h.b16 %v72
  %v969 = vunpack.c.l.b16 %v73
  %v970 = vunpack.c.h.b16 %v73
  %v971 = vunpack.c.l.b16 %v74
  %v972 = vunpack.c.h.b16 %v74
  %v973 = vunpack.c.l.b16 %v75
  %v974 = vunpack.c.h.b16 %v75
  %v975 = vunpack.c.l.b16 %v76
  %v976 = vunpack.c.h.b16 %v76
  %v977 = vunpack.c.l.b16 %v77
  %v978 = vunpack.c.h.b16 %v77
  %v979 = vunpack.c.l.b16 %v78
  %v980 = vunpack.c.h.b16 %v78
  %v981 = vunpack.c.l.b16 %v79
  %v982 = vunpack.c.h.b16 %v79
  %v983 = vunpack.c.l.b16 %v80
  %v984 = vunpack.c.h.b16 %v80
  %v985 = vunpack.c.l.b16 %v81
  %v986 = vunpack.c.h.b16 %v81
  %v987 = vunpack.c.l.b16 %v82
  %v988 = vunpack.c.h.b16 %v82
  %v989 = vunpack.c.l.b16 %v83
  %v990 = vunpack.c.h.b16 %v83
  %v991 = vunpack.c.l.b16 %v84
  %v992 = vunpack.c.h.b16 %v84
  %v993 = vunpack.c.l.b16 %v85
  %v994 = vunpack.c.h.b16 %v85
  %v995 = vunpack.c.l.b16 %v86
  %v996 = vunpack.c.h.b16 %v86
  %v997 = vunpack.c.l.b16 %v87
  %v998 = vunpack.c.h.b16 %v87
  %v999 = vunpack.c.l.b16 %v88
  %v1000 = vunpack.c.h.b16 %v88
  %v1001 = vunpack.c.l.b16 %v89
  %v1002 = vunpack.c.h.b16 %v89
  %v1003 = vunpack.c.l.b16 %v90
  %v1004 = vunpack.c.h.b16 %v90
  %v1005 = vunpack.c.l.b16 %v91
  %v1006 = vunpack.c.h.b16 %v91
  %v1007 = vunpack.c.l.b16 %v92
  %v1008 = vunpack.c.h.b16 %v92
  %v1009 = vunpack.c.l.b16 %v93
  %v1010 = vunpack.c.h.b16 %v93
  %v1011 = vunpack.c.l.b16 %v94
  %v1012 = vunpack.c.h.b16 %v94
  %v1013 = vunpack.c.l.b16 %v95
  %v1014 = vunpack.c.h.b16 %v95
  %v1015 = vunpack.c.l.b16 %v96
  %v1016 = vunpack.c.h.b16 %v96
  %v1017 = vunpack.c.l.b16 %v97
  %v1018 = vunpack.c.h.b16 %v97
  %v1019 = vunpack.c.l.b16 %v98
  %v1020 = vunpack.c.h.b16 %v98
  %v1021 = vunpack.c.l.b16 %v99
  %v1022 = vunpack.c.h.b16 %v99
  %v1023 = vunpack.c.l.b16 %v100
  %v1024 = vunpack.c.h.b16 %v100
  %v1025 = vunpack.c.l.b16 %v101
  %v1026 = vunpack.c.h.b16 %v101
  %v1027 = vunpack.c.l.b16 %v102
  %v1028 = vunpack.c.h.b16 %v102
  %v1029 = vunpack.c.l.b16 %v103
  %v1030 = vunpack.c.h.b16 %v103
  %v1031 = vunpack.c.l.b16 %v104
  %v1032 = vunpack.c.h.b16 %v104
  %v1033 = vunpack.c.l.b16 %v105
  %v1034 = vunpack.c.h.b16 %v105
  %v1035 = vunpack.c.l.b16 %v106
  %v1036 = vunpack.c.h.b16 %v106
  %v1037 = vunpack.c.l.b16 %v107
  %v1038 = vunpack.c.h.b16 %v107
  %v1039 = vunpack.c.l.b16 %v108
  %v1040 = vunpack.c.h.b16 %v108
  %v1041 = vunpack.c.l.b16 %v109
  %v1042 = vunpack.c.h.b16 %v109
  %v1043 = vunpack.c.l.b16 %v110
  %v1044 = vunpack.c.h.b16 %v110
  %v1045 = vunpack.c.l.b16 %v111
  %v1046 = vunpack.c.h.b16 %v111
  %v1047 = vunpack.c.l.b16 %v112
  %v1048 = vunpack.c.h.b16 %v112
  %v1049 = vunpack.c.l.b16 %v113
  %v1050 = vunpack.c.h.b16 %v113
  %v1051 = vunpack.c.l.b16 %v114
  %v1052 = vunpack.c.h.b16 %v114
  %v1053 = vunpack.c.l.b16 %v115
  %v1054 = vunpack.c.h.b16 %v115
  %v1055 = vunpack.c.l.b16 %v116
  %v1056 = vunpack.c.h.b16 %v116
  %v1057 = vunpack.c.l.b16 %v117
  %v1058 = vunpack.c.h.b16 %v117
  %v1059 = vunpack.c.l.b16 %v118
  %v1060 = vunpack.c.h.b16 %v118
  %v1061 = vunpack.c.l.b16 %v119
  %v1062 = vunpack.c.h.b16 %v119
  %v1063 = vunpack.c.l.b16 %v120
  %v1064 = vunpack.c.h.b16 %v120
  %v1065 = vunpack.c.l.b16 %v121
  %v1066 = vunpack.c.h.b16 %v121
  %v1067 = vunpack.c.l.b16 %v122
  %v1068 = vunpack.c.h.b16 %v122
  %v1069 = vunpack.c.l.b16 %v123
  %v1070 = vunpack.c.h.b16 %v123
  %v1071 = vunpack.c.l.b16 %v124
  %v1072 = vunpack.c.h.b16 %v124
  %v1073 = vunpack.c.l.b16 %v125
  %v1074 = vunpack.c.h.b16 %v125
  %v1075 = vunpack.c.l.b16 %v126
  %v1076 = vunpack.c.h.b16 %v126
  %v1077 = vunpack.c.l.b16 %v127
  %v1078 = vunpack.c.h.b16 %v127
  %v1079 = vunpack.c.l.b16 %v128
  %v1080 = vunpack.c.h.b16 %v128
  %v1081 = vunpack.c.l.b16 %v129
  %v1082 = vunpack.c.h.b16 %v129
  %v1083 = vunpack.c.l.b16 %v130
  %v1084 = vunpack.c.h.b16 %v130
  %v1085 = vunpack.c.l.b16 %v131
  %v1086 = vunpack.c.h.b16 %v131
  %v1087 = vunpack.c.l.b16 %v132
  %v1088 = vunpack.c.h.b16 %v132
  %v1089 = vunpack.c.l.b16 %v133
  %v1090 = vunpack.c.h.b16 %v133
  %v1091 = vunpack.c.l.b16 %v134
  %v1092 = vunpack.c.h.b16 %v134
  %v1093 = vunpack.c.l.b16 %v135
  %v1094 = vunpack.c.h.b16 %v135
  %v1095 = vunpack.c.l.b16 %v136
  %v1096 = vunpack.c.h.b16 %v136
  %v1097 = vunpack.c.l.b16 %v137
  %v1098 = vunpack.c.h.b16 %v137
  %v1099 = vunpack.c.l.b16 %v138
  %v1100 = vunpack.c.h.b16 %v138
  %v1101 = vunpack.c.l.b16 %v139
  %v1102 = vunpack.c.h.b16 %v139
  %v1103 = vunpack.c.l.b16 %v140
  %v1104 = vunpack.c.h.b16 %v140
  %v1105 = vunpack.c.l.b16 %v141
  %v1106 = vunpack.c.h.b16 %v141
  %v1107 = vunpack.c.l.b16 %v142
  %v1108 = vunpack.c.h.b16 %v142
  %v1109 = vunpack.c.l.b16 %v143
  %v1110 = vunpack.c.h.b16 %v143
  %v1111 = vunpack.c.l.b16 %v144
  %v1112 = vunpack.c.h.b16 %v144
  %v1113 = vunpack.c.l.b16 %v145
  %v1114 = vunpack.c.h.b16 %v145
  %v1115 = vunpack.c.l.b16 %v146
  %v1116 = vunpack.c.h.b16 %v146
  %v1117 = vunpack.c.l.b16 %v147
  %v1118 = vunpack.c.h.b16 %v147
  %v1119 = vunpack.c.l.b16 %v148
  %v1120 = vunpack.c.h.b16 %v148
  %v1121 = vunpack.c.l.b16 %v149
  %v1122 = vunpack.c.h.b16 %v149
  %v1123 = vunpack.c.l.b16 %v150
  %v1124 = vunpack.c.h.b16 %v150
  %v1125 = vunpack.c.l.b16 %v151
  %v1126 = vunpack.c.h.b16 %v151
  %v1127 = vunpack.c.l.b16 %v152
  %v1128 = vunpack.c.h.b16 %v152
  %v1129 = vunpack.c.l.b16 %v153
  %v1130 = vunpack.c.h.b16 %v153
  %v1131 = vunpack.c.l.b16 %v154
  %v1132 = vunpack.c.h.b16 %v154
  %v1133 = vunpack.c.l.b16 %v155
  %v1134 = vunpack.c.h.b16 %v155
  %v1135 = vunpack.c.l.b16 %v156
  %v1136 = vunpack.c.h.b16 %v156
  %v1137 = vunpack.c.l.b16 %v157
  %v1138 = vunpack.c.h.b16 %v157
  %v1139 = vunpack.c.l.b16 %v158
  %v1140 = vunpack.c.h.b16 %v158
  %v1141 = vunpack.c.l.b16 %v159
  %v1142 = vunpack.c.h.b16 %v159
  %v1143 = vunpack.c.l.b16 %v160
  %v1144 = vunpack.c.h.b16 %v160
  %v1145 = vunpack.c.l.b16 %v161
  %v1146 = vunpack.c.h.b16 %v161
  %v1147 = vunpack.c.l.b16 %v162
  %v1148 = vunpack.c.h.b16 %v162
  %v1149 = vunpack.c.l.b16 %v163
  %v1150 = vunpack.c.h.b16 %v163
  %v1151 = vunpack.c.l.b16 %v164
  %v1152 = vunpack.c.h.b16 %v164
  %v1153 = vunpack.c.l.b16 %v165
  %v1154 = vunpack.c.h.b16 %v165
  %v1155 = vunpack.c.l.b16 %v166
  %v1156 = vunpack.c.h.b16 %v166
  %v1157 = vunpack.c.l.b16 %v167
  %v1158 = vunpack.c.h.b16 %v167
  %v1159 = vunpack.c.l.b16 %v168
  %v1160 = vunpack.c.h.b16 %v168
  %v1161 = vunpack.c.l.b16 %v169
  %v1162 = vunpack.c.h.b16 %v169
  %v1163 = vunpack.c.l.b16 %v170
  %v1164 = vunpack.c.h.b16 %v170
  %v1165 = vunpack.c.l.b16 %v171
  %v1166 = vunpack.c.h.b16 %v171
  %v1167 = vunpack.c.l.b16 %v172
  %v1168 = vunpack.c.h.b16 %v172
  %v1169 = vunpack.c.l.b16 %v173
  %v1170 = vunpack.c.h.b16 %v173
  %v1171 = vunpack.c.l.b16 %v174
  %v1172 = vunpack.c.h.b16 %v174
  %v1173 = vunpack.c.l.b16 %v175
  %v1174 = vunpack.c.h.b16 %v175
  %v1175 = vunpack.c.l.b16 %v176
  %v1176 = vunpack.c.h.b16 %v176
  %v1177 = vunpack.c.l.b16 %v177
  %v1178 = vunpack.c.h.b16 %v177
  %v1179 = vunpack.c.l.b16 %v178
  %v1180 = vunpack.c.h.b16 %v178
  %v1181 = vunpack.c.l.b16 %v179
  %v1182 = vunpack.c.h.b16 %v179
  %v1183 = vunpack.c.l.b16 %v180
  %v1184 = vunpack.c.h.b16 %v180
  %v1185 = vunpack.c.l.b16 %v181
  %v1186 = vunpack.c.h.b16 %v181
  %v1187 = vunpack.c.l.b16 %v182
  %v1188 = vunpack.c.h.b16 %v182
  %v1189 = vunpack.c.l.b16 %v183
  %v1190 = vunpack.c.h.b16 %v183
  %v1191 = vunpack.c.l.b16 %v184
  %v1192 = vunpack.c.h.b16 %v184
  %v1193 = vunpack.c.l.b16 %v185
  %v1194 = vunpack.c.h.b16 %v185
  %v1195 = vunpack.c.l.b16 %v186
  %v1196 = vunpack.c.h.b16 %v186
  %v1197 = vunpack.c.l.b16 %v187
  %v1198 = vunpack.c.h.b16 %v187
  %v1199 = vunpack.c.l.b16 %v188
  %v1200 = vunpack.c.h.b16 %v188
  %v1201 = vunpack.c.l.b16 %v189
  %v1202 = vunpack.c.h.b16 %v189
  %v1203 = vunpack.c.l.b16 %v190
  %v1204 = vunpack.c.h.b16 %v190
  %v1205 = vunpack.c.l.b16 %v191
  %v1206 = vunpack.c.h.b16 %v191
  %v1207 = vunpack.c.l.b16 %v192
  %v1208 = vunpack.c.h.b16 %v192
  %v1209 = vunpack.c.l.b16 %v193
  %v1210 = vunpack.c.h.b16 %v193
  %v1211 = vunpack.c.l.b16 %v194
  %v1212 = vunpack.c.h.b16 %v194
  %v1213 = vunpack.c.l.b16 %v195
  %v1214 = vunpack.c.h.b16 %v195
  %v1215 = vunpack.c.l.b16 %v196
  %v1216 = vunpack.c.h.b16 %v196
  %v1217 = vunpack.c.l.b16 %v197
  %v1218 = vunpack.c.h.b16 %v197
  %v1219 = vunpack.c.l.b16 %v198
  %v1220 = vunpack.c.h.b16 %v198
  %v1221 = vunpack.c.l.b16 %v199
  %v1222 = vunpack.c.h.b16 %v199
  %v1223 = vunpack.c.l.b16 %v200
  %v1224 = vunpack.c.h.b16 %v200
  %v1225 = vunpack.c.l.b16 %v201
  %v1226 = vunpack.c.h.b16 %v201
  %v1227 = vunpack.c.l.b16 %v202
  %v1228 = vunpack.c.h.b16 %v202
  %v1229 = vunpack.c.l.b16 %v203
  %v1230 = vunpack.c.h.b16 %v203
  %v1231 = vunpack.c.l.b16 %v204
  %v1232 = vunpack.c.h.b16 %v204
  %v1233 = vunpack.c.l.b16 %v205
  %v1234 = vunpack.c.h.b16 %v205
  %v1235 = vunpack.c.l.b16 %v206
  %v1236 = vunpack.c.h.b16 %v206
  %v1237 = vunpack.c.l.b16 %v207
  %v1238 = vunpack.c.h.b16 %v207
  %v1239 = vunpack.c.l.b16 %v208
  %v1240 = vunpack.c.h.b16 %v208
  %v1241 = vunpack.c.l.b16 %v209
  %v1242 = vunpack.c.h.b16 %v209
  %v1243 = vunpack.c.l.b16 %v210
  %v1244 = vunpack.c.h.b16 %v210
  %v1245 = vunpack.c.l.b16 %v211
  %v1246 = vunpack.c.h.b16 %v211
  %v1247 = vunpack.c.l.b16 %v212
  %v1248 = vunpack.c.h.b16 %v212
  %v1249 = vunpack.c.l.b16 %v213
  %v1250 = vunpack.c.h.b16 %v213
  %v1251 = vunpack.c.l.b16 %v214
  %v1252 = vunpack.c.h.b16 %v214
  %v1253 = vunpack.c.l.b16 %v215
  %v1254 = vunpack.c.h.b16 %v215
  %v1255 = vunpack.c.l.b16 %v216
  %v1256 = vunpack.c.h.b16 %v216
  %v1257 = vunpack.c.l.b16 %v217
  %v1258 = vunpack.c.h.b16 %v217
  %v1259 = vunpack.c.l.b16 %v218
  %v1260 = vunpack.c.h.b16 %v218
  %v1261 = vunpack.c.l.b16 %v219
  %v1262 = vunpack.c.h.b16 %v219
  %v1263 = vunpack.c.l.b16 %v220
  %v1264 = vunpack.c.h.b16 %v220
  %v1265 = vunpack.c.l.b16 %v221
  %v1266 = vunpack.c.h.b16 %v221
  %v1267 = vunpack.c.l.b16 %v222
  %v1268 = vunpack.c.h.b16 %v222
  %v1269 = vunpack.c.l.b16 %v223
  %v1270 = vunpack.c.h.b16 %v223
  %v1271 = vunpack.c.l.b16 %v224
  %v1272 = vunpack.c.h.b16 %v224
  %v1273 = vunpack.c.l.b16 %v225
  %v1274 = vunpack.c.h.b16 %v225
  %v1275 = vunpack.c.l.b16 %v226
  %v1276 = vunpack.c.h.b16 %v226
  %v1277 = vunpack.c.l.b16 %v227
  %v1278 = vunpack.c.h.b16 %v227
  %v1279 = vunpack.c.l.b16 %v228
  %v1280 = vunpack.c.h.b16 %v228
  %v1281 = vunpack.c.l.b16 %v229
  %v1282 = vunpack.c.h.b16 %v229
  %v1283 = vunpack.c.l.b16 %v230
  %v1284 = vunpack.c.h.b16 %v230
  %v1285 = vunpack.c.l.b16 %v231
  %v1286 = vunpack.c.h.b16 %v231
  %v1287 = vunpack.c.l.b16 %v232
  %v1288 = vunpack.c.h.b16 %v232
  %v1289 = vunpack.c.l.b16 %v233
  %v1290 = vunpack.c.h.b16 %v233
  %v1291 = vunpack.c.l.b16 %v234
  %v1292 = vunpack.c.h.b16 %v234
  %v1293 = vunpack.c.l.b16 %v235
  %v1294 = vunpack.c.h.b16 %v235
  %v1295 = vunpack.c.l.b16 %v236
  %v1296 = vunpack.c.h.b16 %v236
  %v1297 = vunpack.c.l.b16 %v237
  %v1298 = vunpack.c.h.b16 %v237
  %v1299 = vunpack.c.l.b16 %v238
  %v1300 = vunpack.c.h.b16 %v238
  %v1301 = vunpack.c.l.b16 %v239
  %v1302 = vunpack.c.h.b16 %v239
  %v1303 = vunpack.c.l.b16 %v240
  %v1304 = vunpack.c.h.b16 %v240
  %v1305 = vunpack.c.l.b16 %v241
  %v1306 = vunpack.c.h.b16 %v241
  %v1307 = vunpack.c.l.b16 %v242
  %v1308 = vunpack.c.h.b16 %v242
  %v1309 = vunpack.c.l.b16 %v243
  %v1310 = vunpack.c.h.b16 %v243
  %v1311 = vunpack.c.l.b16 %v244
  %v1312 = vunpack.c.h.b16 %v244
  %v1313 = vunpack.c.l.b16 %v245
  %v1314 = vunpack.c.h.b16 %v245
  %v1315 = vunpack.c.l.b16 %v246
  %v1316 = vunpack.c.h.b16 %v246
  %v1317 = vunpack.c.l.b16 %v247
  %v1318 = vunpack.c.h.b16 %v247
  %v1319 = vunpack.c.l.b16 %v248
  %v1320 = vunpack.c.h.b16 %v248
  %v1321 = vunpack.c.l.b16 %v249
  %v1322 = vunpack.c.h.b16 %v249
  %v1323 = vunpack.c.l.b16 %v250
  %v1324 = vunpack.c.h.b16 %v250
  %v1325 = vunpack.c.l.b16 %v251
  %v1326 = vunpack.c.h.b16 %v251
  %v1327 = vunpack.c.l.b16 %v252
  %v1328 = vunpack.c.h.b16 %v252
  %v1329 = vunpack.c.l.b16 %v253
  %v1330 = vunpack.c.h.b16 %v253
  %v1331 = vunpack.c.l.b16 %v254
  %v1332 = vunpack.c.h.b16 %v254
  %v1333 = vunpack.c.l.b16 %v255
  %v1334 = vunpack.c.h.b16 %v255
  %v1335 = vunpack.c.l.b16 %v256
  %v1336 = vunpack.c.h.b16 %v256
  %v1337 = vunpack.c.l.b16 %v257
  %v1338 = vunpack.c.h.b16 %v257
  %v1339 = vunpack.c.l.b16 %v258
  %v1340 = vunpack.c.h.b16 %v258
  %v1341 = vunpack.c.l.b16 %v259
  %v1342 = vunpack.c.h.b16 %v259
  %v1343 = vunpack.c.l.b16 %v260
  %v1344 = vunpack.c.h.b16 %v260
  %v1345 = vunpack.c.l.b16 %v261
  %v1346 = vunpack.c.h.b16 %v261
  %v1347 = vunpack.c.l.b16 %v262
  %v1348 = vunpack.c.h.b16 %v262
  %v1349 = vunpack.c.l.b16 %v263
  %v1350 = vunpack.c.h.b16 %v263
  %v1351 = vunpack.c.l.b16 %v264
  %v1352 = vunpack.c.h.b16 %v264
  %v1353 = vunpack.c.l.b16 %v265
  %v1354 = vunpack.c.h.b16 %v265
  %v1355 = vunpack.c.l.b16 %v266
  %v1356 = vunpack.c.h.b16 %v266
  %v1357 = vunpack.c.l.b16 %v267
  %v1358 = vunpack.c.h.b16 %v267
  %v1359 = vunpack.c.l.b16 %v268
  %v1360 = vunpack.c.h.b16 %v268
  %v1361 = vunpack.c.l.b16 %v269
  %v1362 = vunpack.c.h.b16 %v269
  %v1363 = vunpack.c.l.b16 %v270
  %v1364 = vunpack.c.h.b16 %v270
  %v1365 = vunpack.c.l.b16 %v271
  %v1366 = vunpack.c.h.b16 %v271
  %v1367 = vunpack.c.l.b16 %v272
  %v1368 = vunpack.c.h.b16 %v272
  %v1369 = vunpack.c.l.b16 %v273
  %v1370 = vunpack.c.h.b16 %v273
  %v1371 = vunpack.c.l.b16 %v274
  %v1372 = vunpack.c.h.b16 %v274
  %v1373 = vunpack.c.l.b16 %v275
  %v1374 = vunpack.c.h.b16 %v275
  %v1375 = vunpack.c.l.b16 %v276
  %v1376 = vunpack.c.h.b16 %v276
  %v1377 = vunpack.c.l.b16 %v277
  %v1378 = vunpack.c.h.b16 %v277
  %v1379 = vunpack.c.l.b16 %v278
  %v1380 = vunpack.c.h.b16 %v278
  %v1381 = vunpack.c.l.b16 %v279
  %v1382 = vunpack.c.h.b16 %v279
  %v1383 = vunpack.c.l.b16 %v280
  %v1384 = vunpack.c.h.b16 %v280
  %v1385 = vunpack.c.l.b16 %v281
  %v1386 = vunpack.c.h.b16 %v281
  %v1387 = vunpack.c.l.b16 %v282
  %v1388 = vunpack.c.h.b16 %v282
  %v1389 = vunpack.c.l.b16 %v283
  %v1390 = vunpack.c.h.b16 %v283
  %v1391 = vunpack.c.l.b16 %v284
  %v1392 = vunpack.c.h.b16 %v284
  %v1393 = vunpack.c.l.b16 %v285
  %v1394 = vunpack.c.h.b16 %v285
  %v1395 = vunpack.c.l.b16 %v286
  %v1396 = vunpack.c.h.b16 %v286
  %v1397 = vunpack.c.l.b16 %v287
  %v1398 = vunpack.c.h.b16 %v287
  %v1399 = vunpack.c.l.b16 %v288
  %v1400 = vunpack.c.h.b16 %v288
  %v1401 = vunpack.c.l.b16 %v289
  %v1402 = vunpack.c.h.b16 %v289
  %v1403 = vunpack.c.l.b16 %v290
  %v1404 = vunpack.c.h.b16 %v290
  %v1405 = vunpack.c.l.b16 %v291
  %v1406 = vunpack.c.h.b16 %v291
  %v1407 = vunpack.c.l.b16 %v292
  %v1408 = vunpack.c.h.b16 %v292
  %v1409 = vunpack.c.l.b16 %v293
  %v1410 = vunpack.c.h.b16 %v293
  %v1411 = vunpack.c.l.b16 %v294
  %v1412 = vunpack.c.h.b16 %v294
  %v1413 = vunpack.c.l.b16 %v295
  %v1414 = vunpack.c.h.b16 %v295
  %v1415 = vunpack.c.l.b16 %v296
  %v1416 = vunpack.c.h.b16 %v296
  %v1417 = vunpack.c.l.b16 %v297
  %v1418 = vunpack.c.h.b16 %v297
  %v1419 = vunpack.c.l.b16 %v298
  %v1420 = vunpack.c.h.b16 %v298
  %v1421 = vunpack.c.l.b16 %v299
  %v1422 = vunpack.c.h.b16 %v299
  %v1423 = vunpack.c.l.b16 %v300
  %v1424 = vunpack.c.h.b16 %v300
  %v1425 = vunpack.c.l.b16 %v301
  %v1426 = vunpack.c.h.b16 %v301
  %v1427 = vunpack.c.l.b16 %v302
  %v1428 = vunpack.c.h.b16 %v302
  %v1429 = vunpack.c.l.b16 %v303
  %v1430 = vunpack.c.h.b16 %v303
  %v1431 = vunpack.c.l.b16 %v304
  %v1432 = vunpack.c.h.b16 %v304
  %v1433 = vunpack.c.l.b16 %v305
  %v1434 = vunpack.c.h.b16 %v305
  %v1435 = vunpack.c.l.b16 %v306
  %v1436 = vunpack.c.h.b16 %v306
  %v1437 = vunpack.c.l.b16 %v307
  %v1438 = vunpack.c.h.b16 %v307
  %v1439 = vunpack.c.l.b16 %v308
  %v1440 = vunpack.c.h.b16 %v308
  %v1441 = vunpack.c.l.b16 %v309
  %v1442 = vunpack.c.h.b16 %v309
  %v1443 = vunpack.c.l.b16 %v310
  %v1444 = vunpack.c.h.b16 %v310
  %v1445 = vunpack.c.l.b16 %v311
  %v1446 = vunpack.c.h.b16 %v311
  %v1447 = vunpack.c.l.b16 %v312
  %v1448 = vunpack.c.h.b16 %v312
  %v1449 = vunpack.c.l.b16 %v313
  %v1450 = vunpack.c.h.b16 %v313
  %v1451 = vunpack.c.l.b16 %v314
  %v1452 = vunpack.c.h.b16 %v314
  %v1453 = vunpack.c.l.b16 %v315
  %v1454 = vunpack.c.h.b16 %v315
  %v1455 = vunpack.c.l.b16 %v316
  %v1456 = vunpack.c.h.b16 %v316
  %v1457 = vunpack.c.l.b16 %v317
  %v1458 = vunpack.c.h.b16 %v317
  %v1459 = vunpack.c.l.b16 %v318
  %v1460 = vunpack.c.h.b16 %v318
  %v1461 = vunpack.c.l.b16 %v319
  %v1462 = vunpack.c.h.b16 %v319
  %v1463 = vunpack.c.l.b16 %v320
  %v1464 = vunpack.c.h.b16 %v320
  %v1465 = vunpack.c.l.b16 %v321
  %v1466 = vunpack.c.h.b16 %v321
  %v1467 = vunpack.c.l.b16 %v322
  %v1468 = vunpack.c.h.b16 %v322
  %v1469 = vunpack.c.l.b16 %v323
  %v1470 = vunpack.c.h.b16 %v323
  %v1471 = vunpack.c.l.b16 %v324
  %v1472 = vunpack.c.h.b16 %v324
  %v1473 = vunpack.c.l.b16 %v325
  %v1474 = vunpack.c.h.b16 %v325
  %v1475 = vunpack.c.l.b16 %v326
  %v1476 = vunpack.c.h.b16 %v326
  %v1477 = vunpack.c.l.b16 %v327
  %v1478 = vunpack.c.h.b16 %v327
  %v1479 = vunpack.c.l.b16 %v328
  %v1480 = vunpack.c.h.b16 %v328
  %v1481 = vunpack.c.l.b16 %v329
  %v1482 = vunpack.c.h.b16 %v329
  %v1483 = vunpack.c.l.b16 %v330
  %v1484 = vunpack.c.h.b16 %v330
  %v1485 = vunpack.c.l.b16 %v331
  %v1486 = vunpack.c.h.b16 %v331
  %v1487 = vunpack.c.l.b16 %v332
  %v1488 = vunpack.c.h.b16 %v332
  %v1489 = vunpack.c.l.b16 %v333
  %v1490 = vunpack.c.h.b16 %v333
  %v1491 = vunpack.c.l.b16 %v334
  %v1492 = vunpack.c.h.b16 %v334
  %v1493 = vunpack.c.l.b16 %v335
  %v1494 = vunpack.c.h.b16 %v335
  %v1495 = vunpack.c.l.b16 %v336
  %v1496 = vunpack.c.h.b16 %v336
  %v1497 = vunpack.c.l.b16 %v337
  %v1498 = vunpack.c.h.b16 %v337
  %v1499 = vunpack.c.l.b16 %v338
  %v1500 = vunpack.c.h.b16 %v338
  %v1501 = vunpack.c.l.b16 %v339
  %v1502 = vunpack.c.h.b16 %v339
  %v1503 = vunpack.c.l.b16 %v340
  %v1504 = vunpack.c.h.b16 %v340
  %v1505 = vunpack.c.l.b16 %v341
  %v1506 = vunpack.c.h.b16 %v341
  %v1507 = vunpack.c.l.b16 %v342
  %v1508 = vunpack.c.h.b16 %v342
  %v1509 = vunpack.c.l.b16 %v343
  %v1510 = vunpack.c.h.b16 %v343
  %v1511 = vunpack.c.l.b16 %v344
  %v1512 = vunpack.c.h.b16 %v344
  %v1513 = vunpack.c.l.b16 %v345
  %v1514 = vunpack.c.h.b16 %v345
  %v1515 = vunpack.c.l.b16 %v346
  %v1516 = vunpack.c.h.b16 %v346
  %v1517 = vunpack.c.l.b16 %v347
  %v1518 = vunpack.c.h.b16 %v347
  %v1519 = vunpack.c.l.b16 %v348
  %v1520 = vunpack.c.h.b16 %v348
  %v1521 = vunpack.c.l.b16 %v349
  %v1522 = vunpack.c.h.b16 %v349
  %v1523 = vunpack.c.l.b16 %v350
  %v1524 = vunpack.c.h.b16 %v350
  %v1525 = vunpack.c.l.b16 %v351
  %v1526 = vunpack.c.h.b16 %v351
  %v1527 = vunpack.c.l.b16 %v352
  %v1528 = vunpack.c.h.b16 %v352
  %v1529 = vunpack.c.l.b16 %v353
  %v1530 = vunpack.c.h.b16 %v353
  %v1531 = vunpack.c.l.b16 %v354
  %v1532 = vunpack.c.h.b16 %v354
  %v1533 = vunpack.c.l.b16 %v355
  %v1534 = vunpack.c.h.b16 %v355
  %v1535 = vunpack.c.l.b16 %v356
  %v1536 = vunpack.c.h.b16 %v356
  %v1537 = vunpack.c.l.b16 %v357
  %v1538 = vunpack.c.h.b16 %v357
  %v1539 = vunpack.c.l.b16 %v358
  %v1540 = vunpack.c.h.b16 %v358
  %v1541 = vunpack.c.l.b16 %v359
  %v1542 = vunpack.c.h.b16 %v359
  %v1543 = vunpack.c.l.b16 %v360
  %v1544 = vunpack.c.h.b16 %v360
  %v1545 = vunpack.c.l.b16 %v361
  %v1546 = vunpack.c.h.b16 %v361
  %v1547 = vunpack.c.l.b16 %v362
  %v1548 = vunpack.c.h.b16 %v362
  %v1549 = vunpack.c.l.b16 %v363
  %v1550 = vunpack.c.h.b16 %v363
  %v1551 = vunpack.c.l.b16 %v364
  %v1552 = vunpack.c.h.b16 %v364
  %v1553 = vunpack.c.l.b16 %v365
  %v1554 = vunpack.c.h.b16 %v365
  %v1555 = vunpack.c.l.b16 %v366
  %v1556 = vunpack.c.h.b16 %v366
  %v1557 = vunpack.c.l.b16 %v367
  %v1558 = vunpack.c.h.b16 %v367
  %v1559 = vunpack.c.l.b16 %v368
  %v1560 = vunpack.c.h.b16 %v368
  %v1561 = vunpack.c.l.b16 %v369
  %v1562 = vunpack.c.h.b16 %v369
  %v1563 = vunpack.c.l.b16 %v370
  %v1564 = vunpack.c.h.b16 %v370
  %v1565 = vunpack.c.l.b16 %v371
  %v1566 = vunpack.c.h.b16 %v371
  %v1567 = vunpack.c.l.b16 %v372
  %v1568 = vunpack.c.h.b16 %v372
  %v1569 = vunpack.c.l.b16 %v373
  %v1570 = vunpack.c.h.b16 %v373
  %v1571 = vunpack.c.l.b16 %v374
  %v1572 = vunpack.c.h.b16 %v374
  %v1573 = vunpack.c.l.b16 %v375
  %v1574 = vunpack.c.h.b16 %v375
  %v1575 = vunpack.c.l.b16 %v376
  %v1576 = vunpack.c.h.b16 %v376
  %v1577 = vunpack.c.l.b16 %v377
  %v1578 = vunpack.c.h.b16 %v377
  %v1579 = vunpack.c.l.b16 %v378
  %v1580 = vunpack.c.h.b16 %v378
  %v1581 = vunpack.c.l.b16 %v379
  %v1582 = vunpack.c.h.b16 %v379
  %v1583 = vunpack.c.l.b16 %v380
  %v1584 = vunpack.c.h.b16 %v380
  %v1585 = vunpack.c.l.b16 %v381
  %v1586 = vunpack.c.h.b16 %v381
  %v1587 = vunpack.c.l.b16 %v382
  %v1588 = vunpack.c.h.b16 %v382
  %v1589 = vunpack.c.l.b16 %v383
  %v1590 = vunpack.c.h.b16 %v383
  %v1591 = vunpack.c.l.b16 %v384
  %v1592 = vunpack.c.h.b16 %v384
  %v1593 = vunpack.c.l.b16 %v385
  %v1594 = vunpack.c.h.b16 %v385
  %v1595 = vunpack.c.l.b16 %v386
  %v1596 = vunpack.c.h.b16 %v386
  %v1597 = vunpack.c.l.b16 %v387
  %v1598 = vunpack.c.h.b16 %v387
  %v1599 = vunpack.c.l.b16 %v388
  %v1600 = vunpack.c.h.b16 %v388
  %v1601 = vunpack.c.l.b16 %v389
  %v1602 = vunpack.c.h.b16 %v389
  %v1603 = vunpack.c.l.b16 %v390
  %v1604 = vunpack.c.h.b16 %v390
  %v1605 = vunpack.c.l.b16 %v391
  %v1606 = vunpack.c.h.b16 %v391
  %v1607 = vunpack.c.l.b16 %v392
  %v1608 = vunpack.c.h.b16 %v392
  %v1609 = vunpack.c.l.b16 %v393
  %v1610 = vunpack.c.h.b16 %v393
  %v1611 = vunpack.c.l.b16 %v394
  %v1612 = vunpack.c.h.b16 %v394
  %v1613 = vunpack.c.l.b16 %v395
  %v1614 = vunpack.c.h.b16 %v395
  %v1615 = vunpack.c.l.b16 %v396
  %v1616 = vunpack.c.h.b16 %v396
  %v1617 = vunpack.c.l.b16 %v397
  %v1618 = vunpack.c.h.b16 %v397
  %v1619 = vunpack.c.l.b16 %v398
  %v1620 = vunpack.c.h.b16 %v398
  %v1621 = vunpack.c.l.b16 %v399
  %v1622 = vunpack.c.h.b16 %v399
  %v1623 = vunpack.c.l.b16 %v400
  %v1624 = vunpack.c.h.b16 %v400
  %v1625 = vunpack.c.l.b16 %v401
  %v1626 = vunpack.c.h.b16 %v401
  %v1627 = vunpack.c.l.b16 %v402
  %v1628 = vunpack.c.h.b16 %v402
  %v1629 = vunpack.c.l.b16 %v403
  %v1630 = vunpack.c.h.b16 %v403
  %v1631 = vunpack.c.l.b16 %v404
  %v1632 = vunpack.c.h.b16 %v404
  %v1633 = vunpack.c.l.b16 %v405
  %v1634 = vunpack.c.h.b16 %v405
  %v1635 = vunpack.c.l.b16 %v406
  %v1636 = vunpack.c.h.b16 %v406
  %v1637 = vunpack.c.l.b16 %v407
  %v1638 = vunpack.c.h.b16 %v407
  %v1639 = vunpack.c.l.b16 %v408
  %v1640 = vunpack.c.h.b16 %v408
  %v1641 = vunpack.c.l.b16 %v409
  %v1642 = vunpack.c.h.b16 %v409
  %v1643 = vunpack.c.l.b16 %v410
  %v1644 = vunpack.c.h.b16 %v410
  %v1645 = vunpack.c.l.b16 %v411
  %v1646 = vunpack.c.h.b16 %v411
  %v1647 = vunpack.c.l.b16 %v412
  %v1648 = vunpack.c.h.b16 %v412
  %v1649 = vunpack.c.l.b16 %v413
  %v1650 = vunpack.c.h.b16 %v413
  %v1651 = vunpack.c.l.b16 %v414
  %v1652 = vunpack.c.h.b16 %v414
  %v1653 = vunpack.c.l.b16 %v415
  %v1654 = vunpack.c.h.b16 %v415
  %v1655 = vunpack.c.l.b16 %v416
  %v1656 = vunpack.c.h.b16 %v416
  %v1657 = vunpack.c.l.b16 %v417
  %v1658 = vunpack.c.h.b16 %v417
  %v1659 = vunpack.c.l.b16 %v418
  %v1660 = vunpack.c.h.b16 %v418
  %v1661 = vunpack.c.l.b16 %v419
  %v1662 = vunpack.c.h.b16 %v419
  %v1663 = vpack.c.b16 %v883, %v879
  %v1664 = vpack.c.b16 %v884, %v880
  %v1665 = vpack.c.b16 %v885, %v881
  %v1666 = vpack.c.b16 %v886, %v882
  %v1667 = vpack.c.b16 %v891, %v887
  %v1668 = vpack.c.b16 %v892, %v888
  %v1669 = vpack.c.b16 %v893, %v889
  %v1670 = vpack.c.b16 %v894, %v890
  %v1671 = vpack.c.b16 %v899, %v895
  %v1672 = vpack.c.b16 %v900, %v896
  %v1673 = vpack.c.b16 %v901, %v897
  %v1674 = vpack.c.b16 %v902, %v898
  %v1675 = vpack.c.b16 %v907, %v903
  %v1676 = vpack.c.b16 %v908, %v904
  %v1677 = vpack.c.b16 %v909, %v905
  %v1678 = vpack.c.b16 %v910, %v906
  %v1679 = vpack.c.b16 %v915, %v911
  %v1680 = vpack.c.b16 %v916, %v912
  %v1681 = vpack.c.b16 %v917, %v913
  %v1682 = vpack.c.b16 %v918, %v914
  %v1683 = vpack.c.b16 %v923, %v919
  %v1684 = vpack.c.b16 %v924, %v920
  %v1685 = vpack.c.b16 %v925, %v921
  %v1686 = vpack.c.b16 %v926, %v922
  %v1687 = vpack.c.b16 %v931, %v927
  %v1688 = vpack.c.b16 %v932, %v928
  %v1689 = vpack.c.b16 %v933, %v929
  %v1690 = vpack.c.b16 %v934, %v930
  %v1691 = vpack.c.b16 %v939, %v935
  %v1692 = vpack.c.b16 %v940, %v936
  %v1693 = vpack.c.b16 %v941, %v937
  %v1694 = vpack.c.b16 %v942, %v938
  %v1695 = vpack.c.b16 %v947, %v943
  %v1696 = vpack.c.b16 %v948, %v944
  %v1697 = vpack.c.b16 %v949, %v945
  %v1698 = vpack.c.b16 %v950, %v946
  %v1699 = vpack.c.b16 %v955, %v951
  %v1700 = vpack.c.b16 %v956, %v952
  %v1701 = vpack.c.b16 %v957, %v953
  %v1702 = vpack.c.b16 %v958, %v954
  %v1703 = vpack.c.b16 %v963, %v959
  %v1704 = vpack.c.b16 %v964, %v960
  %v1705 = vpack.c.b16 %v965, %v961
  %v1706 = vpack.c.b16 %v966, %v962
  %v1707 = vpack.c.b16 %v971, %v967
  %v1708 = vpack.c.b16 %v972, %v968
  %v1709 = vpack.c.b16 %v973, %v969
  %v1710 = vpack.c.b16 %v974, %v970
  %v1711 = vpack.c.b16 %v979, %v975
  %v1712 = vpack.c.b16 %v980, %v976
  %v1713 = vpack.c.b16 %v981, %v977
  %v1714 = vpack.c.b16 %v982, %v978
  %v1715 = vpack.c.b16 %v987, %v983
  %v1716 = vpack.c.b16 %v988, %v984
  %v1717 = vpack.c.b16 %v989, %v985
  %v1718 = vpack.c.b16 %v990, %v986
  %v1719 = vpack.c.b16 %v995, %v991
  %v1720 = vpack.c.b16 %v996, %v992
  %v1721 = vpack.c.b16 %v997, %v993
  %v1722 = vpack.c.b16 %v998, %v994
  %v1723 = vpack.c.b16 %v1003, %v999
  %v1724 = vpack.c.b16 %v1004, %v1000
  %v1725 = vpack.c.b16 %v1005, %v1001
  %v1726 = vpack.c.b16 %v1006, %v1002
  %v1727 = vpack.c.b16 %v1011, %v1007
  %v1728 = vpack.c.b16 %v1012, %v1008
  %v1729 = vpack.c.b16 %v1013, %v1009
  %v1730 = vpack.c.b16 %v1014, %v1010
  %v1731 = vpack.c.b16 %v1019, %v1015
  %v1732 = vpack.c.b16 %v1020, %v1016
  %v1733 = vpack.c.b16 %v1021, %v1017
  %v1734 = vpack.c.b16 %v1022, %v1018
  %v1735 = vpack.c.b16 %v1027, %v1023
  %v1736 = vpack.c.b16 %v1028, %v1024
  %v1737 = vpack.c.b16 %v1029, %v1025
  %v1738 = vpack.c.b16 %v1030, %v1026
  %v1739 = vpack.c.b16 %v1035, %v1031
  %v1740 = vpack.c.b16 %v1036, %v1032
  %v1741 = vpack.c.b16 %v1037, %v1033
  %v1742 = vpack.c.b16 %v1038, %v1034
  %v1743 = vpack.c.b16 %v1043, %v1039
  %v1744 = vpack.c.b16 %v1044, %v1040
  %v1745 = vpack.c.b16 %v1045, %v1041
  %v1746 = vpack.c.b16 %v1046, %v1042
  %v1747 = vpack.c.b16 %v1051, %v1047
  %v1748 = vpack.c.b16 %v1052, %v1048
  %v1749 = vpack.c.b16 %v1053, %v1049
  %v1750 = vpack.c.b16 %v1054, %v1050
  %v1751 = vpack.c.b16 %v1059, %v1055
  %v1752 = vpack.c.b16 %v1060, %v1056
  %v1753 = vpack.c.b16 %v1061, %v1057
  %v1754 = vpack.c.b16 %v1062, %v1058
  %v1755 = vpack.c.b16 %v1067, %v1063
  %v1756 = vpack.c.b16 %v1068, %v1064
  %v1757 = vpack.c.b16 %v1069, %v1065
  %v1758 = vpack.c.b16 %v1070, %v1066
  %v1759 = vpack.c.b16 %v1075, %v1071
  %v1760 = vpack.c.b16 %v1076, %v1072
  %v1761 = vpack.c.b16 %v1077, %v1073
  %v1762 = vpack.c.b16 %v1078, %v1074
  %v1763 = vpack.c.b16 %v1083, %v1079
  %v1764 = vpack.c.b16 %v1084, %v1080
  %v1765 = vpack.c.b16 %v1085, %v1081
  %v1766 = vpack.c.b16 %v1086, %v1082
  %v1767 = vpack.c.b16 %v1091, %v1087
  %v1768 = vpack.c.b16 %v1092, %v1088
  %v1769 = vpack.c.b16 %v1093, %v1089
  %v1770 = vpack.c.b16 %v1094, %v1090
  %v1771 = vpack.c.b16 %v1099, %v1095
  %v1772 = vpack.c.b16 %v1100, %v1096
  %v1773 = vpack.c.b16 %v1101, %v1097
  %v1774 = vpack.c.b16 %v1102, %v1098
  %v1775 = vpack.c.b16 %v1107, %v1103
  %v1776 = vpack.c.b16 %v1108, %v1104
  %v1777 = vpack.c.b16 %v1109, %v1105
  %v1778 = vpack.c.b16 %v1110, %v1106
  %v1779 = vpack.c.b16 %v1115, %v1111
  %v1780 = vpack.c.b16 %v1116, %v1112
  %v1781 = vpack.c.b16 %v1117, %v1113
  %v1782 = vpack.c.b16 %v1118, %v1114
  %v1783 = vpack.c.b16 %v1123, %v1119
  %v1784 = vpack.c.b16 %v1124, %v1120
  %v1785 = vpack.c.b16 %v1125, %v1121
  %v1786 = vpack.c.b16 %v1126, %v1122
  %v1787 = vpack.c.b16 %v1131, %v1127
  %v1788 = vpack.c.b16 %v1132, %v1128
  %v1789 = vpack.c.b16 %v1133, %v1129
  %v1790 = vpack.c.b16 %v1134, %v1130
  %v1791 = vpack.c.b16 %v1139, %v1135
  %v1792 = vpack.c.b16 %v1140, %v1136
  %v1793 = vpack.c.b16 %v1141, %v1137
  %v1794 = vpack.c.b16 %v1142, %v1138
  %v1795 = vpack.c.b16 %v1147, %v1143
  %v1796 = vpack.c.b16 %v1148, %v1144
  %v1797 = vpack.c.b16 %v1149, %v1145
  %v1798 = vpack.c.b16 %v1150, %v1146
  %v1799 = vpack.c.b16 %v1155, %v1151
  %v1800 = vpack.c.b16 %v1156, %v1152
  %v1801 = vpack.c.b16 %v1157, %v1153
  %v1802 = vpack.c.b16 %v1158, %v1154
  %v1803 = vpack.c.b16 %v1163, %v1159
  %v1804 = vpack.c.b16 %v1164, %v1160
  %v1805 = vpack.c.b16 %v1165, %v1161
  %v1806 = vpack.c.b16 %v1166, %v1162
  %v1807 = vpack.c.b16 %v1171, %v1167
  %v1808 = vpack.c.b16 %v1172, %v1168
  %v1809 = vpack.c.b16 %v1173, %v1169
  %v1810 = vpack.c.b16 %v1174, %v1170
  %v1811 = vpack.c.b16 %v1179, %v1175
  %v1812 = vpack.c.b16 %v1180, %v1176
  %v1813 = vpack.c.b16 %v1181, %v1177
  %v1814 = vpack.c.b16 %v1182, %v1178
  %v1815 = vpack.c.b16 %v1187, %v1183
  %v1816 = vpack.c.b16 %v1188, %v1184
  %v1817 = vpack.c.b16 %v1189, %v1185
  %v1818 = vpack.c.b16 %v1190, %v1186
  %v1819 = vpack.c.b16 %v1195, %v1191
  %v1820 = vpack.c.b16 %v1196, %v1192
  %v1821 = vpack.c.b16 %v1197, %v1193
  %v1822 = vpack.c.b16 %v1198, %v1194
  %v1823 = vpack.c.b16 %v1203, %v1199
  %v1824 = vpack.c.b16 %v1204, %v1200
  %v1825 = vpack.c.b16 %v1205, %v1201
  %v1826 = vpack.c.b16 %v1206, %v1202
  %v1827 = vpack.c.b16 %v1211, %v1207
  %v1828 = vpack.c.b16 %v1212, %v1208
  %v1829 = vpack.c.b16 %v1213, %v1209
  %v1830 = vpack.c.b16 %v1214, %v1210
  %v1831 = vpack.c.b16 %v1219, %v1215
  %v1832 = vpack.c.b16 %v1220, %v1216
  %v1833 = vpack.c.b16 %v1221, %v1217
  %v1834 = vpack.c.b16 %v1222, %v1218
  %v1835 = vpack.c.b16 %v1227, %v1223
  %v1836 = vpack.c.b16 %v1228, %v1224
  %v1837 = vpack.c.b16 %v1229, %v1225
  %v1838 = vpack.c.b16 %v1230, %v1226
  %v1839 = vpack.c.b16 %v1235, %v1231
  %v1840 = vpack.c.b16 %v1236, %v1232
  %v1841 = vpack.c.b16 %v1237, %v1233
  %v1842 = vpack.c.b16 %v1238, %v1234
  %v1843 = vpack.c.b16 %v1243, %v1239
  %v1844 = vpack.c.b16 %v1244, %v1240
  %v1845 = vpack.c.b16 %v1245, %v1241
  %v1846 = vpack.c.b16 %v1246, %v1242
  %v1847 = vpack.c.b16 %v1251, %v1247
  %v1848 = vpack.c.b16 %v1252, %v1248
  %v1849 = vpack.c.b16 %v1253, %v1249
  %v1850 = vpack.c.b16 %v1254, %v1250
  %v1851 = vpack.c.b16 %v1259, %v1255
  %v1852 = vpack.c.b16 %v1260, %v1256
  %v1853 = vpack.c.b16 %v1261, %v1257
  %v1854 = vpack.c.b16 %v1262, %v1258
  %v1855 = vpack.c.b16 %v1267, %v1263
  %v1856 = vpack.c.b16 %v1268, %v1264
  %v1857 = vpack.c.b16 %v1269, %v1265
  %v1858 = vpack.c.b16 %v1270, %v1266
  %v1859 = vpack.c.b16 %v1275, %v1271
  %v1860 = vpack.c.b16 %v1276, %v1272
  %v1861 = vpack.c.b16 %v1277, %v1273
  %v1862 = vpack.c.b16 %v1278, %v1274
  %v1863 = vpack.c.b16 %v1283, %v1279
  %v1864 = vpack.c.b16 %v1284, %v1280
  %v1865 = vpack.c.b16 %v1285, %v1281
  %v1866 = vpack.c.b16 %v1286, %v1282
  %v1867 = vpack.c.b16 %v1291, %v1287
  %v1868 = vpack.c.b16 %v1292, %v1288
  %v1869 = vpack.c.b16 %v1293, %v1289
  %v1870 = vpack.c.b16 %v1294, %v1290
  %v1871 = vpack.c.b16 %v1299, %v1295
  %v1872 = vpack.c.b16 %v1300, %v1296
  %v1873 = vpack.c.b16 %v1301, %v1297
  %v1874 = vpack.c.b16 %v1302, %v1298
  %v1875 = vpack.c.b16 %v1307, %v1303
  %v1876 = vpack.c.b16 %v1308, %v1304
  %v1877 = vpack.c.b16 %v1309, %v1305
  %v1878 = vpack.c.b16 %v1310, %v1306
  %v1879 = vpack.c.b16 %v1315, %v1311
  %v1880 = vpack.c.b16 %v1316, %v1312
  %v1881 = vpack.c.b16 %v1317, %v1313
  %v1882 = vpack.c.b16 %v1318, %v1314
  %v1883 = vpack.c.b16 %v1323, %v1319
  %v1884 = vpack.c.b16 %v1324, %v1320
  %v1885 = vpack.c.b16 %v1325, %v1321
  %v1886 = vpack.c.b16 %v1326, %v1322
  %v1887 = vpack.c.b16 %v1331, %v1327
  %v1888 = vpack.c.b16 %v1332, %v1328
  %v1889 = vpack.c.b16 %v1333, %v1329
  %v1890 = vpack.c.b16 %v1334, %v1330
  %v1891 = vpack.c.b16 %v1339, %v1335
  %v1892 = vpack.c.b16 %v1340, %v1336
  %v1893 = vpack.c.b16 %v1341, %v1337
  %v1894 = vpack.c.b16 %v1342, %v1338
  %v1895 = vpack.c.b16 %v1347, %v1343
  %v1896 = vpack.c.b16 %v1348, %v1344
  %v1897 = vpack.c.b16 %v1349, %v1345
  %v1898 = vpack.c.b16 %v1350, %v1346
  %v1899 = vpack.c.b16 %v1355, %v1351
  %v1900 = vpack.c.b16 %v1356, %v1352
  %v1901 = vpack.c.b16 %v1357, %v1353
  %v1902 = vpack.c.b16 %v1358, %v1354
  %v1903 = vpack.c.b16 %v1363, %v1359
  %v1904 = vpack.c.b16 %v1364, %v1360
  %v1905 = vpack.c.b16 %v1365, %v1361
  %v1906 = vpack.c.b16 %v1366, %v1362
  %v1907 = vpack.c.b16 %v1371, %v1367
  %v1908 = vpack.c.b16 %v1372, %v1368
  %v1909 = vpack.c.b16 %v1373, %v1369
  %v1910 = vpack.c.b16 %v1374, %v1370
  %v1911 = vpack.c.b16 %v1379, %v1375
  %v1912 = vpack.c.b16 %v1380, %v1376
  %v1913 = vpack.c.b16 %v1381, %v1377
  %v1914 = vpack.c.b16 %v1382, %v1378
  %v1915 = vpack.c.b16 %v1387, %v1383
  %v1916 = vpack.c.b16 %v1388, %v1384
  %v1917 = vpack.c.b16 %v1389, %v1385
  %v1918 = vpack.c.b16 %v1390, %v1386
  %v1919 = vpack.c.b16 %v1395, %v1391
  %v1920 = vpack.c.b16 %v1396, %v1392
  %v1921 = vpack.c.b16 %v1397, %v1393
  %v1922 = vpack.c.b16 %v1398, %v1394
  %v1923 = vpack.c.b16 %v1403, %v1399
  %v1924 = vpack.c.b16 %v1404, %v1400
  %v1925 = vpack.c.b16 %v1405, %v1401
  %v1926 = vpack.c.b16 %v1406, %v1402
  %v1927 = vpack.c.b16 %v1411, %v1407
  %v1928 = vpack.c.b16 %v1412, %v1408
  %v1929 = vpack.c.b16 %v1413, %v1409
  %v1930 = vpack.c.b16 %v1414, %v1410
  %v1931 = vpack.c.b16 %v1419, %v1415
  %v1932 = vpack.c.b16 %v1420, %v1416
  %v1933 = vpack.c.b16 %v1421, %v1417
  %v1934 = vpack.c.b16 %v1422, %v1418
  %v1935 = vpack.c.b16 %v1427, %v1423
  %v1936 = vpack.c.b16 %v1428, %v1424
  %v1937 = vpack.c.b16 %v1429, %v1425
  %v1938 = vpack.c.b16 %v1430, %v1426
  %v1939 = vpack.c.b16 %v1435, %v1431
  %v1940 = vpack.c.b16 %v1436, %v1432
  %v1941 = vpack.c.b16 %v1437, %v1433
  %v1942 = vpack.c.b16 %v1438, %v1434
  %v1943 = vpack.c.b16 %v1443, %v1439
  %v1944 = vpack.c.b16 %v1444, %v1440
  %v1945 = vpack.c.b16 %v1445, %v1441
  %v1946 = vpack.c.b16 %v1446, %v1442
  %v1947 = vpack.c.b16 %v1451, %v1447
  %v1948 = vpack.c.b16 %v1452, %v1448
  %v1949 = vpack.c.b16 %v1453, %v1449
  %v1950 = vpack.c.b16 %v1454, %v1450
  %v1951 = vpack.c.b16 %v1459, %v1455
  %v1952 = vpack.c.b16 %v1460, %v1456
  %v1953 = vpack.c.b16 %v1461, %v1457
  %v1954 = vpack.c.b16 %v1462, %v1458
  %v1955 = vpack.c.b16 %v1467, %v1463
  %v1956 = vpack.c.b16 %v1468, %v1464
  %v1957 = vpack.c.b16 %v1469, %v1465
  %v1958 = vpack.c.b16 %v1470, %v1466
  %v1959 = vpack.c.b16 %v1475, %v1471
  %v1960 = vpack.c.b16 %v1476, %v1472
  %v1961 = vpack.c.b16 %v1477, %v1473
  %v1962 = vpack.c.b16 %v1478, %v1474
  %v1963 = vpack.c.b16 %v1483, %v1479
  %v1964 = vpack.c.b16 %v1484, %v1480
  %v1965 = vpack.c.b16 %v1485, %v1481
  %v1966 = vpack.c.b16 %v1486, %v1482
  %v1967 = vpack.c.b16 %v1491, %v1487
  %v1968 = vpack.c.b16 %v1492, %v1488
  %v1969 = vpack.c.b16 %v1493, %v1489
  %v1970 = vpack.c.b16 %v1494, %v1490
  %v1971 = vpack.c.b16 %v1499, %v1495
  %v1972 = vpack.c.b16 %v1500, %v1496
  %v1973 = vpack.c.b16 %v1501, %v1497
  %v1974 = vpack.c.b16 %v1502, %v1498
  %v1975 = vpack.c.b16 %v1507, %v1503
  %v1976 = vpack.c.b16 %v1508, %v1504
  %v1977 = vpack.c.b16 %v1509, %v1505
  %v1978 = vpack.c.b16 %v1510, %v1506
  %v1979 = vpack.c.b16 %v1515, %v1511
  %v1980 = vpack.c.b16 %v1516, %v1512
  %v1981 = vpack.c.b16 %v1517, %v1513
  %v1982 = vpack.c.b16 %v1518, %v1514
  %v1983 = vpack.c.b16 %v1523, %v1519
  %v1984 = vpack.c.b16 %v1524, %v1520
  %v1985 = vpack.c.b16 %v1525, %v1521
  %v1986 = vpack.c.b16 %v1526, %v1522
  %v1987 = vpack.c.b16 %v1531, %v1527
  %v1988 = vpack.c.b16 %v1532, %v1528
  %v1989 = vpack.c.b16 %v1533, %v1529
  %v1990 = vpack.c.b16 %v1534, %v1530
  %v1991 = vpack.c.b16 %v1539, %v1535
  %v1992 = vpack.c.b16 %v1540, %v1536
  %v1993 = vpack.c.b16 %v1541, %v1537
  %v1994 = vpack.c.b16 %v1542, %v1538
  %v1995 = vpack.c.b16 %v1547, %v1543
  %v1996 = vpack.c.b16 %v1548, %v1544
  %v1997 = vpack.c.b16 %v1549, %v1545
  %v1998 = vpack.c.b16 %v1550, %v1546
  %v1999 = vpack.c.b16 %v1555, %v1551
  %v2000 = vpack.c.b16 %v1556, %v1552
  %v2001 = vpack.c.b16 %v1557, %v1553
  %v2002 = vpack.c.b16 %v1558, %v1554
  %v2003 = vpack.c.b16 %v1563, %v1559
  %v2004 = vpack.c.b16 %v1564, %v1560
  %v2005 = vpack.c.b16 %v1565, %v1561
  %v2006 = vpack.c.b16 %v1566, %v1562
  %v2007 = vpack.c.b16 %v1571, %v1567
  %v2008 = vpack.c.b16 %v1572, %v1568
  %v2009 = vpack.c.b16 %v1573, %v1569
  %v2010 = vpack.c.b16 %v1574, %v1570
  %v2011 = vpack.c.b16 %v1579, %v1575
  %v2012 = vpack.c.b16 %v1580, %v1576
  %v2013 = vpack.c.b16 %v1581, %v1577
  %v2014 = vpack.c.b16 %v1582, %v1578
  %v2015 = vpack.c.b16 %v1587, %v1583
  %v2016 = vpack.c.b16 %v1588, %v1584
  %v2017 = vpack.c.b16 %v1589, %v1585
  %v2018 = vpack.c.b16 %v1590, %v1586
  %v2019 = vpack.c.b16 %v1595, %v1591
  %v2020 = vpack.c.b16 %v1596, %v1592
  %v2021 = vpack.c.b16 %v1597, %v1593
  %v2022 = vpack.c.b16 %v1598, %v1594
  %v2023 = vpack.c.b16 %v1603, %v1599
  %v2024 = vpack.c.b16 %v1604, %v1600
  %v2025 = vpack.c.b16 %v1605, %v1601
  %v2026 = vpack.c.b16 %v1606, %v1602
  %v2027 = vpack.c.b16 %v1611, %v1607
  %v2028 = vpack.c.b16 %v1612, %v1608
  %v2029 = vpack.c.b16 %v1613, %v1609
  %v2030 = vpack.c.b16 %v1614, %v1610
  %v2031 = vpack.c.b16 %v1619, %v1615
  %v2032 = vpack.c.b16 %v1620, %v1616
  %v2033 = vpack.c.b16 %v1621, %v1617
  %v2034 = vpack.c.b16 %v1622, %v1618
  %v2035 = vpack.c.b16 %v1627, %v1623
  %v2036 = vpack.c.b16 %v1628, %v1624
  %v2037 = vpack.c.b16 %v1629, %v1625
  %v2038 = vpack.c.b16 %v1630, %v1626
  %v2039 = vpack.c.b16 %v1635, %v1631
  %v2040 = vpack.c.b16 %v1636, %v1632
  %v2041 = vpack.c.b16 %v1637, %v1633
  %v2042 = vpack.c.b16 %v1638, %v1634
  %v2043 = vpack.c.b16 %v1643, %v1639
  %v2044 = vpack.c.b16 %v1644, %v1640
  %v2045 = vpack.c.b16 %v1645, %v1641
  %v2046 = vpack.c.b16 %v1646, %v1642
  %v2047 = vpack.c.b16 %v1651, %v1647
  %v2048 = vpack.c.b16 %v1652, %v1648
  %v2049 = vpack.c.b16 %v1653, %v1649
  %v2050 = vpack.c.b16 %v1654, %v1650
  %v2051 = vpack.c.b16 %v1659, %v1655
  %v2052 = vpack.c.b16 %v1660, %v1656
  %v2053 = vpack.c.b16 %v1661, %v1657
  %v2054 = vpack.c.b16 %v1662, %v1658
  %vm2447 = vcmask 261120
  %v2449 = vsel %vm2447, %v474, 0
  %2451 = vmatprep.subr.bf16.mxu0 %v1664
  %2452 = vmatpush1.bf16.msra.mxu0 %v1663
  %2453 = vmatprep.subr.bf16.mxu0 %v1668
  %2454 = vmatpush1.bf16.msra.mxu0 %v1667
  %2455 = vmatprep.subr.bf16.mxu0 %v1672
  %2456 = vmatpush1.bf16.msra.mxu0 %v1671
  %2457 = vmatprep.subr.bf16.mxu0 %v1676
  %2458 = vmatpush1.bf16.msra.mxu0 %v1675
  %2459 = vmatprep.subr.bf16.mxu0 %v1680
  %2460 = vmatpush1.bf16.msra.mxu0 %v1679
  %2461 = vmatprep.subr.bf16.mxu0 %v1684
  %2462 = vmatpush1.bf16.msra.mxu0 %v1683
  %2463 = vmatprep.subr.bf16.mxu0 %v1688
  %2464 = vmatpush1.bf16.msra.mxu0 %v1687
  %2465 = vmatprep.subr.bf16.mxu0 %v1692
  %2466 = vmatpush1.bf16.msra.mxu0 %v1691
  %2467 = vmatprep.subr.bf16.mxu0 %v1696
  %2468 = vmatpush1.bf16.msra.mxu0 %v1695
  %2469 = vmatprep.subr.bf16.mxu0 %v1700
  %2470 = vmatpush1.bf16.msra.mxu0 %v1699
  %2471 = vmatprep.subr.bf16.mxu0 %v1704
  %2472 = vmatpush1.bf16.msra.mxu0 %v1703
  %2473 = vmatprep.subr.bf16.mxu0 %v1708
  %2474 = vmatpush1.bf16.msra.mxu0 %v1707
  %2475 = vmatprep.subr.bf16.mxu0 %v1712
  %2476 = vmatpush1.bf16.msra.mxu0 %v1711
  %2477 = vmatprep.subr.bf16.mxu0 %v1716
  %2478 = vmatpush1.bf16.msra.mxu0 %v1715
  %2479 = vmatprep.subr.bf16.mxu0 %v1720
  %2480 = vmatpush1.bf16.msra.mxu0 %v1719
  %2481 = vmatprep.subr.bf16.mxu0 %v1724
  %2482 = vmatpush1.bf16.msra.mxu0 %v1723
  %2483 = vmatprep.mubr.bf16.mxu0 %v463
  %2484 = vmatmul.mubr.bf16.gmra.mrb[0].mxu0 %v462
  %v2485 = vpop.f32.mrb[0].mxu0
  %v2486 = vadd.f32 %v425, %v2485
  %v2487 = vpop.f32.mrb[0].mxu0
  %v2488 = vadd.f32 %v429, %v2487
  %v2489 = vpop.f32.mrb[0].mxu0
  %v2490 = vpop.f32.mrb[0].mxu0
  %2491 = vdwg.mxu0
  %2492 = vmatprep.subr.bf16.mxu0 %v1728
  %2493 = vmatpush1.bf16.msra.mxu0 %v1727
  %2494 = vmatprep.subr.bf16.mxu0 %v1732
  %2495 = vmatpush1.bf16.msra.mxu0 %v1731
  %2496 = vmatprep.subr.bf16.mxu0 %v1736
  %2497 = vmatpush1.bf16.msra.mxu0 %v1735
  %2498 = vmatprep.subr.bf16.mxu0 %v1740
  %2499 = vmatpush1.bf16.msra.mxu0 %v1739
  %2500 = vmatprep.subr.bf16.mxu0 %v1744
  %2501 = vmatpush1.bf16.msra.mxu0 %v1743
  %2502 = vmatprep.subr.bf16.mxu0 %v1748
  %2503 = vmatpush1.bf16.msra.mxu0 %v1747
  %2504 = vmatprep.subr.bf16.mxu0 %v1752
  %2505 = vmatpush1.bf16.msra.mxu0 %v1751
  %2506 = vmatprep.subr.bf16.mxu0 %v1756
  %2507 = vmatpush1.bf16.msra.mxu0 %v1755
  %2508 = vmatprep.subr.bf16.mxu0 %v1760
  %2509 = vmatpush1.bf16.msra.mxu0 %v1759
  %2510 = vmatprep.subr.bf16.mxu0 %v1764
  %2511 = vmatpush1.bf16.msra.mxu0 %v1763
  %2512 = vmatprep.subr.bf16.mxu0 %v1768
  %2513 = vmatpush1.bf16.msra.mxu0 %v1767
  %2514 = vmatprep.subr.bf16.mxu0 %v1772
  %2515 = vmatpush1.bf16.msra.mxu0 %v1771
  %2516 = vmatprep.subr.bf16.mxu0 %v1776
  %2517 = vmatpush1.bf16.msra.mxu0 %v1775
  %2518 = vmatprep.subr.bf16.mxu0 %v1780
  %2519 = vmatpush1.bf16.msra.mxu0 %v1779
  %2520 = vmatprep.subr.bf16.mxu0 %v1784
  %2521 = vmatpush1.bf16.msra.mxu0 %v1783
  %2522 = vmatprep.subr.bf16.mxu0 %v1788
  %2523 = vmatpush1.bf16.msra.mxu0 %v1787
  %2524 = vmatprep.mubr.bf16.mxu0 %v465
  %2525 = vmatmul.mubr.bf16.gmra.mrb[0].mxu0 %v464
  %v2526 = vpop.f32.mrb[0].mxu0
  %v2527 = vadd.f32 %v2486, %v2526
  %v2528 = vpop.f32.mrb[0].mxu0
  %v2529 = vadd.f32 %v2488, %v2528
  %v2530 = vpop.f32.mrb[0].mxu0
  %v2531 = vpop.f32.mrb[0].mxu0
  %2532 = vdwg.mxu0
  %2533 = vmatprep.subr.bf16.mxu0 %v1792
  %2534 = vmatpush1.bf16.msra.mxu0 %v1791
  %2535 = vmatprep.subr.bf16.mxu0 %v1796
  %2536 = vmatpush1.bf16.msra.mxu0 %v1795
  %2537 = vmatprep.subr.bf16.mxu0 %v1800
  %2538 = vmatpush1.bf16.msra.mxu0 %v1799
  %2539 = vmatprep.subr.bf16.mxu0 %v1804
  %2540 = vmatpush1.bf16.msra.mxu0 %v1803
  %2541 = vmatprep.subr.bf16.mxu0 %v1808
  %2542 = vmatpush1.bf16.msra.mxu0 %v1807
  %2543 = vmatprep.subr.bf16.mxu0 %v1812
  %2544 = vmatpush1.bf16.msra.mxu0 %v1811
  %2545 = vmatprep.subr.bf16.mxu0 %v1816
  %2546 = vmatpush1.bf16.msra.mxu0 %v1815
  %2547 = vmatprep.subr.bf16.mxu0 %v1820
  %2548 = vmatpush1.bf16.msra.mxu0 %v1819
  %2549 = vmatprep.subr.bf16.mxu0 %v1824
  %2550 = vmatpush1.bf16.msra.mxu0 %v1823
  %2551 = vmatprep.subr.bf16.mxu0 %v1828
  %2552 = vmatpush1.bf16.msra.mxu0 %v1827
  %2553 = vmatprep.subr.bf16.mxu0 %v1832
  %2554 = vmatpush1.bf16.msra.mxu0 %v1831
  %2555 = vmatprep.subr.bf16.mxu0 %v1836
  %2556 = vmatpush1.bf16.msra.mxu0 %v1835
  %2557 = vmatprep.subr.bf16.mxu0 %v1840
  %2558 = vmatpush1.bf16.msra.mxu0 %v1839
  %2559 = vmatprep.subr.bf16.mxu0 %v1844
  %2560 = vmatpush1.bf16.msra.mxu0 %v1843
  %2561 = vmatprep.subr.bf16.mxu0 %v1848
  %2562 = vmatpush1.bf16.msra.mxu0 %v1847
  %2563 = vmatprep.subr.bf16.mxu0 %v1852
  %2564 = vmatpush1.bf16.msra.mxu0 %v1851
  %2565 = vmatprep.mubr.bf16.mxu0 %v467
  %2566 = vmatmul.mubr.bf16.gmra.mrb[0].mxu0 %v466
  %v2567 = vpop.f32.mrb[0].mxu0
  %v2568 = vadd.f32 %v2527, %v2567
  %v2569 = vpop.f32.mrb[0].mxu0
  %v2570 = vadd.f32 %v2529, %v2569
  %v2571 = vpop.f32.mrb[0].mxu0
  %v2572 = vpop.f32.mrb[0].mxu0
  %2573 = vdwg.mxu0
  %2574 = vmatprep.subr.bf16.mxu0 %v1856
  %2575 = vmatpush1.bf16.msra.mxu0 %v1855
  %2576 = vmatprep.subr.bf16.mxu0 %v1860
  %2577 = vmatpush1.bf16.msra.mxu0 %v1859
  %2578 = vmatprep.subr.bf16.mxu0 %v1864
  %2579 = vmatpush1.bf16.msra.mxu0 %v1863
  %2580 = vmatprep.subr.bf16.mxu0 %v1868
  %2581 = vmatpush1.bf16.msra.mxu0 %v1867
  %2582 = vmatprep.subr.bf16.mxu0 %v1872
  %2583 = vmatpush1.bf16.msra.mxu0 %v1871
  %2584 = vmatprep.subr.bf16.mxu0 %v1876
  %2585 = vmatpush1.bf16.msra.mxu0 %v1875
  %2586 = vmatprep.subr.bf16.mxu0 %v1880
  %2587 = vmatpush1.bf16.msra.mxu0 %v1879
  %2588 = vmatprep.subr.bf16.mxu0 %v1884
  %2589 = vmatpush1.bf16.msra.mxu0 %v1883
  %2590 = vmatprep.subr.bf16.mxu0 %v1888
  %2591 = vmatpush1.bf16.msra.mxu0 %v1887
  %2592 = vmatprep.subr.bf16.mxu0 %v1892
  %2593 = vmatpush1.bf16.msra.mxu0 %v1891
  %2594 = vmatprep.subr.bf16.mxu0 %v1896
  %2595 = vmatpush1.bf16.msra.mxu0 %v1895
  %2596 = vmatprep.subr.bf16.mxu0 %v1900
  %2597 = vmatpush1.bf16.msra.mxu0 %v1899
  %2598 = vmatprep.subr.bf16.mxu0 %v1904
  %2599 = vmatpush1.bf16.msra.mxu0 %v1903
  %2600 = vmatprep.subr.bf16.mxu0 %v1908
  %2601 = vmatpush1.bf16.msra.mxu0 %v1907
  %2602 = vmatprep.subr.bf16.mxu0 %v1912
  %2603 = vmatpush1.bf16.msra.mxu0 %v1911
  %2604 = vmatprep.subr.bf16.mxu0 %v1916
  %2605 = vmatpush1.bf16.msra.mxu0 %v1915
  %2606 = vmatprep.mubr.bf16.mxu0 %v469
  %2607 = vmatmul.mubr.bf16.gmra.mrb[0].mxu0 %v468
  %v2608 = vpop.f32.mrb[0].mxu0
  %v2609 = vadd.f32 %v2568, %v2608
  %v2610 = vpop.f32.mrb[0].mxu0
  %v2611 = vadd.f32 %v2570, %v2610
  %v2612 = vpop.f32.mrb[0].mxu0
  %v2613 = vpop.f32.mrb[0].mxu0
  %2614 = vdwg.mxu0
  %2615 = vmatprep.subr.bf16.mxu0 %v1920
  %2616 = vmatpush1.bf16.msra.mxu0 %v1919
  %2617 = vmatprep.subr.bf16.mxu0 %v1924
  %2618 = vmatpush1.bf16.msra.mxu0 %v1923
  %2619 = vmatprep.subr.bf16.mxu0 %v1928
  %2620 = vmatpush1.bf16.msra.mxu0 %v1927
  %2621 = vmatprep.subr.bf16.mxu0 %v1932
  %2622 = vmatpush1.bf16.msra.mxu0 %v1931
  %2623 = vmatprep.subr.bf16.mxu0 %v1936
  %2624 = vmatpush1.bf16.msra.mxu0 %v1935
  %2625 = vmatprep.subr.bf16.mxu0 %v1940
  %2626 = vmatpush1.bf16.msra.mxu0 %v1939
  %2627 = vmatprep.subr.bf16.mxu0 %v1944
  %2628 = vmatpush1.bf16.msra.mxu0 %v1943
  %2629 = vmatprep.subr.bf16.mxu0 %v1948
  %2630 = vmatpush1.bf16.msra.mxu0 %v1947
  %2631 = vmatprep.subr.bf16.mxu0 %v1952
  %2632 = vmatpush1.bf16.msra.mxu0 %v1951
  %2633 = vmatprep.subr.bf16.mxu0 %v1956
  %2634 = vmatpush1.bf16.msra.mxu0 %v1955
  %2635 = vmatprep.subr.bf16.mxu0 %v1960
  %2636 = vmatpush1.bf16.msra.mxu0 %v1959
  %2637 = vmatprep.subr.bf16.mxu0 %v1964
  %2638 = vmatpush1.bf16.msra.mxu0 %v1963
  %2639 = vmatprep.subr.bf16.mxu0 %v1968
  %2640 = vmatpush1.bf16.msra.mxu0 %v1967
  %2641 = vmatprep.subr.bf16.mxu0 %v1972
  %2642 = vmatpush1.bf16.msra.mxu0 %v1971
  %2643 = vmatprep.subr.bf16.mxu0 %v1976
  %2644 = vmatpush1.bf16.msra.mxu0 %v1975
  %2645 = vmatprep.subr.bf16.mxu0 %v1980
  %2646 = vmatpush1.bf16.msra.mxu0 %v1979
  %2647 = vmatprep.mubr.bf16.mxu0 %v471
  %2648 = vmatmul.mubr.bf16.gmra.mrb[0].mxu0 %v470
  %v2649 = vpop.f32.mrb[0].mxu0
  %v2650 = vadd.f32 %v2609, %v2649
  %v2651 = vpop.f32.mrb[0].mxu0
  %v2652 = vadd.f32 %v2611, %v2651
  %v2653 = vpop.f32.mrb[0].mxu0
  %v2654 = vpop.f32.mrb[0].mxu0
  %2655 = vdwg.mxu0
  %2656 = vmatprep.subr.bf16.mxu0 %v1984
  %2657 = vmatpush1.bf16.msra.mxu0 %v1983
  %2658 = vmatprep.subr.bf16.mxu0 %v1988
  %2659 = vmatpush1.bf16.msra.mxu0 %v1987
  %2660 = vmatprep.subr.bf16.mxu0 %v1992
  %2661 = vmatpush1.bf16.msra.mxu0 %v1991
  %2662 = vmatprep.subr.bf16.mxu0 %v1996
  %2663 = vmatpush1.bf16.msra.mxu0 %v1995
  %2664 = vmatprep.subr.bf16.mxu0 %v2000
  %2665 = vmatpush1.bf16.msra.mxu0 %v1999
  %2666 = vmatprep.subr.bf16.mxu0 %v2004
  %2667 = vmatpush1.bf16.msra.mxu0 %v2003
  %2668 = vmatprep.subr.bf16.mxu0 %v2008
  %2669 = vmatpush1.bf16.msra.mxu0 %v2007
  %2670 = vmatprep.subr.bf16.mxu0 %v2012
  %2671 = vmatpush1.bf16.msra.mxu0 %v2011
  %2672 = vmatprep.subr.bf16.mxu0 %v2016
  %2673 = vmatpush1.bf16.msra.mxu0 %v2015
  %2674 = vmatprep.subr.bf16.mxu0 %v2020
  %2675 = vmatpush1.bf16.msra.mxu0 %v2019
  %2676 = vmatprep.subr.bf16.mxu0 %v2024
  %2677 = vmatpush1.bf16.msra.mxu0 %v2023
  %2678 = vmatprep.subr.bf16.mxu0 %v2028
  %2679 = vmatpush1.bf16.msra.mxu0 %v2027
  %2680 = vmatprep.subr.bf16.mxu0 %v2032
  %2681 = vmatpush1.bf16.msra.mxu0 %v2031
  %2682 = vmatprep.subr.bf16.mxu0 %v2036
  %2683 = vmatpush1.bf16.msra.mxu0 %v2035
  %2684 = vmatprep.subr.bf16.mxu0 %v2040
  %2685 = vmatpush1.bf16.msra.mxu0 %v2039
  %2686 = vmatprep.subr.bf16.mxu0 %v2044
  %2687 = vmatpush1.bf16.msra.mxu0 %v2043
  %2688 = vmatprep.mubr.bf16.mxu0 %v473
  %2689 = vmatmul.mubr.bf16.gmra.mrb[0].mxu0 %v472
  %v2690 = vpop.f32.mrb[0].mxu0
  %v2691 = vadd.f32 %v2650, %v2690
  %v2692 = vpop.f32.mrb[0].mxu0
  %v2693 = vadd.f32 %v2652, %v2692
  %v2694 = vpop.f32.mrb[0].mxu0
  %v2695 = vpop.f32.mrb[0].mxu0
  %2696 = vdwg.mxu0
  %2697 = vmatprep.subr.bf16.mxu0 %v2048
  %2698 = vmatpush1.bf16.msra.mxu0 %v2047
  %2699 = vmatprep.subr.bf16.mxu0 %v2052
  %2700 = vmatpush1.bf16.msra.mxu0 %v2051
  %2701 = vmatprep.subr.bf16.mxu0 0
  %2702 = vmatpush1.bf16.msra.mxu0 0
  %2703 = vmatprep.subr.bf16.mxu0 0
  %2704 = vmatpush1.bf16.msra.mxu0 0
  %2705 = vmatprep.subr.bf16.mxu0 0
  %2706 = vmatpush1.bf16.msra.mxu0 0
  %2707 = vmatprep.subr.bf16.mxu0 0
  %2708 = vmatpush1.bf16.msra.mxu0 0
  %2709 = vmatprep.subr.bf16.mxu0 0
  %2710 = vmatpush1.bf16.msra.mxu0 0
  %2711 = vmatprep.subr.bf16.mxu0 0
  %2712 = vmatpush1.bf16.msra.mxu0 0
  %2713 = vmatprep.subr.bf16.mxu0 0
  %2714 = vmatpush1.bf16.msra.mxu0 0
  %2715 = vmatprep.subr.bf16.mxu0 0
  %2716 = vmatpush1.bf16.msra.mxu0 0
  %2717 = vmatprep.subr.bf16.mxu0 0
  %2718 = vmatpush1.bf16.msra.mxu0 0
  %2719 = vmatprep.subr.bf16.mxu0 0
  %2720 = vmatpush1.bf16.msra.mxu0 0
  %2721 = vmatprep.subr.bf16.mxu0 0
  %2722 = vmatpush1.bf16.msra.mxu0 0
  %2723 = vmatprep.subr.bf16.mxu0 0
  %2724 = vmatpush1.bf16.msra.mxu0 0
  %2725 = vmatprep.subr.bf16.mxu0 0
  %2726 = vmatpush1.bf16.msra.mxu0 0
  %2727 = vmatprep.subr.bf16.mxu0 0
  %2728 = vmatpush1.bf16.msra.mxu0 0
  %2729 = vmatprep.mubr.bf16.mxu0 0
  %2730 = vmatmul.mubr.bf16.gmra.mrb[0].mxu0 %v2449
  %v2731 = vpop.f32.mrb[0].mxu0
  %v2732 = vadd.f32 %v2691, %v2731
  %v2733 = vpop.f32.mrb[0].mxu0
  %v2734 = vadd.f32 %v2693, %v2733
  %v2735 = vpop.f32.mrb[0].mxu0
  %v2736 = vpop.f32.mrb[0].mxu0
  %2737 = vdwg.mxu0
  %2738 = vmatprep.subr.bf16.mxu0 %v1666
  %2739 = vmatpush1.bf16.msra.mxu0 %v1665
  %2740 = vmatprep.subr.bf16.mxu0 %v1670
  %2741 = vmatpush1.bf16.msra.mxu0 %v1669
  %2742 = vmatprep.subr.bf16.mxu0 %v1674
  %2743 = vmatpush1.bf16.msra.mxu0 %v1673
  %2744 = vmatprep.subr.bf16.mxu0 %v1678
  %2745 = vmatpush1.bf16.msra.mxu0 %v1677
  %2746 = vmatprep.subr.bf16.mxu0 %v1682
  %2747 = vmatpush1.bf16.msra.mxu0 %v1681
  %2748 = vmatprep.subr.bf16.mxu0 %v1686
  %2749 = vmatpush1.bf16.msra.mxu0 %v1685
  %2750 = vmatprep.subr.bf16.mxu0 %v1690
  %2751 = vmatpush1.bf16.msra.mxu0 %v1689
  %2752 = vmatprep.subr.bf16.mxu0 %v1694
  %2753 = vmatpush1.bf16.msra.mxu0 %v1693
  %2754 = vmatprep.subr.bf16.mxu0 %v1698
  %2755 = vmatpush1.bf16.msra.mxu0 %v1697
  %2756 = vmatprep.subr.bf16.mxu0 %v1702
  %2757 = vmatpush1.bf16.msra.mxu0 %v1701
  %2758 = vmatprep.subr.bf16.mxu0 %v1706
  %2759 = vmatpush1.bf16.msra.mxu0 %v1705
  %2760 = vmatprep.subr.bf16.mxu0 %v1710
  %2761 = vmatpush1.bf16.msra.mxu0 %v1709
  %2762 = vmatprep.subr.bf16.mxu0 %v1714
  %2763 = vmatpush1.bf16.msra.mxu0 %v1713
  %2764 = vmatprep.subr.bf16.mxu0 %v1718
  %2765 = vmatpush1.bf16.msra.mxu0 %v1717
  %2766 = vmatprep.subr.bf16.mxu0 %v1722
  %2767 = vmatpush1.bf16.msra.mxu0 %v1721
  %2768 = vmatprep.subr.bf16.mxu0 %v1726
  %2769 = vmatpush1.bf16.msra.mxu0 %v1725
  %2770 = vmatprep.mubr.bf16.mxu0 %v463
  %2771 = vmatmul.mubr.bf16.gmra.mrb[0].mxu0 %v462
  %v2772 = vpop.f32.mrb[0].mxu0
  %v2773 = vadd.f32 %v433, %v2772
  %v2774 = vpop.f32.mrb[0].mxu0
  %v2775 = vadd.f32 %v437, %v2774
  %v2776 = vpop.f32.mrb[0].mxu0
  %v2777 = vpop.f32.mrb[0].mxu0
  %2778 = vdwg.mxu0
  %2779 = vmatprep.subr.bf16.mxu0 %v1730
  %2780 = vmatpush1.bf16.msra.mxu0 %v1729
  %2781 = vmatprep.subr.bf16.mxu0 %v1734
  %2782 = vmatpush1.bf16.msra.mxu0 %v1733
  %2783 = vmatprep.subr.bf16.mxu0 %v1738
  %2784 = vmatpush1.bf16.msra.mxu0 %v1737
  %2785 = vmatprep.subr.bf16.mxu0 %v1742
  %2786 = vmatpush1.bf16.msra.mxu0 %v1741
  %2787 = vmatprep.subr.bf16.mxu0 %v1746
  %2788 = vmatpush1.bf16.msra.mxu0 %v1745
  %2789 = vmatprep.subr.bf16.mxu0 %v1750
  %2790 = vmatpush1.bf16.msra.mxu0 %v1749
  %2791 = vmatprep.subr.bf16.mxu0 %v1754
  %2792 = vmatpush1.bf16.msra.mxu0 %v1753
  %2793 = vmatprep.subr.bf16.mxu0 %v1758
  %2794 = vmatpush1.bf16.msra.mxu0 %v1757
  %2795 = vmatprep.subr.bf16.mxu0 %v1762
  %2796 = vmatpush1.bf16.msra.mxu0 %v1761
  %2797 = vmatprep.subr.bf16.mxu0 %v1766
  %2798 = vmatpush1.bf16.msra.mxu0 %v1765
  %2799 = vmatprep.subr.bf16.mxu0 %v1770
  %2800 = vmatpush1.bf16.msra.mxu0 %v1769
  %2801 = vmatprep.subr.bf16.mxu0 %v1774
  %2802 = vmatpush1.bf16.msra.mxu0 %v1773
  %2803 = vmatprep.subr.bf16.mxu0 %v1778
  %2804 = vmatpush1.bf16.msra.mxu0 %v1777
  %2805 = vmatprep.subr.bf16.mxu0 %v1782
  %2806 = vmatpush1.bf16.msra.mxu0 %v1781
  %2807 = vmatprep.subr.bf16.mxu0 %v1786
  %2808 = vmatpush1.bf16.msra.mxu0 %v1785
  %2809 = vmatprep.subr.bf16.mxu0 %v1790
  %2810 = vmatpush1.bf16.msra.mxu0 %v1789
  %2811 = vmatprep.mubr.bf16.mxu0 %v465
  %2812 = vmatmul.mubr.bf16.gmra.mrb[0].mxu0 %v464
  %v2813 = vpop.f32.mrb[0].mxu0
  %v2814 = vadd.f32 %v2773, %v2813
  %v2815 = vpop.f32.mrb[0].mxu0
  %v2816 = vadd.f32 %v2775, %v2815
  %v2817 = vpop.f32.mrb[0].mxu0
  %v2818 = vpop.f32.mrb[0].mxu0
  %2819 = vdwg.mxu0
  %2820 = vmatprep.subr.bf16.mxu0 %v1794
  %2821 = vmatpush1.bf16.msra.mxu0 %v1793
  %2822 = vmatprep.subr.bf16.mxu0 %v1798
  %2823 = vmatpush1.bf16.msra.mxu0 %v1797
  %2824 = vmatprep.subr.bf16.mxu0 %v1802
  %2825 = vmatpush1.bf16.msra.mxu0 %v1801
  %2826 = vmatprep.subr.bf16.mxu0 %v1806
  %2827 = vmatpush1.bf16.msra.mxu0 %v1805
  %2828 = vmatprep.subr.bf16.mxu0 %v1810
  %2829 = vmatpush1.bf16.msra.mxu0 %v1809
  %2830 = vmatprep.subr.bf16.mxu0 %v1814
  %2831 = vmatpush1.bf16.msra.mxu0 %v1813
  %2832 = vmatprep.subr.bf16.mxu0 %v1818
  %2833 = vmatpush1.bf16.msra.mxu0 %v1817
  %2834 = vmatprep.subr.bf16.mxu0 %v1822
  %2835 = vmatpush1.bf16.msra.mxu0 %v1821
  %2836 = vmatprep.subr.bf16.mxu0 %v1826
  %2837 = vmatpush1.bf16.msra.mxu0 %v1825
  %2838 = vmatprep.subr.bf16.mxu0 %v1830
  %2839 = vmatpush1.bf16.msra.mxu0 %v1829
  %2840 = vmatprep.subr.bf16.mxu0 %v1834
  %2841 = vmatpush1.bf16.msra.mxu0 %v1833
  %2842 = vmatprep.subr.bf16.mxu0 %v1838
  %2843 = vmatpush1.bf16.msra.mxu0 %v1837
  %2844 = vmatprep.subr.bf16.mxu0 %v1842
  %2845 = vmatpush1.bf16.msra.mxu0 %v1841
  %2846 = vmatprep.subr.bf16.mxu0 %v1846
  %2847 = vmatpush1.bf16.msra.mxu0 %v1845
  %2848 = vmatprep.subr.bf16.mxu0 %v1850
  %2849 = vmatpush1.bf16.msra.mxu0 %v1849
  %2850 = vmatprep.subr.bf16.mxu0 %v1854
  %2851 = vmatpush1.bf16.msra.mxu0 %v1853
  %2852 = vmatprep.mubr.bf16.mxu0 %v467
  %2853 = vmatmul.mubr.bf16.gmra.mrb[0].mxu0 %v466
  %v2854 = vpop.f32.mrb[0].mxu0
  %v2855 = vadd.f32 %v2814, %v2854
  %v2856 = vpop.f32.mrb[0].mxu0
  %v2857 = vadd.f32 %v2816, %v2856
  %v2858 = vpop.f32.mrb[0].mxu0
  %v2859 = vpop.f32.mrb[0].mxu0
  %2860 = vdwg.mxu0
  %2861 = vmatprep.subr.bf16.mxu0 %v1858
  %2862 = vmatpush1.bf16.msra.mxu0 %v1857
  %2863 = vmatprep.subr.bf16.mxu0 %v1862
  %2864 = vmatpush1.bf16.msra.mxu0 %v1861
  %2865 = vmatprep.subr.bf16.mxu0 %v1866
  %2866 = vmatpush1.bf16.msra.mxu0 %v1865
  %2867 = vmatprep.subr.bf16.mxu0 %v1870
  %2868 = vmatpush1.bf16.msra.mxu0 %v1869
  %2869 = vmatprep.subr.bf16.mxu0 %v1874
  %2870 = vmatpush1.bf16.msra.mxu0 %v1873
  %2871 = vmatprep.subr.bf16.mxu0 %v1878
  %2872 = vmatpush1.bf16.msra.mxu0 %v1877
  %2873 = vmatprep.subr.bf16.mxu0 %v1882
  %2874 = vmatpush1.bf16.msra.mxu0 %v1881
  %2875 = vmatprep.subr.bf16.mxu0 %v1886
  %2876 = vmatpush1.bf16.msra.mxu0 %v1885
  %2877 = vmatprep.subr.bf16.mxu0 %v1890
  %2878 = vmatpush1.bf16.msra.mxu0 %v1889
  %2879 = vmatprep.subr.bf16.mxu0 %v1894
  %2880 = vmatpush1.bf16.msra.mxu0 %v1893
  %2881 = vmatprep.subr.bf16.mxu0 %v1898
  %2882 = vmatpush1.bf16.msra.mxu0 %v1897
  %2883 = vmatprep.subr.bf16.mxu0 %v1902
  %2884 = vmatpush1.bf16.msra.mxu0 %v1901
  %2885 = vmatprep.subr.bf16.mxu0 %v1906
  %2886 = vmatpush1.bf16.msra.mxu0 %v1905
  %2887 = vmatprep.subr.bf16.mxu0 %v1910
  %2888 = vmatpush1.bf16.msra.mxu0 %v1909
  %2889 = vmatprep.subr.bf16.mxu0 %v1914
  %2890 = vmatpush1.bf16.msra.mxu0 %v1913
  %2891 = vmatprep.subr.bf16.mxu0 %v1918
  %2892 = vmatpush1.bf16.msra.mxu0 %v1917
  %2893 = vmatprep.mubr.bf16.mxu0 %v469
  %2894 = vmatmul.mubr.bf16.gmra.mrb[0].mxu0 %v468
  %v2895 = vpop.f32.mrb[0].mxu0
  %v2896 = vadd.f32 %v2855, %v2895
  %v2897 = vpop.f32.mrb[0].mxu0
  %v2898 = vadd.f32 %v2857, %v2897
  %v2899 = vpop.f32.mrb[0].mxu0
  %v2900 = vpop.f32.mrb[0].mxu0
  %2901 = vdwg.mxu0
  %2902 = vmatprep.subr.bf16.mxu0 %v1922
  %2903 = vmatpush1.bf16.msra.mxu0 %v1921
  %2904 = vmatprep.subr.bf16.mxu0 %v1926
  %2905 = vmatpush1.bf16.msra.mxu0 %v1925
  %2906 = vmatprep.subr.bf16.mxu0 %v1930
  %2907 = vmatpush1.bf16.msra.mxu0 %v1929
  %2908 = vmatprep.subr.bf16.mxu0 %v1934
  %2909 = vmatpush1.bf16.msra.mxu0 %v1933
  %2910 = vmatprep.subr.bf16.mxu0 %v1938
  %2911 = vmatpush1.bf16.msra.mxu0 %v1937
  %2912 = vmatprep.subr.bf16.mxu0 %v1942
  %2913 = vmatpush1.bf16.msra.mxu0 %v1941
  %2914 = vmatprep.subr.bf16.mxu0 %v1946
  %2915 = vmatpush1.bf16.msra.mxu0 %v1945
  %2916 = vmatprep.subr.bf16.mxu0 %v1950
  %2917 = vmatpush1.bf16.msra.mxu0 %v1949
  %2918 = vmatprep.subr.bf16.mxu0 %v1954
  %2919 = vmatpush1.bf16.msra.mxu0 %v1953
  %2920 = vmatprep.subr.bf16.mxu0 %v1958
  %2921 = vmatpush1.bf16.msra.mxu0 %v1957
  %2922 = vmatprep.subr.bf16.mxu0 %v1962
  %2923 = vmatpush1.bf16.msra.mxu0 %v1961
  %2924 = vmatprep.subr.bf16.mxu0 %v1966
  %2925 = vmatpush1.bf16.msra.mxu0 %v1965
  %2926 = vmatprep.subr.bf16.mxu0 %v1970
  %2927 = vmatpush1.bf16.msra.mxu0 %v1969
  %2928 = vmatprep.subr.bf16.mxu0 %v1974
  %2929 = vmatpush1.bf16.msra.mxu0 %v1973
  %2930 = vmatprep.subr.bf16.mxu0 %v1978
  %2931 = vmatpush1.bf16.msra.mxu0 %v1977
  %2932 = vmatprep.subr.bf16.mxu0 %v1982
  %2933 = vmatpush1.bf16.msra.mxu0 %v1981
  %2934 = vmatprep.mubr.bf16.mxu0 %v471
  %2935 = vmatmul.mubr.bf16.gmra.mrb[0].mxu0 %v470
  %v2936 = vpop.f32.mrb[0].mxu0
  %v2937 = vadd.f32 %v2896, %v2936
  %v2938 = vpop.f32.mrb[0].mxu0
  %v2939 = vadd.f32 %v2898, %v2938
  %v2940 = vpop.f32.mrb[0].mxu0
  %v2941 = vpop.f32.mrb[0].mxu0
  %2942 = vdwg.mxu0
  %2943 = vmatprep.subr.bf16.mxu0 %v1986
  %2944 = vmatpush1.bf16.msra.mxu0 %v1985
  %2945 = vmatprep.subr.bf16.mxu0 %v1990
  %2946 = vmatpush1.bf16.msra.mxu0 %v1989
  %2947 = vmatprep.subr.bf16.mxu0 %v1994
  %2948 = vmatpush1.bf16.msra.mxu0 %v1993
  %2949 = vmatprep.subr.bf16.mxu0 %v1998
  %2950 = vmatpush1.bf16.msra.mxu0 %v1997
  %2951 = vmatprep.subr.bf16.mxu0 %v2002
  %2952 = vmatpush1.bf16.msra.mxu0 %v2001
  %2953 = vmatprep.subr.bf16.mxu0 %v2006
  %2954 = vmatpush1.bf16.msra.mxu0 %v2005
  %2955 = vmatprep.subr.bf16.mxu0 %v2010
  %2956 = vmatpush1.bf16.msra.mxu0 %v2009
  %2957 = vmatprep.subr.bf16.mxu0 %v2014
  %2958 = vmatpush1.bf16.msra.mxu0 %v2013
  %2959 = vmatprep.subr.bf16.mxu0 %v2018
  %2960 = vmatpush1.bf16.msra.mxu0 %v2017
  %2961 = vmatprep.subr.bf16.mxu0 %v2022
  %2962 = vmatpush1.bf16.msra.mxu0 %v2021
  %2963 = vmatprep.subr.bf16.mxu0 %v2026
  %2964 = vmatpush1.bf16.msra.mxu0 %v2025
  %2965 = vmatprep.subr.bf16.mxu0 %v2030
  %2966 = vmatpush1.bf16.msra.mxu0 %v2029
  %2967 = vmatprep.subr.bf16.mxu0 %v2034
  %2968 = vmatpush1.bf16.msra.mxu0 %v2033
  %2969 = vmatprep.subr.bf16.mxu0 %v2038
  %2970 = vmatpush1.bf16.msra.mxu0 %v2037
  %2971 = vmatprep.subr.bf16.mxu0 %v2042
  %2972 = vmatpush1.bf16.msra.mxu0 %v2041
  %2973 = vmatprep.subr.bf16.mxu0 %v2046
  %2974 = vmatpush1.bf16.msra.mxu0 %v2045
  %2975 = vmatprep.mubr.bf16.mxu0 %v473
  %2976 = vmatmul.mubr.bf16.gmra.mrb[0].mxu0 %v472
  %v2977 = vpop.f32.mrb[0].mxu0
  %v2978 = vadd.f32 %v2937, %v2977
  %v2979 = vpop.f32.mrb[0].mxu0
  %v2980 = vadd.f32 %v2939, %v2979
  %v2981 = vpop.f32.mrb[0].mxu0
  %v2982 = vpop.f32.mrb[0].mxu0
  %2983 = vdwg.mxu0
  %2984 = vmatprep.subr.bf16.mxu0 %v2050
  %2985 = vmatpush1.bf16.msra.mxu0 %v2049
  %2986 = vmatprep.subr.bf16.mxu0 %v2054
  %2987 = vmatpush1.bf16.msra.mxu0 %v2053
  %2988 = vmatprep.subr.bf16.mxu0 0
  %2989 = vmatpush1.bf16.msra.mxu0 0
  %2990 = vmatprep.subr.bf16.mxu0 0
  %2991 = vmatpush1.bf16.msra.mxu0 0
  %2992 = vmatprep.subr.bf16.mxu0 0
  %2993 = vmatpush1.bf16.msra.mxu0 0
  %2994 = vmatprep.subr.bf16.mxu0 0
  %2995 = vmatpush1.bf16.msra.mxu0 0
  %2996 = vmatprep.subr.bf16.mxu0 0
  %2997 = vmatpush1.bf16.msra.mxu0 0
  %2998 = vmatprep.subr.bf16.mxu0 0
  %2999 = vmatpush1.bf16.msra.mxu0 0
  %3000 = vmatprep.subr.bf16.mxu0 0
  %3001 = vmatpush1.bf16.msra.mxu0 0
  %3002 = vmatprep.subr.bf16.mxu0 0
  %3003 = vmatpush1.bf16.msra.mxu0 0
  %3004 = vmatprep.subr.bf16.mxu0 0
  %3005 = vmatpush1.bf16.msra.mxu0 0
  %3006 = vmatprep.subr.bf16.mxu0 0
  %3007 = vmatpush1.bf16.msra.mxu0 0
  %3008 = vmatprep.subr.bf16.mxu0 0
  %3009 = vmatpush1.bf16.msra.mxu0 0
  %3010 = vmatprep.subr.bf16.mxu0 0
  %3011 = vmatpush1.bf16.msra.mxu0 0
  %3012 = vmatprep.subr.bf16.mxu0 0
  %3013 = vmatpush1.bf16.msra.mxu0 0
  %3014 = vmatprep.subr.bf16.mxu0 0
  %3015 = vmatpush1.bf16.msra.mxu0 0
  %3016 = vmatprep.mubr.bf16.mxu0 0
  %3017 = vmatmul.mubr.bf16.gmra.mrb[0].mxu0 %v2449
  %v3018 = vpop.f32.mrb[0].mxu0
  %v3019 = vadd.f32 %v2978, %v3018
  %v3020 = vpop.f32.mrb[0].mxu0
  %v3021 = vadd.f32 %v2980, %v3020
  %v3022 = vpop.f32.mrb[0].mxu0
  %v3023 = vpop.f32.mrb[0].mxu0
  %3024 = vdwg.mxu0
  %v3025 = vmax.f32 %v2732, 0.0
  %v3026 = vmax.f32 %v2734, 0.0
  %v3027 = vmax.f32 %v3019, 0.0
  %v3028 = vmax.f32 %v3021, 0.0
  %v3029 = vpack.c.bf16 %v3025, %v3025
  %v3030 = vpack.c.bf16 %v3026, %v3026
  %v3031 = vpack.c.bf16 %v3027, %v3027
  %v3032 = vpack.c.bf16 %v3028, %v3028
  %v3033 = vld [vmem:[%s3] sm:$0xf]
  %v3034 = vld [vmem:[%s3 + $0x4] sm:$0xf]
  %v3035 = vld [vmem:[%s3 + $0x8] sm:$0xf]
  %v3036 = vld [vmem:[%s3 + $0xc] sm:$0xf]
  %v3037 = vld [vmem:[%s3 + $0x10] sm:$0xf]
  %v3038 = vld [vmem:[%s3 + $0x14] sm:$0xf]
  %v3039 = vld [vmem:[%s3 + $0x18] sm:$0xf]
  %v3040 = vld [vmem:[%s3 + $0x1c] sm:$0xf]
  %v3041 = vld [vmem:[%s3 + $0x20] sm:$0xf]
  %v3042 = vld [vmem:[%s3 + $0x24] sm:$0xf]
  %v3043 = vld [vmem:[%s3 + $0x28] sm:$0xf]
  %v3044 = vld [vmem:[%s3 + $0x2c] sm:$0xf]
  %v3045 = vld [vmem:[%s3 + $0x30] sm:$0xf]
  %v3046 = vld [vmem:[%s3 + $0x34] sm:$0xf]
  %v3047 = vld [vmem:[%s3 + $0x38] sm:$0xf]
  %v3048 = vld [vmem:[%s3 + $0x3c] sm:$0xf]
  %v3049 = vld [vmem:[%s3 + $0x40] sm:$0xf]
  %v3050 = vld [vmem:[%s3 + $0x44] sm:$0xf]
  %v3051 = vld [vmem:[%s3 + $0x48] sm:$0xf]
  %v3052 = vld [vmem:[%s3 + $0x4c] sm:$0xf]
  %v3053 = vld [vmem:[%s3 + $0x50] sm:$0xf]
  %v3054 = vld [vmem:[%s3 + $0x54] sm:$0xf]
  %v3055 = vld [vmem:[%s3 + $0x58] sm:$0xf]
  %v3056 = vld [vmem:[%s3 + $0x5c] sm:$0xf]
  %v3057 = vld [vmem:[%s3 + $0x60] sm:$0xf]
  %v3058 = vld [vmem:[%s3 + $0x64] sm:$0xf]
  %v3059 = vld [vmem:[%s3 + $0x68] sm:$0xf]
  %v3060 = vld [vmem:[%s3 + $0x6c] sm:$0xf]
  %v3061 = vld [vmem:[%s3 + $0x70] sm:$0xf]
  %v3062 = vld [vmem:[%s3 + $0x74] sm:$0xf]
  %v3063 = vld [vmem:[%s3 + $0x78] sm:$0xf]
  %v3064 = vld [vmem:[%s3 + $0x7c] sm:$0xf]
  %v3065 = vld [vmem:[%s3 + $0x80] sm:$0xf]
  %v3066 = vld [vmem:[%s3 + $0x84] sm:$0xf]
  %v3067 = vld [vmem:[%s3 + $0x88] sm:$0xf]
  %v3068 = vld [vmem:[%s3 + $0x8c] sm:$0xf]
  %v3069 = vld [vmem:[%s3 + $0x90] sm:$0xf]
  %v3070 = vld [vmem:[%s3 + $0x94] sm:$0xf]
  %v3071 = vld [vmem:[%s3 + $0x98] sm:$0xf]
  %v3072 = vld [vmem:[%s3 + $0x9c] sm:$0xf]
  %v3073 = vld [vmem:[%s3 + $0xa0] sm:$0xf]
  %v3074 = vld [vmem:[%s3 + $0xa4] sm:$0xf]
  %v3075 = vld [vmem:[%s3 + $0xa8] sm:$0xf]
  %v3076 = vld [vmem:[%s3 + $0xac] sm:$0xf]
  %v3077 = vld [vmem:[%s3 + $0xb0] sm:$0xf]
  %v3078 = vld [vmem:[%s3 + $0xb4] sm:$0xf]
  %v3079 = vld [vmem:[%s3 + $0xb8] sm:$0xf]
  %v3080 = vld [vmem:[%s3 + $0xbc] sm:$0xf]
  %v3081 = vld [vmem:[%s3 + $0xc0] sm:$0xf]
  %v3082 = vld [vmem:[%s3 + $0xc4] sm:$0xf]
  %v3083 = vld [vmem:[%s3 + $0xc8] sm:$0xf]
  %v3084 = vld [vmem:[%s3 + $0xcc] sm:$0xf]
  %v3085 = vld [vmem:[%s3 + $0xd0] sm:$0xf]
  %v3086 = vld [vmem:[%s3 + $0xd4] sm:$0xf]
  %v3087 = vld [vmem:[%s3 + $0xd8] sm:$0xf]
  %v3088 = vld [vmem:[%s3 + $0xdc] sm:$0xf]
  %v3089 = vld [vmem:[%s3 + $0xe0] sm:$0xf]
  %v3090 = vld [vmem:[%s3 + $0xe4] sm:$0xf]
  %v3091 = vld [vmem:[%s3 + $0xe8] sm:$0xf]
  %v3092 = vld [vmem:[%s3 + $0xec] sm:$0xf]
  %v3093 = vld [vmem:[%s3 + $0xf0] sm:$0xf]
  %v3094 = vld [vmem:[%s3 + $0xf4] sm:$0xf]
  %v3095 = vld [vmem:[%s3 + $0xf8] sm:$0xf]
  %v3096 = vld [vmem:[%s3 + $0xfc] sm:$0xf]
  %v3097 = vld [vmem:[%s4] sm:$0x1]
  %v3099 = vlaneseq
  %v3100 = vshrl.u32 %v3099, 7
  %v3101 = vsub.s32 0, %v3100
  %v3102 = vrot.slane %v3097, %v3101
  %v3168 = vunpack.c.l.b16 %v3033
  %v3169 = vunpack.c.l.b16 %v3034
  %v3170 = vunpack.c.l.b16 %v3035
  %v3171 = vunpack.c.l.b16 %v3036
  %v3172 = vunpack.c.l.b16 %v3037
  %v3173 = vunpack.c.l.b16 %v3038
  %v3174 = vunpack.c.l.b16 %v3039
  %v3175 = vunpack.c.l.b16 %v3040
  %v3176 = vunpack.c.l.b16 %v3041
  %v3177 = vunpack.c.l.b16 %v3042
  %v3178 = vunpack.c.l.b16 %v3043
  %v3179 = vunpack.c.l.b16 %v3044
  %v3180 = vunpack.c.l.b16 %v3045
  %v3181 = vunpack.c.l.b16 %v3046
  %v3182 = vunpack.c.l.b16 %v3047
  %v3183 = vunpack.c.l.b16 %v3048
  %v3184 = vunpack.c.l.b16 %v3049
  %v3185 = vunpack.c.l.b16 %v3050
  %v3186 = vunpack.c.l.b16 %v3051
  %v3187 = vunpack.c.l.b16 %v3052
  %v3188 = vunpack.c.l.b16 %v3053
  %v3189 = vunpack.c.l.b16 %v3054
  %v3190 = vunpack.c.l.b16 %v3055
  %v3191 = vunpack.c.l.b16 %v3056
  %v3192 = vunpack.c.l.b16 %v3057
  %v3193 = vunpack.c.l.b16 %v3058
  %v3194 = vunpack.c.l.b16 %v3059
  %v3195 = vunpack.c.l.b16 %v3060
  %v3196 = vunpack.c.l.b16 %v3061
  %v3197 = vunpack.c.l.b16 %v3062
  %v3198 = vunpack.c.l.b16 %v3063
  %v3199 = vunpack.c.l.b16 %v3064
  %v3200 = vunpack.c.l.b16 %v3065
  %v3201 = vunpack.c.l.b16 %v3066
  %v3202 = vunpack.c.l.b16 %v3067
  %v3203 = vunpack.c.l.b16 %v3068
  %v3204 = vunpack.c.l.b16 %v3069
  %v3205 = vunpack.c.l.b16 %v3070
  %v3206 = vunpack.c.l.b16 %v3071
  %v3207 = vunpack.c.l.b16 %v3072
  %v3208 = vunpack.c.l.b16 %v3073
  %v3209 = vunpack.c.l.b16 %v3074
  %v3210 = vunpack.c.l.b16 %v3075
  %v3211 = vunpack.c.l.b16 %v3076
  %v3212 = vunpack.c.l.b16 %v3077
  %v3213 = vunpack.c.l.b16 %v3078
  %v3214 = vunpack.c.l.b16 %v3079
  %v3215 = vunpack.c.l.b16 %v3080
  %v3216 = vunpack.c.l.b16 %v3081
  %v3217 = vunpack.c.l.b16 %v3082
  %v3218 = vunpack.c.l.b16 %v3083
  %v3219 = vunpack.c.l.b16 %v3084
  %v3220 = vunpack.c.l.b16 %v3085
  %v3221 = vunpack.c.l.b16 %v3086
  %v3222 = vunpack.c.l.b16 %v3087
  %v3223 = vunpack.c.l.b16 %v3088
  %v3224 = vunpack.c.l.b16 %v3089
  %v3225 = vunpack.c.l.b16 %v3090
  %v3226 = vunpack.c.l.b16 %v3091
  %v3227 = vunpack.c.l.b16 %v3092
  %v3228 = vunpack.c.l.b16 %v3093
  %v3229 = vunpack.c.l.b16 %v3094
  %v3230 = vunpack.c.l.b16 %v3095
  %v3231 = vunpack.c.l.b16 %v3096
  %v3232 = vpack.c.b16 %v3169, %v3168
  %v3233 = vpack.c.b16 %v3171, %v3170
  %v3234 = vpack.c.b16 %v3173, %v3172
  %v3235 = vpack.c.b16 %v3175, %v3174
  %v3236 = vpack.c.b16 %v3177, %v3176
  %v3237 = vpack.c.b16 %v3179, %v3178
  %v3238 = vpack.c.b16 %v3181, %v3180
  %v3239 = vpack.c.b16 %v3183, %v3182
  %v3240 = vpack.c.b16 %v3185, %v3184
  %v3241 = vpack.c.b16 %v3187, %v3186
  %v3242 = vpack.c.b16 %v3189, %v3188
  %v3243 = vpack.c.b16 %v3191, %v3190
  %v3244 = vpack.c.b16 %v3193, %v3192
  %v3245 = vpack.c.b16 %v3195, %v3194
  %v3246 = vpack.c.b16 %v3197, %v3196
  %v3247 = vpack.c.b16 %v3199, %v3198
  %v3248 = vpack.c.b16 %v3201, %v3200
  %v3249 = vpack.c.b16 %v3203, %v3202
  %v3250 = vpack.c.b16 %v3205, %v3204
  %v3251 = vpack.c.b16 %v3207, %v3206
  %v3252 = vpack.c.b16 %v3209, %v3208
  %v3253 = vpack.c.b16 %v3211, %v3210
  %v3254 = vpack.c.b16 %v3213, %v3212
  %v3255 = vpack.c.b16 %v3215, %v3214
  %v3256 = vpack.c.b16 %v3217, %v3216
  %v3257 = vpack.c.b16 %v3219, %v3218
  %v3258 = vpack.c.b16 %v3221, %v3220
  %v3259 = vpack.c.b16 %v3223, %v3222
  %v3260 = vpack.c.b16 %v3225, %v3224
  %v3261 = vpack.c.b16 %v3227, %v3226
  %v3262 = vpack.c.b16 %v3229, %v3228
  %v3263 = vpack.c.b16 %v3231, %v3230
  %3296 = vmatprep.subr.bf16.mxu0 0
  %3297 = vmatpush1.bf16.msra.mxu0 %v3232
  %3298 = vmatprep.subr.bf16.mxu0 0
  %3299 = vmatpush1.bf16.msra.mxu0 %v3233
  %3300 = vmatprep.subr.bf16.mxu0 0
  %3301 = vmatpush1.bf16.msra.mxu0 %v3234
  %3302 = vmatprep.subr.bf16.mxu0 0
  %3303 = vmatpush1.bf16.msra.mxu0 %v3235
  %3304 = vmatprep.subr.bf16.mxu0 0
  %3305 = vmatpush1.bf16.msra.mxu0 %v3236
  %3306 = vmatprep.subr.bf16.mxu0 0
  %3307 = vmatpush1.bf16.msra.mxu0 %v3237
  %3308 = vmatprep.subr.bf16.mxu0 0
  %3309 = vmatpush1.bf16.msra.mxu0 %v3238
  %3310 = vmatprep.subr.bf16.mxu0 0
  %3311 = vmatpush1.bf16.msra.mxu0 %v3239
  %3312 = vmatprep.subr.bf16.mxu0 0
  %3313 = vmatpush1.bf16.msra.mxu0 %v3240
  %3314 = vmatprep.subr.bf16.mxu0 0
  %3315 = vmatpush1.bf16.msra.mxu0 %v3241
  %3316 = vmatprep.subr.bf16.mxu0 0
  %3317 = vmatpush1.bf16.msra.mxu0 %v3242
  %3318 = vmatprep.subr.bf16.mxu0 0
  %3319 = vmatpush1.bf16.msra.mxu0 %v3243
  %3320 = vmatprep.subr.bf16.mxu0 0
  %3321 = vmatpush1.bf16.msra.mxu0 %v3244
  %3322 = vmatprep.subr.bf16.mxu0 0
  %3323 = vmatpush1.bf16.msra.mxu0 %v3245
  %3324 = vmatprep.subr.bf16.mxu0 0
  %3325 = vmatpush1.bf16.msra.mxu0 %v3246
  %3326 = vmatprep.subr.bf16.mxu0 0
  %3327 = vmatpush1.bf16.msra.mxu0 %v3247
  %3328 = vmatprep.mubr.bf16.mxu0 %v3030
  %3329 = vmatmul.mubr.bf16.gmra.mrb[0].mxu0 %v3029
  %v3330 = vpop.f32.mrb[0].mxu0
  %v3331 = vadd.f32 %v3102, %v3330
  %v3332 = vpop.f32.mrb[0].mxu0
  %v3333 = vpop.f32.mrb[0].mxu0
  %v3334 = vpop.f32.mrb[0].mxu0
  %3335 = vdwg.mxu0
  %3336 = vmatprep.subr.bf16.mxu0 0
  %3337 = vmatpush1.bf16.msra.mxu0 %v3248
  %3338 = vmatprep.subr.bf16.mxu0 0
  %3339 = vmatpush1.bf16.msra.mxu0 %v3249
  %3340 = vmatprep.subr.bf16.mxu0 0
  %3341 = vmatpush1.bf16.msra.mxu0 %v3250
  %3342 = vmatprep.subr.bf16.mxu0 0
  %3343 = vmatpush1.bf16.msra.mxu0 %v3251
  %3344 = vmatprep.subr.bf16.mxu0 0
  %3345 = vmatpush1.bf16.msra.mxu0 %v3252
  %3346 = vmatprep.subr.bf16.mxu0 0
  %3347 = vmatpush1.bf16.msra.mxu0 %v3253
  %3348 = vmatprep.subr.bf16.mxu0 0
  %3349 = vmatpush1.bf16.msra.mxu0 %v3254
  %3350 = vmatprep.subr.bf16.mxu0 0
  %3351 = vmatpush1.bf16.msra.mxu0 %v3255
  %3352 = vmatprep.subr.bf16.mxu0 0
  %3353 = vmatpush1.bf16.msra.mxu0 %v3256
  %3354 = vmatprep.subr.bf16.mxu0 0
  %3355 = vmatpush1.bf16.msra.mxu0 %v3257
  %3356 = vmatprep.subr.bf16.mxu0 0
  %3357 = vmatpush1.bf16.msra.mxu0 %v3258
  %3358 = vmatprep.subr.bf16.mxu0 0
  %3359 = vmatpush1.bf16.msra.mxu0 %v3259
  %3360 = vmatprep.subr.bf16.mxu0 0
  %3361 = vmatpush1.bf16.msra.mxu0 %v3260
  %3362 = vmatprep.subr.bf16.mxu0 0
  %3363 = vmatpush1.bf16.msra.mxu0 %v3261
  %3364 = vmatprep.subr.bf16.mxu0 0
  %3365 = vmatpush1.bf16.msra.mxu0 %v3262
  %3366 = vmatprep.subr.bf16.mxu0 0
  %3367 = vmatpush1.bf16.msra.mxu0 %v3263
  %3368 = vmatprep.mubr.bf16.mxu0 %v3032
  %3369 = vmatmul.mubr.bf16.gmra.mrb[0].mxu0 %v3031
  %v3370 = vpop.f32.mrb[0].mxu0
  %v3371 = vadd.f32 %v3331, %v3370
  %v3372 = vpop.f32.mrb[0].mxu0
  %v3373 = vpop.f32.mrb[0].mxu0
  %v3374 = vpop.f32.mrb[0].mxu0
  %3375 = vdwg.mxu0
  %3376 = vmax.xlane.f32.xlu0 %v3371
  %v3377 = vpop.xlane.xlu0 %3376
  %v3378 = vsub.f32 %v3371, %v3377
  %v3379 = vmul.f32 %v3378, 1.442695
  %v3380 = vpow.pop %v3379
  %3381 = vadd.xlane.f32.xlu0 %v3380
  %v3382 = vpop.xlane.xlu0 %3381
  %v3383 = vrcp.pop %v3382
  %v3384 = vmul.f32 %v3380, %v3383
  %3385 = vst [vmem:[%s5] sm:$0xff] %v3384
  // Predicated region
  $region22: #{actgen_forward.7} parent=0 // pred_check
    _
  $region23: #{actgen_forward.7} parent=0 // pred_check_branch
    %3387 = sbr.rel (0) target = $region25
  $region24: #{actgen_forward.7} parent=0 // pred_region
    _
  $region25: #{actgen_forward.7} parent=0 // pred_fallthru
    _
  // Predicated region
  $region26: #{actgen_forward.7} parent=0 // pred_check
    _
  $region27: #{actgen_forward.7} parent=0 // pred_check_branch
    %3389 = sbr.rel (0) target = $region29
  $region28: #{actgen_forward.7} parent=0 // pred_region
    _
  $region29: #{actgen_forward.7} parent=0 // pred_fallthru
    _

</llo_original>
